<compile_context>
chip_gen: v6e
topology: v6e:2x2x1
jax: 0.10.0
libtpu: 0.0.40
codegen_flags: <defaults>
</compile_context>

<pallas_src>
import math

import numpy as np
import jax
import jax.numpy as jnp
from jax.experimental import pallas as pl
from jax.experimental.pallas import tpu as pltpu

# ---- module "hyper-parameters" (deterministic, in-script) -------------------
DERIVATIVE_ORDER = 0.5      # derivative_order passed to __init__
N_TERMS = 20                # n
MIN_STEP = 1e-6
MAX_STEP = 1e-3
ALPHA_INIT = 1.0            # nn.Parameter(torch.tensor(1.0))

# Series coefficients c_k are pure scalars -> computed host-side.
_COEFFS = tuple(
    ((-1.0) ** k)
    * math.exp(math.lgamma(DERIVATIVE_ORDER + k + 1.0))
    / (float(math.factorial(k)) * math.exp(math.lgamma(DERIVATIVE_ORDER + 1.0)))
    for k in range(N_TERMS)
)

LANES = 128
MAX_TILE_ROWS = 4096          # 4096*128*4 B = 2 MiB per f32 buffer
ROW_ALIGN = 64                # keeps block rows sublane-aligned for f32/bf16/int8 packing
SMALL_INPUT_ELEMS = 64 * 1024 # below this, fused XLA elementwise beats a pallas_call


def _round_up(v, m):
    return ((v + m - 1) // m) * m


def _caputo_kernel(scalars_ref, x_ref, o_ref):
    """Per-tile elementwise kernel: adaptive step + Caputo finite-difference series.

    VALU-bound (~100 VPU ops per element); DMA is fully hidden by the pipeline.
    """
    x = x_ref[...].astype(jnp.float32)      # cast in-kernel (input stays orig dtype in HBM)
    scale = scalars_ref[0]                  # alpha * (MAX_STEP - MIN_STEP) / std
    bias = scalars_ref[1]                   # MIN_STEP - scale * mean

    # adaptive_step_size, scalar algebra fully folded: h = MIN + scale*(x - mean)
    h = scale * x + bias

    base = jnp.maximum(x, 0.0)              # relu(x) -> also the k=0 shifted relu

    # sum_{k=0..N-1} c_k * (relu(x - k*h) - relu(x - (k+1)*h))
    # Difference-of-relus form kept (partial sums stay O(h)) and x - k*h computed
    # directly per term, so f32 cancellation matches the reference implementation.
    r_prev = base
    r_k = jnp.maximum(x - h, 0.0)
    acc = jnp.float32(_COEFFS[0]) * (r_prev - r_k)
    r_prev = r_k
    for k in range(2, N_TERMS + 1):
        r_k = jnp.maximum(x - jnp.float32(k) * h, 0.0)
        acc = acc + jnp.float32(_COEFFS[k - 1]) * (r_prev - r_k)
        r_prev = r_k

    # 1/h: EUP approximate reciprocal seed + one Newton step (~exact f32 divide).
    inv_h = pl.reciprocal(h, approx=True)
    inv_h = inv_h * (2.0 - h * inv_h)

    o_ref[...] = (base + acc * inv_h).astype(o_ref.dtype)


def _caputo_reference(x32, alpha=ALPHA_INIT):
    """Pure-jnp transcription of the PyTorch module (f32). Used as the small-input
    fast path and as the validation reference."""
    mean = jnp.mean(x32)
    std = jnp.std(x32, ddof=1)                      # torch.std default: unbiased
    h = MIN_STEP + alpha * (x32 - mean) / std * (MAX_STEP - MIN_STEP)
    k = jnp.arange(N_TERMS, dtype=jnp.float32)
    c = jnp.asarray(_COEFFS, dtype=jnp.float32)
    xe = x32[..., None]
    he = h[..., None]
    term = c * (jnp.maximum(xe - k * he, 0.0) - jnp.maximum(xe - (k + 1.0) * he, 0.0))
    frac = jnp.sum(term, axis=-1) / h
    return jnp.maximum(x32, 0.0) + frac


def caputo_fractional_activation(x, alpha=ALPHA_INIT):
    """CaputoFractionalActivation forward. Designed to be called under jax.jit so
    the statistics reductions fuse into a single HBM pass."""
    orig_shape = x.shape
    orig_dtype = x.dtype
    total = int(x.size)

    # ---- small-input fast path: launch/pipeline overhead would dominate ------
    if total < SMALL_INPUT_ELEMS:
        y = _caputo_reference(x.astype(jnp.float32), alpha)
        return y.astype(orig_dtype).reshape(orig_shape)

    # ---- global statistics in ONE fused pass (sum + sum of squares) ----------
    xf = x.astype(jnp.float32)              # fuses into the reductions under jit
    n = jnp.float32(total)
    s1 = jnp.sum(xf)
    s2 = jnp.sum(xf * xf)
    mean = s1 / n
    var = jnp.maximum(s2 - n * mean * mean, 0.0) / jnp.float32(total - 1)  # ddof=1
    std = jnp.sqrt(var)
    scale = jnp.float32(alpha) * jnp.float32(MAX_STEP - MIN_STEP) / std
    bias = jnp.float32(MIN_STEP) - scale * mean
    scalars = jnp.stack([scale, bias]).astype(jnp.float32)

    # ---- lane-dense (rows, 128) slab; no whole-tensor pad in the common case --
    if total % LANES == 0:
        rows = total // LANES
        x2d = x.reshape(rows, LANES)        # layout-preserving reshape, no HBM copy
        tail_pad = 0
    else:
        rows = pl.cdiv(total, LANES)        # rare ragged case: tiny (<128 elem) tail pad
        tail_pad = rows * LANES - total
        x2d = jnp.pad(x.reshape(-1), (0, tail_pad)).reshape(rows, LANES)

    # >=2 tiles so dimension_semantics=("parallel",) can use both v7x TensorCores.
    num_splits = max(2, pl.cdiv(rows, MAX_TILE_ROWS))
    tile_rows = min(MAX_TILE_ROWS, _round_up(pl.cdiv(rows, num_splits), ROW_ALIGN))
    grid = (pl.cdiv(rows, tile_rows),)      # last block may be partial; Pallas masks it

    out2d = pl.pallas_call(
        _caputo_kernel,
        out_shape=jax.ShapeDtypeStruct((rows, LANES), orig_dtype),
        grid=grid,
        in_specs=[
            pl.BlockSpec(memory_space=pltpu.SMEM),               # [scale, bias]
            pl.BlockSpec((tile_rows, LANES), lambda i: (i, 0)),  # x tile
        ],
        out_specs=pl.BlockSpec((tile_rows, LANES), lambda i: (i, 0)),
        compiler_params=pltpu.CompilerParams(
            dimension_semantics=("parallel",)
        ),
    )(scalars, x2d)

    if tail_pad:
        return out2d.reshape(-1)[:total].reshape(orig_shape)
    return out2d.reshape(orig_shape)


if __name__ == "__main__":
    key = jax.random.PRNGKey(0)
    # Conv-feature-style activation input: 2*8*64*64 = 65536 elements, large enough
    # to take the Pallas kernel path (smaller inputs take the fused-XLA fast path).
    x = jax.random.normal(key, (2, 8, 64, 64), dtype=jnp.float32)

    fn = jax.jit(caputo_fractional_activation)
    y = jax.block_until_ready(fn(x))
    assert y.shape == x.shape and y.dtype == x.dtype

    # Validate against the pure-jnp transcription of the PyTorch module.  Elements
    # where |h| ~ 0 are excluded: there the module itself divides f32 rounding noise
    # by ~0 (inherited from the original formulation), so no two correct
    # implementations agree bit-for-bit.
    xf = x.astype(jnp.float32)
    y_ref = jax.block_until_ready(_caputo_reference(xf, ALPHA_INIT))
    h_ref = MIN_STEP + ALPHA_INIT * (xf - jnp.mean(xf)) / jnp.std(xf, ddof=1) * (
        MAX_STEP - MIN_STEP
    )
    well = np.asarray(jnp.abs(h_ref) > 2e-6)
    np.testing.assert_allclose(
        np.asarray(y)[well], np.asarray(y_ref)[well], rtol=5e-2, atol=5e-2
    )

    # Tiny input exercises the small-input fast path.
    x_small = jax.random.normal(jax.random.PRNGKey(0), (2, 4, 16, 16), dtype=jnp.float32)
    y_small = jax.block_until_ready(fn(x_small))
    assert y_small.shape == x_small.shape and y_small.dtype == x_small.dtype

    print("KERNEL_OK")
</pallas_src>

<mosaic_0001>
module attributes {stable_mosaic.version = 11 : i64} {
  func.func @_caputo_kernel(%arg0: i32, %arg1: memref<2xf32, #tpu.memory_space<smem>>, %arg2: memref<256x128xf32, #tpu.memory_space<vmem>>, %arg3: memref<256x128xf32, #tpu.memory_space<vmem>>) attributes {dimension_semantics = [#tpu.dimension_semantics<parallel>], iteration_bounds = array<i64: 2>, scalar_prefetch = 0 : i64, scratch_operands = 0 : i64, tpu.core_type = #tpu.core_type<tc>, window_params = [{transform_indices = @transform_0, window_bounds = array<i64: 2>}, {transform_indices = @transform_1, window_bounds = array<i64: 256, 128>}, {transform_indices = @transform_2, window_bounds = array<i64: 256, 128>}]} {
    %c0 = arith.constant 0 : index
    %c0_0 = arith.constant 0 : index
    %0 = vector.load %arg2[%c0, %c0_0] : memref<256x128xf32, #tpu.memory_space<vmem>>, vector<256x128xf32>
    %c0_1 = arith.constant 0 : index
    %1 = memref.load %arg1[%c0_1] : memref<2xf32, #tpu.memory_space<smem>>
    %c1 = arith.constant 1 : index
    %2 = memref.load %arg1[%c1] : memref<2xf32, #tpu.memory_space<smem>>
    %3 = vector.broadcast %1 : f32 to vector<256x128xf32>
    %4 = arith.mulf %3, %0 : vector<256x128xf32>
    %5 = vector.broadcast %2 : f32 to vector<256x128xf32>
    %6 = arith.addf %4, %5 : vector<256x128xf32>
    %cst = arith.constant 0.000000e+00 : f32
    %7 = vector.broadcast %cst : f32 to vector<256x128xf32>
    %8 = arith.maximumf %0, %7 : vector<256x128xf32>
    %9 = arith.subf %0, %6 : vector<256x128xf32>
    %cst_2 = arith.constant 0.000000e+00 : f32
    %10 = vector.broadcast %cst_2 : f32 to vector<256x128xf32>
    %11 = arith.maximumf %9, %10 : vector<256x128xf32>
    %12 = arith.subf %8, %11 : vector<256x128xf32>
    %cst_3 = arith.constant 1.000000e+00 : f32
    %13 = vector.broadcast %cst_3 : f32 to vector<256x128xf32>
    %14 = arith.mulf %13, %12 : vector<256x128xf32>
    %cst_4 = arith.constant 2.000000e+00 : f32
    %15 = vector.broadcast %cst_4 : f32 to vector<256x128xf32>
    %16 = arith.mulf %15, %6 : vector<256x128xf32>
    %17 = arith.subf %0, %16 : vector<256x128xf32>
    %cst_5 = arith.constant 0.000000e+00 : f32
    %18 = vector.broadcast %cst_5 : f32 to vector<256x128xf32>
    %19 = arith.maximumf %17, %18 : vector<256x128xf32>
    %20 = arith.subf %11, %19 : vector<256x128xf32>
    %cst_6 = arith.constant -1.500000e+00 : f32
    %21 = vector.broadcast %cst_6 : f32 to vector<256x128xf32>
    %22 = arith.mulf %21, %20 : vector<256x128xf32>
    %23 = arith.addf %14, %22 : vector<256x128xf32>
    %cst_7 = arith.constant 3.000000e+00 : f32
    %24 = vector.broadcast %cst_7 : f32 to vector<256x128xf32>
    %25 = arith.mulf %24, %6 : vector<256x128xf32>
    %26 = arith.subf %0, %25 : vector<256x128xf32>
    %cst_8 = arith.constant 0.000000e+00 : f32
    %27 = vector.broadcast %cst_8 : f32 to vector<256x128xf32>
    %28 = arith.maximumf %26, %27 : vector<256x128xf32>
    %29 = arith.subf %19, %28 : vector<256x128xf32>
    %cst_9 = arith.constant 1.875000e+00 : f32
    %30 = vector.broadcast %cst_9 : f32 to vector<256x128xf32>
    %31 = arith.mulf %30, %29 : vector<256x128xf32>
    %32 = arith.addf %23, %31 : vector<256x128xf32>
    %cst_10 = arith.constant 4.000000e+00 : f32
    %33 = vector.broadcast %cst_10 : f32 to vector<256x128xf32>
    %34 = arith.mulf %33, %6 : vector<256x128xf32>
    %35 = arith.subf %0, %34 : vector<256x128xf32>
    %cst_11 = arith.constant 0.000000e+00 : f32
    %36 = vector.broadcast %cst_11 : f32 to vector<256x128xf32>
    %37 = arith.maximumf %35, %36 : vector<256x128xf32>
    %38 = arith.subf %28, %37 : vector<256x128xf32>
    %cst_12 = arith.constant -2.187500e+00 : f32
    %39 = vector.broadcast %cst_12 : f32 to vector<256x128xf32>
    %40 = arith.mulf %39, %38 : vector<256x128xf32>
    %41 = arith.addf %32, %40 : vector<256x128xf32>
    %cst_13 = arith.constant 5.000000e+00 : f32
    %42 = vector.broadcast %cst_13 : f32 to vector<256x128xf32>
    %43 = arith.mulf %42, %6 : vector<256x128xf32>
    %44 = arith.subf %0, %43 : vector<256x128xf32>
    %cst_14 = arith.constant 0.000000e+00 : f32
    %45 = vector.broadcast %cst_14 : f32 to vector<256x128xf32>
    %46 = arith.maximumf %44, %45 : vector<256x128xf32>
    %47 = arith.subf %37, %46 : vector<256x128xf32>
    %cst_15 = arith.constant 2.4609375 : f32
    %48 = vector.broadcast %cst_15 : f32 to vector<256x128xf32>
    %49 = arith.mulf %48, %47 : vector<256x128xf32>
    %50 = arith.addf %41, %49 : vector<256x128xf32>
    %cst_16 = arith.constant 6.000000e+00 : f32
    %51 = vector.broadcast %cst_16 : f32 to vector<256x128xf32>
    %52 = arith.mulf %51, %6 : vector<256x128xf32>
    %53 = arith.subf %0, %52 : vector<256x128xf32>
    %cst_17 = arith.constant 0.000000e+00 : f32
    %54 = vector.broadcast %cst_17 : f32 to vector<256x128xf32>
    %55 = arith.maximumf %53, %54 : vector<256x128xf32>
    %56 = arith.subf %46, %55 : vector<256x128xf32>
    %cst_18 = arith.constant -2.70703125 : f32
    %57 = vector.broadcast %cst_18 : f32 to vector<256x128xf32>
    %58 = arith.mulf %57, %56 : vector<256x128xf32>
    %59 = arith.addf %50, %58 : vector<256x128xf32>
    %cst_19 = arith.constant 7.000000e+00 : f32
    %60 = vector.broadcast %cst_19 : f32 to vector<256x128xf32>
    %61 = arith.mulf %60, %6 : vector<256x128xf32>
    %62 = arith.subf %0, %61 : vector<256x128xf32>
    %cst_20 = arith.constant 0.000000e+00 : f32
    %63 = vector.broadcast %cst_20 : f32 to vector<256x128xf32>
    %64 = arith.maximumf %62, %63 : vector<256x128xf32>
    %65 = arith.subf %55, %64 : vector<256x128xf32>
    %cst_21 = arith.constant 2.93261719 : f32
    %66 = vector.broadcast %cst_21 : f32 to vector<256x128xf32>
    %67 = arith.mulf %66, %65 : vector<256x128xf32>
    %68 = arith.addf %59, %67 : vector<256x128xf32>
    %cst_22 = arith.constant 8.000000e+00 : f32
    %69 = vector.broadcast %cst_22 : f32 to vector<256x128xf32>
    %70 = arith.mulf %69, %6 : vector<256x128xf32>
    %71 = arith.subf %0, %70 : vector<256x128xf32>
    %cst_23 = arith.constant 0.000000e+00 : f32
    %72 = vector.broadcast %cst_23 : f32 to vector<256x128xf32>
    %73 = arith.maximumf %71, %72 : vector<256x128xf32>
    %74 = arith.subf %64, %73 : vector<256x128xf32>
    %cst_24 = arith.constant -3.14208984 : f32
    %75 = vector.broadcast %cst_24 : f32 to vector<256x128xf32>
    %76 = arith.mulf %75, %74 : vector<256x128xf32>
    %77 = arith.addf %68, %76 : vector<256x128xf32>
    %cst_25 = arith.constant 9.000000e+00 : f32
    %78 = vector.broadcast %cst_25 : f32 to vector<256x128xf32>
    %79 = arith.mulf %78, %6 : vector<256x128xf32>
    %80 = arith.subf %0, %79 : vector<256x128xf32>
    %cst_26 = arith.constant 0.000000e+00 : f32
    %81 = vector.broadcast %cst_26 : f32 to vector<256x128xf32>
    %82 = arith.maximumf %80, %81 : vector<256x128xf32>
    %83 = arith.subf %73, %82 : vector<256x128xf32>
    %cst_27 = arith.constant 3.33847046 : f32
    %84 = vector.broadcast %cst_27 : f32 to vector<256x128xf32>
    %85 = arith.mulf %84, %83 : vector<256x128xf32>
    %86 = arith.addf %77, %85 : vector<256x128xf32>
    %cst_28 = arith.constant 1.000000e+01 : f32
    %87 = vector.broadcast %cst_28 : f32 to vector<256x128xf32>
    %88 = arith.mulf %87, %6 : vector<256x128xf32>
    %89 = arith.subf %0, %88 : vector<256x128xf32>
    %cst_29 = arith.constant 0.000000e+00 : f32
    %90 = vector.broadcast %cst_29 : f32 to vector<256x128xf32>
    %91 = arith.maximumf %89, %90 : vector<256x128xf32>
    %92 = arith.subf %82, %91 : vector<256x128xf32>
    %cst_30 = arith.constant -3.52394104 : f32
    %93 = vector.broadcast %cst_30 : f32 to vector<256x128xf32>
    %94 = arith.mulf %93, %92 : vector<256x128xf32>
    %95 = arith.addf %86, %94 : vector<256x128xf32>
    %cst_31 = arith.constant 1.100000e+01 : f32
    %96 = vector.broadcast %cst_31 : f32 to vector<256x128xf32>
    %97 = arith.mulf %96, %6 : vector<256x128xf32>
    %98 = arith.subf %0, %97 : vector<256x128xf32>
    %cst_32 = arith.constant 0.000000e+00 : f32
    %99 = vector.broadcast %cst_32 : f32 to vector<256x128xf32>
    %100 = arith.maximumf %98, %99 : vector<256x128xf32>
    %101 = arith.subf %91, %100 : vector<256x128xf32>
    %cst_33 = arith.constant 3.70013809 : f32
    %102 = vector.broadcast %cst_33 : f32 to vector<256x128xf32>
    %103 = arith.mulf %102, %101 : vector<256x128xf32>
    %104 = arith.addf %95, %103 : vector<256x128xf32>
    %cst_34 = arith.constant 1.200000e+01 : f32
    %105 = vector.broadcast %cst_34 : f32 to vector<256x128xf32>
    %106 = arith.mulf %105, %6 : vector<256x128xf32>
    %107 = arith.subf %0, %106 : vector<256x128xf32>
    %cst_35 = arith.constant 0.000000e+00 : f32
    %108 = vector.broadcast %cst_35 : f32 to vector<256x128xf32>
    %109 = arith.maximumf %107, %108 : vector<256x128xf32>
    %110 = arith.subf %100, %109 : vector<256x128xf32>
    %cst_36 = arith.constant -3.86832619 : f32
    %111 = vector.broadcast %cst_36 : f32 to vector<256x128xf32>
    %112 = arith.mulf %111, %110 : vector<256x128xf32>
    %113 = arith.addf %104, %112 : vector<256x128xf32>
    %cst_37 = arith.constant 1.300000e+01 : f32
    %114 = vector.broadcast %cst_37 : f32 to vector<256x128xf32>
    %115 = arith.mulf %114, %6 : vector<256x128xf32>
    %116 = arith.subf %0, %115 : vector<256x128xf32>
    %cst_38 = arith.constant 0.000000e+00 : f32
    %117 = vector.broadcast %cst_38 : f32 to vector<256x128xf32>
    %118 = arith.maximumf %116, %117 : vector<256x128xf32>
    %119 = arith.subf %109, %118 : vector<256x128xf32>
    %cst_39 = arith.constant 4.02950621 : f32
    %120 = vector.broadcast %cst_39 : f32 to vector<256x128xf32>
    %121 = arith.mulf %120, %119 : vector<256x128xf32>
    %122 = arith.addf %113, %121 : vector<256x128xf32>
    %cst_40 = arith.constant 1.400000e+01 : f32
    %123 = vector.broadcast %cst_40 : f32 to vector<256x128xf32>
    %124 = arith.mulf %123, %6 : vector<256x128xf32>
    %125 = arith.subf %0, %124 : vector<256x128xf32>
    %cst_41 = arith.constant 0.000000e+00 : f32
    %126 = vector.broadcast %cst_41 : f32 to vector<256x128xf32>
    %127 = arith.maximumf %125, %126 : vector<256x128xf32>
    %128 = arith.subf %118, %127 : vector<256x128xf32>
    %cst_42 = arith.constant -4.18448734 : f32
    %129 = vector.broadcast %cst_42 : f32 to vector<256x128xf32>
    %130 = arith.mulf %129, %128 : vector<256x128xf32>
    %131 = arith.addf %122, %130 : vector<256x128xf32>
    %cst_43 = arith.constant 1.500000e+01 : f32
    %132 = vector.broadcast %cst_43 : f32 to vector<256x128xf32>
    %133 = arith.mulf %132, %6 : vector<256x128xf32>
    %134 = arith.subf %0, %133 : vector<256x128xf32>
    %cst_44 = arith.constant 0.000000e+00 : f32
    %135 = vector.broadcast %cst_44 : f32 to vector<256x128xf32>
    %136 = arith.maximumf %134, %135 : vector<256x128xf32>
    %137 = arith.subf %127, %136 : vector<256x128xf32>
    %cst_45 = arith.constant 4.33393335 : f32
    %138 = vector.broadcast %cst_45 : f32 to vector<256x128xf32>
    %139 = arith.mulf %138, %137 : vector<256x128xf32>
    %140 = arith.addf %131, %139 : vector<256x128xf32>
    %cst_46 = arith.constant 1.600000e+01 : f32
    %141 = vector.broadcast %cst_46 : f32 to vector<256x128xf32>
    %142 = arith.mulf %141, %6 : vector<256x128xf32>
    %143 = arith.subf %0, %142 : vector<256x128xf32>
    %cst_47 = arith.constant 0.000000e+00 : f32
    %144 = vector.broadcast %cst_47 : f32 to vector<256x128xf32>
    %145 = arith.maximumf %143, %144 : vector<256x128xf32>
    %146 = arith.subf %136, %145 : vector<256x128xf32>
    %cst_48 = arith.constant -4.47839785 : f32
    %147 = vector.broadcast %cst_48 : f32 to vector<256x128xf32>
    %148 = arith.mulf %147, %146 : vector<256x128xf32>
    %149 = arith.addf %140, %148 : vector<256x128xf32>
    %cst_49 = arith.constant 1.700000e+01 : f32
    %150 = vector.broadcast %cst_49 : f32 to vector<256x128xf32>
    %151 = arith.mulf %150, %6 : vector<256x128xf32>
    %152 = arith.subf %0, %151 : vector<256x128xf32>
    %cst_50 = arith.constant 0.000000e+00 : f32
    %153 = vector.broadcast %cst_50 : f32 to vector<256x128xf32>
    %154 = arith.maximumf %152, %153 : vector<256x128xf32>
    %155 = arith.subf %145, %154 : vector<256x128xf32>
    %cst_51 = arith.constant 4.61834764 : f32
    %156 = vector.broadcast %cst_51 : f32 to vector<256x128xf32>
    %157 = arith.mulf %156, %155 : vector<256x128xf32>
    %158 = arith.addf %149, %157 : vector<256x128xf32>
    %cst_52 = arith.constant 1.800000e+01 : f32
    %159 = vector.broadcast %cst_52 : f32 to vector<256x128xf32>
    %160 = arith.mulf %159, %6 : vector<256x128xf32>
    %161 = arith.subf %0, %160 : vector<256x128xf32>
    %cst_53 = arith.constant 0.000000e+00 : f32
    %162 = vector.broadcast %cst_53 : f32 to vector<256x128xf32>
    %163 = arith.maximumf %161, %162 : vector<256x128xf32>
    %164 = arith.subf %154, %163 : vector<256x128xf32>
    %cst_54 = arith.constant -4.75418139 : f32
    %165 = vector.broadcast %cst_54 : f32 to vector<256x128xf32>
    %166 = arith.mulf %165, %164 : vector<256x128xf32>
    %167 = arith.addf %158, %166 : vector<256x128xf32>
    %cst_55 = arith.constant 1.900000e+01 : f32
    %168 = vector.broadcast %cst_55 : f32 to vector<256x128xf32>
    %169 = arith.mulf %168, %6 : vector<256x128xf32>
    %170 = arith.subf %0, %169 : vector<256x128xf32>
    %cst_56 = arith.constant 0.000000e+00 : f32
    %171 = vector.broadcast %cst_56 : f32 to vector<256x128xf32>
    %172 = arith.maximumf %170, %171 : vector<256x128xf32>
    %173 = arith.subf %163, %172 : vector<256x128xf32>
    %cst_57 = arith.constant 4.88624239 : f32
    %174 = vector.broadcast %cst_57 : f32 to vector<256x128xf32>
    %175 = arith.mulf %174, %173 : vector<256x128xf32>
    %176 = arith.addf %167, %175 : vector<256x128xf32>
    %cst_58 = arith.constant 2.000000e+01 : f32
    %177 = vector.broadcast %cst_58 : f32 to vector<256x128xf32>
    %178 = arith.mulf %177, %6 : vector<256x128xf32>
    %179 = arith.subf %0, %178 : vector<256x128xf32>
    %cst_59 = arith.constant 0.000000e+00 : f32
    %180 = vector.broadcast %cst_59 : f32 to vector<256x128xf32>
    %181 = arith.maximumf %179, %180 : vector<256x128xf32>
    %182 = arith.subf %172, %181 : vector<256x128xf32>
    %cst_60 = arith.constant -5.01482773 : f32
    %183 = vector.broadcast %cst_60 : f32 to vector<256x128xf32>
    %184 = arith.mulf %183, %182 : vector<256x128xf32>
    %185 = arith.addf %176, %184 : vector<256x128xf32>
    %186 = tpu.reciprocal %6 {approx = true} : vector<256x128xf32> -> vector<256x128xf32>
    %187 = arith.mulf %6, %186 : vector<256x128xf32>
    %cst_61 = arith.constant 2.000000e+00 : f32
    %188 = vector.broadcast %cst_61 : f32 to vector<256x128xf32>
    %189 = arith.subf %188, %187 : vector<256x128xf32>
    %190 = arith.mulf %186, %189 : vector<256x128xf32>
    %191 = arith.mulf %185, %190 : vector<256x128xf32>
    %192 = arith.addf %8, %191 : vector<256x128xf32>
    %c0_62 = arith.constant 0 : index
    %c0_63 = arith.constant 0 : index
    %193 = vector.load %arg3[%c0_62, %c0_63] : memref<256x128xf32, #tpu.memory_space<vmem>>, vector<256x128xf32>
    tpu.vector_store %arg3[%c0_62, %c0_63], %192 {strides = array<i32>} : memref<256x128xf32, #tpu.memory_space<vmem>>, vector<256x128xf32>,
    return
  }
  func.func @transform_0(%arg0: i32) -> i32 {
    %c0_i32 = arith.constant 0 : i32
    %c0_i32_0 = arith.constant 0 : i32
    return %c0_i32 : i32
  }
  func.func @transform_1(%arg0: i32) -> (i32, i32) {
    %c0_i32 = arith.constant 0 : i32
    %c0_i32_0 = arith.constant 0 : i32
    return %arg0, %c0_i32 : i32, i32
  }
  func.func @transform_2(%arg0: i32) -> (i32, i32) {
    %c0_i32 = arith.constant 0 : i32
    %c0_i32_0 = arith.constant 0 : i32
    return %arg0, %c0_i32 : i32, i32
  }
}

</mosaic_0001>

<llo_original>
// kernel: caputo_fractional_activation.1
$region0: #{caputo_fractional_activation.1}
  #allocation0 [shape = 'u32[]', space=smem, size = 0x4, offset = 0x4, fixed_abs, tag = 'smem constant byte address 0x4 - core index']
  #allocation1 [shape = 'u32[144,128]{1,0:T(1,128)}', space=vmem, size = 0x12000, scoped, tag = 'internal scratch']
  %s0 = inlined_call_operand.vmem [shape: f32[2], index: 0, kind: input, shape index: {}]
  %s1 = inlined_call_operand.vmem [shape: f32[512,128], index: 1, kind: input, shape index: {}]
  %s2 = inlined_call_operand.vmem [shape: f32[512,128], index: 2, kind: output, shape index: {}]
  %s3 = sld [smem:[#allocation0]]
  $region45: #{caputo_fractional_activation.1} parent=0
    _
  %s5 = ssub.s32 1, %s3
  %s6 = scalar_select 0, %s5, %s3
  $region1: #{caputo_fractional_activation.1} parent=0
    #allocation2 [shape = 'u8[512]{0}', space=smem, size = 0x200, scoped, tag = 'input window, operand 0, single buffered']
    #allocation3 [shape = 's32[2]{0}', space=sflag, size = 0x8, scoped, tag = 'scoped memory for caputo_fractional_activation.1']
    %7 = vsyncpa [#allocation3], 0
    loop: start=0, step=1, limit=4
    $region2: #{caputo_fractional_activation.1} parent=1 // loop_pre_header
      _
    $region3: #{caputo_fractional_activation.1} parent=1 // loop_header
      %s9 = sphi 0, %s13
      %p10 = scmp.ge.s32.totalorder %s9, 4
      %s17 = sphi 0, %s17
      %s19 = sphi 0, %s17
      %s20 = sphi 0, %s19
      %s34 = sphi 0, %s20
      %s40 = sphi 0, %s42
      %s43 = sphi 0, %s40
      %s44 = sphi 0, %s43
      %s60 = sphi 0, %s44
      %s66 = sphi 0, %s68
      %s69 = sphi 0, %s66
      %s70 = sphi 0, %s69
      %s86 = sphi 0, %s70
    $region4: #{caputo_fractional_activation.1} parent=1 // loop_header_branch
      %12 = sbr.rel (%p10) target = $region8
    $region5: #{caputo_fractional_activation.1} parent=1 // loop_body
      %s14 = ssub.s32 %s9, 1
      %s15 = ssub.s32 %s9, 2
      %s16 = sadd.s32 %s9, 1
      %s18 = sadd.s32 %s17, 1
      %p21 = scmp.eq.s32.totalorder %s9, 1
      %p22 = scmp.ne.s32.totalorder %s17, %s19
      %p23 = scmp.eq.s32.totalorder %s9, 0
      %p24 = por %p22, %p23
      %p25 = scmp.ne.s32.totalorder %s17, %s19
      %p26 = scmp.eq.s32.totalorder %s14, 1
      %p27 = por %p25, %p26
      %p28 = scmp.ne.s32.totalorder %s19, %s20
      %p29 = scmp.eq.s32.totalorder %s14, 0
      %p30 = por %p28, %p29
      %p31 = scmp.ne.s32.totalorder %s19, %s20
      %p32 = scmp.eq.s32.totalorder %s15, 1
      %p33 = por %p31, %p32
      %p35 = scmp.ne.s32.totalorder %s20, %s34
      %p36 = scmp.eq.s32.totalorder %s15, 0
      %p37 = por %p35, %p36
      %s38 = ssub.s32 %s9, %s16
      %p39 = scmp.eq.s32.totalorder %s38, 0
      %s41 = sadd.s32 %s40, 1
      %s42 = scalar_select %p39, %s40, %s41
      %p45 = pneg %p39
      %p46 = scmp.eq.s32.totalorder %s9, 1
      %p47 = por %p45, %p46
      %p48 = scmp.ne.s32.totalorder %s40, %s43
      %p49 = scmp.eq.s32.totalorder %s9, 0
      %p50 = por %p48, %p49
      %p51 = scmp.ne.s32.totalorder %s40, %s43
      %p52 = scmp.eq.s32.totalorder %s14, 1
      %p53 = por %p51, %p52
      %p54 = scmp.ne.s32.totalorder %s43, %s44
      %p55 = scmp.eq.s32.totalorder %s14, 0
      %p56 = por %p54, %p55
      %p57 = scmp.ne.s32.totalorder %s43, %s44
      %p58 = scmp.eq.s32.totalorder %s15, 1
      %p59 = por %p57, %p58
      %p61 = scmp.ne.s32.totalorder %s44, %s60
      %p62 = scmp.eq.s32.totalorder %s15, 0
      %p63 = por %p61, %p62
      %s64 = ssub.s32 %s9, %s16
      %p65 = scmp.eq.s32.totalorder %s64, 0
      %s67 = sadd.s32 %s66, 1
      %s68 = scalar_select %p65, %s66, %s67
      %p71 = pneg %p65
      %p72 = scmp.eq.s32.totalorder %s9, 1
      %p73 = por %p71, %p72
      %p74 = scmp.ne.s32.totalorder %s66, %s69
      %p75 = scmp.eq.s32.totalorder %s9, 0
      %p76 = por %p74, %p75
      %p77 = scmp.ne.s32.totalorder %s66, %s69
      %p78 = scmp.eq.s32.totalorder %s14, 1
      %p79 = por %p77, %p78
      %p80 = scmp.ne.s32.totalorder %s69, %s70
      %p81 = scmp.eq.s32.totalorder %s14, 0
      %p82 = por %p80, %p81
      %p83 = scmp.ne.s32.totalorder %s69, %s70
      %p84 = scmp.eq.s32.totalorder %s15, 1
      %p85 = por %p83, %p84
      %p87 = scmp.ne.s32.totalorder %s70, %s86
      %p88 = scmp.eq.s32.totalorder %s15, 0
      %p89 = por %p87, %p88
      %p90 = scmp.le.s32.totalorder 1, %s9
      %p91 = scmp.lt.s32.totalorder %s9, 3
      %p92 = pnand %p90, %p91
      %p93 = pneg %p92
      // Predicated region
      $region9: #{caputo_fractional_activation.1} parent=5 // pred_check
        _
      $region10: #{caputo_fractional_activation.1} parent=5 // pred_check_branch
        %95 = sbr.rel (%p92) target = $region12
      $region11: #{caputo_fractional_activation.1} parent=5 // pred_region
        %s96 = ssub.s32 %s9, 1
        // Predicated region
        $region13: #{caputo_fractional_activation.1} parent=11 // pred_check
          %p97 = pneg %p30
        $region14: #{caputo_fractional_activation.1} parent=11 // pred_check_branch
          %99 = sbr.rel (%p97) target = $region16
        $region15: #{caputo_fractional_activation.1} parent=11 // pred_region
          %s101 = ssub.s32 16, 16
          %102 = vsyncadd [#allocation3], %s101
          %s104 = sshll.u32 %s0, 4
          %s105 = int_to_ptr.vmem [resolvable:$true] %s104
          %107 = dma.vmem_to_smem %s105, 16, [#allocation2], [#allocation3]
        $region16: #{caputo_fractional_activation.1} parent=11 // pred_fallthru
          _
      $region12: #{caputo_fractional_activation.1} parent=5 // pred_fallthru
        _
      %p108 = scmp.lt.s32.totalorder %s9, 2
      // Predicated region
      $region17: #{caputo_fractional_activation.1} parent=5 // pred_check
        %p109 = pneg %p108
      $region18: #{caputo_fractional_activation.1} parent=5 // pred_check_branch
        %111 = sbr.rel (%p109) target = $region20
      $region19: #{caputo_fractional_activation.1} parent=5 // pred_region
        // Predicated region
        $region21: #{caputo_fractional_activation.1} parent=19 // pred_check
          %p112 = pneg %p50
        $region22: #{caputo_fractional_activation.1} parent=19 // pred_check_branch
          %114 = sbr.rel (%p112) target = $region24
        $region23: #{caputo_fractional_activation.1} parent=19 // pred_region
          %s115 = smul.u32 32, %s9
          %p116 = scmp.lt.s32.totalorder %s115, 63
          %s117 = scalar_select %p116, %s115, 63
          %s118 = smul.addr %s117, 8
          %s119 = scalar_lea.vmem %s1, %s118
          %s120 = smul.u32 32, %s9
        $region24: #{caputo_fractional_activation.1} parent=19 // pred_fallthru
          _
      $region20: #{caputo_fractional_activation.1} parent=5 // pred_fallthru
        _
      %p121 = scmp.le.s32.totalorder 1, %s9
      %p122 = scmp.lt.s32.totalorder %s9, 3
      %p123 = pnand %p121, %p122
      %p124 = pneg %p123
      // Predicated region
      $region25: #{caputo_fractional_activation.1} parent=5 // pred_check
        _
      $region26: #{caputo_fractional_activation.1} parent=5 // pred_check_branch
        %126 = sbr.rel (%p123) target = $region28
      $region27: #{caputo_fractional_activation.1} parent=5 // pred_region
        %s127 = ssub.s32 %s9, 1
        // Predicated region
        $region29: #{caputo_fractional_activation.1} parent=27 // pred_check
          %p128 = pneg %p30
        $region30: #{caputo_fractional_activation.1} parent=27 // pred_check_branch
          %130 = sbr.rel (%p128) target = $region32
        $region31: #{caputo_fractional_activation.1} parent=27 // pred_region
          %131 = dma.done [#allocation3], 16
        $region32: #{caputo_fractional_activation.1} parent=27 // pred_fallthru
          _
        %132 = sfence
        %p133 = pneg %p30
        %p134 = pneg %p27
        %s135 = smul.u32 32, %s14
        %p136 = scmp.lt.s32.totalorder %s135, 63
        %s137 = scalar_select %p136, %s135, 63
        %s138 = smul.addr %s137, 8
        %s139 = scalar_lea.vmem %s1, %s138
        %p140 = pneg %p56
        %p141 = pneg %p53
        %p142 = pneg %p82
        %p143 = pneg %p79
        %s144 = smul.u32 32, %s14
        %p145 = scmp.lt.s32.totalorder %s144, 63
        %s146 = scalar_select %p145, %s144, 63
        %s147 = smul.addr %s146, 8
        %s148 = scalar_lea.vmem %s2, %s147
        %s149 = smul.u32 32, %s14
        %p150 = scmp.lt.s32.totalorder %s149, 63
        %s151 = scalar_select %p150, %s149, 63
        %s152 = smul.addr %s151, 8
        %s153 = scalar_lea.vmem %s1, %s152
        %s154 = smul.u32 32, %s14
        %s155 = smul.u32 32, %s14
        %p156 = scmp.lt.s32.totalorder %s155, 63
        %s157 = scalar_select %p156, %s155, 63
        %s158 = smul.addr %s157, 8
        %s159 = scalar_lea.vmem %s2, %s158
        %s160 = smul.u32 32, %s14
        %v161 = vld [vmem:[%s153] sm:$0xff]
        %v162 = vld [vmem:[%s153 + $0x8] sm:$0xff]
        %v163 = vld [vmem:[%s153 + $0x10] sm:$0xff]
        %v164 = vld [vmem:[%s153 + $0x18] sm:$0xff]
        %v165 = vld [vmem:[%s153 + $0x20] sm:$0xff]
        %v166 = vld [vmem:[%s153 + $0x28] sm:$0xff]
        %v167 = vld [vmem:[%s153 + $0x30] sm:$0xff]
        %v168 = vld [vmem:[%s153 + $0x38] sm:$0xff]
        %v169 = vld [vmem:[%s153 + $0x40] sm:$0xff]
        %v170 = vld [vmem:[%s153 + $0x48] sm:$0xff]
        %v171 = vld [vmem:[%s153 + $0x50] sm:$0xff]
        %v172 = vld [vmem:[%s153 + $0x58] sm:$0xff]
        %v173 = vld [vmem:[%s153 + $0x60] sm:$0xff]
        %v174 = vld [vmem:[%s153 + $0x68] sm:$0xff]
        %v175 = vld [vmem:[%s153 + $0x70] sm:$0xff]
        %v176 = vld [vmem:[%s153 + $0x78] sm:$0xff]
        %v177 = vld [vmem:[%s153 + $0x80] sm:$0xff]
        %v178 = vld [vmem:[%s153 + $0x88] sm:$0xff]
        %v179 = vld [vmem:[%s153 + $0x90] sm:$0xff]
        %v180 = vld [vmem:[%s153 + $0x98] sm:$0xff]
        %v181 = vld [vmem:[%s153 + $0xa0] sm:$0xff]
        %v182 = vld [vmem:[%s153 + $0xa8] sm:$0xff]
        %v183 = vld [vmem:[%s153 + $0xb0] sm:$0xff]
        %v184 = vld [vmem:[%s153 + $0xb8] sm:$0xff]
        %v185 = vld [vmem:[%s153 + $0xc0] sm:$0xff]
        %v186 = vld [vmem:[%s153 + $0xc8] sm:$0xff]
        %v187 = vld [vmem:[%s153 + $0xd0] sm:$0xff]
        %v188 = vld [vmem:[%s153 + $0xd8] sm:$0xff]
        %v189 = vld [vmem:[%s153 + $0xe0] sm:$0xff]
        %v190 = vld [vmem:[%s153 + $0xe8] sm:$0xff]
        %v191 = vld [vmem:[%s153 + $0xf0] sm:$0xff]
        %v192 = vld [vmem:[%s153 + $0xf8] sm:$0xff]
        %s193 = sld [smem:[#allocation2]]
        %s194 = sld [smem:[#allocation2 + $0x1]]
        %v195 = vstv %s193
        %v196 = vmul.f32 %v195, %v161
        %v197 = vmul.f32 %v195, %v162
        %v198 = vmul.f32 %v195, %v163
        %v199 = vmul.f32 %v195, %v164
        %v200 = vmul.f32 %v195, %v165
        %v201 = vmul.f32 %v195, %v166
        %v202 = vmul.f32 %v195, %v167
        %v203 = vmul.f32 %v195, %v168
        %v204 = vmul.f32 %v195, %v169
        %v205 = vmul.f32 %v195, %v170
        %v206 = vmul.f32 %v195, %v171
        %v207 = vmul.f32 %v195, %v172
        %v208 = vmul.f32 %v195, %v173
        %v209 = vmul.f32 %v195, %v174
        %v210 = vmul.f32 %v195, %v175
        %v211 = vmul.f32 %v195, %v176
        %v212 = vmul.f32 %v195, %v177
        %v213 = vmul.f32 %v195, %v178
        %v214 = vmul.f32 %v195, %v179
        %v215 = vmul.f32 %v195, %v180
        %v216 = vmul.f32 %v195, %v181
        %v217 = vmul.f32 %v195, %v182
        %v218 = vmul.f32 %v195, %v183
        %v219 = vmul.f32 %v195, %v184
        %v220 = vmul.f32 %v195, %v185
        %v221 = vmul.f32 %v195, %v186
        %v222 = vmul.f32 %v195, %v187
        %v223 = vmul.f32 %v195, %v188
        %v224 = vmul.f32 %v195, %v189
        %v225 = vmul.f32 %v195, %v190
        %v226 = vmul.f32 %v195, %v191
        %v227 = vmul.f32 %v195, %v192
        %v228 = vstv %s194
        %v229 = vadd.f32 %v196, %v228
        %v230 = vadd.f32 %v197, %v228
        %v231 = vadd.f32 %v198, %v228
        %v232 = vadd.f32 %v199, %v228
        %v233 = vadd.f32 %v200, %v228
        %v234 = vadd.f32 %v201, %v228
        %v235 = vadd.f32 %v202, %v228
        %v236 = vadd.f32 %v203, %v228
        %v237 = vadd.f32 %v204, %v228
        %v238 = vadd.f32 %v205, %v228
        %v239 = vadd.f32 %v206, %v228
        %v240 = vadd.f32 %v207, %v228
        %v241 = vadd.f32 %v208, %v228
        %v242 = vadd.f32 %v209, %v228
        %v243 = vadd.f32 %v210, %v228
        %v244 = vadd.f32 %v211, %v228
        %v245 = vadd.f32 %v212, %v228
        %v246 = vadd.f32 %v213, %v228
        %v247 = vadd.f32 %v214, %v228
        %v248 = vadd.f32 %v215, %v228
        %v249 = vadd.f32 %v216, %v228
        %v250 = vadd.f32 %v217, %v228
        %v251 = vadd.f32 %v218, %v228
        %v252 = vadd.f32 %v219, %v228
        %v253 = vadd.f32 %v220, %v228
        %v254 = vadd.f32 %v221, %v228
        %v255 = vadd.f32 %v222, %v228
        %v256 = vadd.f32 %v223, %v228
        %v257 = vadd.f32 %v224, %v228
        %v258 = vadd.f32 %v225, %v228
        %v259 = vadd.f32 %v226, %v228
        %v260 = vadd.f32 %v227, %v228
        %v261 = vmax.f32 %v161, 0.0
        %v262 = vmax.f32 %v162, 0.0
        %v263 = vmax.f32 %v163, 0.0
        %v264 = vmax.f32 %v164, 0.0
        %v265 = vmax.f32 %v165, 0.0
        %v266 = vmax.f32 %v166, 0.0
        %v267 = vmax.f32 %v167, 0.0
        %v268 = vmax.f32 %v168, 0.0
        %v269 = vmax.f32 %v169, 0.0
        %v270 = vmax.f32 %v170, 0.0
        %v271 = vmax.f32 %v171, 0.0
        %v272 = vmax.f32 %v172, 0.0
        %v273 = vmax.f32 %v173, 0.0
        %v274 = vmax.f32 %v174, 0.0
        %v275 = vmax.f32 %v175, 0.0
        %v276 = vmax.f32 %v176, 0.0
        %v277 = vmax.f32 %v177, 0.0
        %v278 = vmax.f32 %v178, 0.0
        %v279 = vmax.f32 %v179, 0.0
        %v280 = vmax.f32 %v180, 0.0
        %v281 = vmax.f32 %v181, 0.0
        %v282 = vmax.f32 %v182, 0.0
        %v283 = vmax.f32 %v183, 0.0
        %v284 = vmax.f32 %v184, 0.0
        %v285 = vmax.f32 %v185, 0.0
        %v286 = vmax.f32 %v186, 0.0
        %v287 = vmax.f32 %v187, 0.0
        %v288 = vmax.f32 %v188, 0.0
        %v289 = vmax.f32 %v189, 0.0
        %v290 = vmax.f32 %v190, 0.0
        %v291 = vmax.f32 %v191, 0.0
        %v292 = vmax.f32 %v192, 0.0
        %v293 = vsub.f32 %v161, %v229
        %v294 = vsub.f32 %v162, %v230
        %v295 = vsub.f32 %v163, %v231
        %v296 = vsub.f32 %v164, %v232
        %v297 = vsub.f32 %v165, %v233
        %v298 = vsub.f32 %v166, %v234
        %v299 = vsub.f32 %v167, %v235
        %v300 = vsub.f32 %v168, %v236
        %v301 = vsub.f32 %v169, %v237
        %v302 = vsub.f32 %v170, %v238
        %v303 = vsub.f32 %v171, %v239
        %v304 = vsub.f32 %v172, %v240
        %v305 = vsub.f32 %v173, %v241
        %v306 = vsub.f32 %v174, %v242
        %v307 = vsub.f32 %v175, %v243
        %v308 = vsub.f32 %v176, %v244
        %v309 = vsub.f32 %v177, %v245
        %v310 = vsub.f32 %v178, %v246
        %v311 = vsub.f32 %v179, %v247
        %v312 = vsub.f32 %v180, %v248
        %v313 = vsub.f32 %v181, %v249
        %v314 = vsub.f32 %v182, %v250
        %v315 = vsub.f32 %v183, %v251
        %v316 = vsub.f32 %v184, %v252
        %v317 = vsub.f32 %v185, %v253
        %v318 = vsub.f32 %v186, %v254
        %v319 = vsub.f32 %v187, %v255
        %v320 = vsub.f32 %v188, %v256
        %v321 = vsub.f32 %v189, %v257
        %v322 = vsub.f32 %v190, %v258
        %v323 = vsub.f32 %v191, %v259
        %v324 = vsub.f32 %v192, %v260
        %v325 = vmax.f32 %v293, 0.0
        %v326 = vmax.f32 %v294, 0.0
        %v327 = vmax.f32 %v295, 0.0
        %v328 = vmax.f32 %v296, 0.0
        %v329 = vmax.f32 %v297, 0.0
        %v330 = vmax.f32 %v298, 0.0
        %v331 = vmax.f32 %v299, 0.0
        %v332 = vmax.f32 %v300, 0.0
        %v333 = vmax.f32 %v301, 0.0
        %v334 = vmax.f32 %v302, 0.0
        %v335 = vmax.f32 %v303, 0.0
        %v336 = vmax.f32 %v304, 0.0
        %v337 = vmax.f32 %v305, 0.0
        %v338 = vmax.f32 %v306, 0.0
        %v339 = vmax.f32 %v307, 0.0
        %v340 = vmax.f32 %v308, 0.0
        %v341 = vmax.f32 %v309, 0.0
        %v342 = vmax.f32 %v310, 0.0
        %v343 = vmax.f32 %v311, 0.0
        %v344 = vmax.f32 %v312, 0.0
        %v345 = vmax.f32 %v313, 0.0
        %v346 = vmax.f32 %v314, 0.0
        %v347 = vmax.f32 %v315, 0.0
        %v348 = vmax.f32 %v316, 0.0
        %v349 = vmax.f32 %v317, 0.0
        %v350 = vmax.f32 %v318, 0.0
        %v351 = vmax.f32 %v319, 0.0
        %v352 = vmax.f32 %v320, 0.0
        %v353 = vmax.f32 %v321, 0.0
        %v354 = vmax.f32 %v322, 0.0
        %v355 = vmax.f32 %v323, 0.0
        %v356 = vmax.f32 %v324, 0.0
        %v357 = vsub.f32 %v261, %v325
        %v358 = vsub.f32 %v262, %v326
        %v359 = vsub.f32 %v263, %v327
        %v360 = vsub.f32 %v264, %v328
        %v361 = vsub.f32 %v265, %v329
        %v362 = vsub.f32 %v266, %v330
        %v363 = vsub.f32 %v267, %v331
        %v364 = vsub.f32 %v268, %v332
        %v365 = vsub.f32 %v269, %v333
        %v366 = vsub.f32 %v270, %v334
        %v367 = vsub.f32 %v271, %v335
        %v368 = vsub.f32 %v272, %v336
        %v369 = vsub.f32 %v273, %v337
        %v370 = vsub.f32 %v274, %v338
        %v371 = vsub.f32 %v275, %v339
        %v372 = vsub.f32 %v276, %v340
        %v373 = vsub.f32 %v277, %v341
        %v374 = vsub.f32 %v278, %v342
        %v375 = vsub.f32 %v279, %v343
        %v376 = vsub.f32 %v280, %v344
        %v377 = vsub.f32 %v281, %v345
        %v378 = vsub.f32 %v282, %v346
        %v379 = vsub.f32 %v283, %v347
        %v380 = vsub.f32 %v284, %v348
        %v381 = vsub.f32 %v285, %v349
        %v382 = vsub.f32 %v286, %v350
        %v383 = vsub.f32 %v287, %v351
        %v384 = vsub.f32 %v288, %v352
        %v385 = vsub.f32 %v289, %v353
        %v386 = vsub.f32 %v290, %v354
        %v387 = vsub.f32 %v291, %v355
        %v388 = vsub.f32 %v292, %v356
        %v389 = vmul.f32 %v229, 2.0
        %v390 = vmul.f32 %v230, 2.0
        %v391 = vmul.f32 %v231, 2.0
        %v392 = vmul.f32 %v232, 2.0
        %v393 = vmul.f32 %v233, 2.0
        %v394 = vmul.f32 %v234, 2.0
        %v395 = vmul.f32 %v235, 2.0
        %v396 = vmul.f32 %v236, 2.0
        %v397 = vmul.f32 %v237, 2.0
        %v398 = vmul.f32 %v238, 2.0
        %v399 = vmul.f32 %v239, 2.0
        %v400 = vmul.f32 %v240, 2.0
        %v401 = vmul.f32 %v241, 2.0
        %v402 = vmul.f32 %v242, 2.0
        %v403 = vmul.f32 %v243, 2.0
        %v404 = vmul.f32 %v244, 2.0
        %v405 = vmul.f32 %v245, 2.0
        %v406 = vmul.f32 %v246, 2.0
        %v407 = vmul.f32 %v247, 2.0
        %v408 = vmul.f32 %v248, 2.0
        %v409 = vmul.f32 %v249, 2.0
        %v410 = vmul.f32 %v250, 2.0
        %v411 = vmul.f32 %v251, 2.0
        %v412 = vmul.f32 %v252, 2.0
        %v413 = vmul.f32 %v253, 2.0
        %v414 = vmul.f32 %v254, 2.0
        %v415 = vmul.f32 %v255, 2.0
        %v416 = vmul.f32 %v256, 2.0
        %v417 = vmul.f32 %v257, 2.0
        %v418 = vmul.f32 %v258, 2.0
        %v419 = vmul.f32 %v259, 2.0
        %v420 = vmul.f32 %v260, 2.0
        %v421 = vsub.f32 %v161, %v389
        %v422 = vsub.f32 %v162, %v390
        %v423 = vsub.f32 %v163, %v391
        %v424 = vsub.f32 %v164, %v392
        %v425 = vsub.f32 %v165, %v393
        %v426 = vsub.f32 %v166, %v394
        %v427 = vsub.f32 %v167, %v395
        %v428 = vsub.f32 %v168, %v396
        %v429 = vsub.f32 %v169, %v397
        %v430 = vsub.f32 %v170, %v398
        %v431 = vsub.f32 %v171, %v399
        %v432 = vsub.f32 %v172, %v400
        %v433 = vsub.f32 %v173, %v401
        %v434 = vsub.f32 %v174, %v402
        %v435 = vsub.f32 %v175, %v403
        %v436 = vsub.f32 %v176, %v404
        %v437 = vsub.f32 %v177, %v405
        %v438 = vsub.f32 %v178, %v406
        %v439 = vsub.f32 %v179, %v407
        %v440 = vsub.f32 %v180, %v408
        %v441 = vsub.f32 %v181, %v409
        %v442 = vsub.f32 %v182, %v410
        %v443 = vsub.f32 %v183, %v411
        %v444 = vsub.f32 %v184, %v412
        %v445 = vsub.f32 %v185, %v413
        %v446 = vsub.f32 %v186, %v414
        %v447 = vsub.f32 %v187, %v415
        %v448 = vsub.f32 %v188, %v416
        %v449 = vsub.f32 %v189, %v417
        %v450 = vsub.f32 %v190, %v418
        %v451 = vsub.f32 %v191, %v419
        %v452 = vsub.f32 %v192, %v420
        %v453 = vmax.f32 %v421, 0.0
        %v454 = vmax.f32 %v422, 0.0
        %v455 = vmax.f32 %v423, 0.0
        %v456 = vmax.f32 %v424, 0.0
        %v457 = vmax.f32 %v425, 0.0
        %v458 = vmax.f32 %v426, 0.0
        %v459 = vmax.f32 %v427, 0.0
        %v460 = vmax.f32 %v428, 0.0
        %v461 = vmax.f32 %v429, 0.0
        %v462 = vmax.f32 %v430, 0.0
        %v463 = vmax.f32 %v431, 0.0
        %v464 = vmax.f32 %v432, 0.0
        %v465 = vmax.f32 %v433, 0.0
        %v466 = vmax.f32 %v434, 0.0
        %v467 = vmax.f32 %v435, 0.0
        %v468 = vmax.f32 %v436, 0.0
        %v469 = vmax.f32 %v437, 0.0
        %v470 = vmax.f32 %v438, 0.0
        %v471 = vmax.f32 %v439, 0.0
        %v472 = vmax.f32 %v440, 0.0
        %v473 = vmax.f32 %v441, 0.0
        %v474 = vmax.f32 %v442, 0.0
        %v475 = vmax.f32 %v443, 0.0
        %v476 = vmax.f32 %v444, 0.0
        %v477 = vmax.f32 %v445, 0.0
        %v478 = vmax.f32 %v446, 0.0
        %v479 = vmax.f32 %v447, 0.0
        %v480 = vmax.f32 %v448, 0.0
        %v481 = vmax.f32 %v449, 0.0
        %v482 = vmax.f32 %v450, 0.0
        %v483 = vmax.f32 %v451, 0.0
        %v484 = vmax.f32 %v452, 0.0
        %v485 = vsub.f32 %v325, %v453
        %v486 = vsub.f32 %v326, %v454
        %v487 = vsub.f32 %v327, %v455
        %v488 = vsub.f32 %v328, %v456
        %v489 = vsub.f32 %v329, %v457
        %v490 = vsub.f32 %v330, %v458
        %v491 = vsub.f32 %v331, %v459
        %v492 = vsub.f32 %v332, %v460
        %v493 = vsub.f32 %v333, %v461
        %v494 = vsub.f32 %v334, %v462
        %v495 = vsub.f32 %v335, %v463
        %v496 = vsub.f32 %v336, %v464
        %v497 = vsub.f32 %v337, %v465
        %v498 = vsub.f32 %v338, %v466
        %v499 = vsub.f32 %v339, %v467
        %v500 = vsub.f32 %v340, %v468
        %v501 = vsub.f32 %v341, %v469
        %v502 = vsub.f32 %v342, %v470
        %v503 = vsub.f32 %v343, %v471
        %v504 = vsub.f32 %v344, %v472
        %v505 = vsub.f32 %v345, %v473
        %v506 = vsub.f32 %v346, %v474
        %v507 = vsub.f32 %v347, %v475
        %v508 = vsub.f32 %v348, %v476
        %v509 = vsub.f32 %v349, %v477
        %v510 = vsub.f32 %v350, %v478
        %v511 = vsub.f32 %v351, %v479
        %v512 = vsub.f32 %v352, %v480
        %v513 = vsub.f32 %v353, %v481
        %v514 = vsub.f32 %v354, %v482
        %v515 = vsub.f32 %v355, %v483
        %v516 = vsub.f32 %v356, %v484
        %v517 = vmul.f32 %v485, -1.5
        %v518 = vmul.f32 %v486, -1.5
        %v519 = vmul.f32 %v487, -1.5
        %v520 = vmul.f32 %v488, -1.5
        %v521 = vmul.f32 %v489, -1.5
        %v522 = vmul.f32 %v490, -1.5
        %v523 = vmul.f32 %v491, -1.5
        %v524 = vmul.f32 %v492, -1.5
        %v525 = vmul.f32 %v493, -1.5
        %v526 = vmul.f32 %v494, -1.5
        %v527 = vmul.f32 %v495, -1.5
        %v528 = vmul.f32 %v496, -1.5
        %v529 = vmul.f32 %v497, -1.5
        %v530 = vmul.f32 %v498, -1.5
        %v531 = vmul.f32 %v499, -1.5
        %v532 = vmul.f32 %v500, -1.5
        %v533 = vmul.f32 %v501, -1.5
        %v534 = vmul.f32 %v502, -1.5
        %v535 = vmul.f32 %v503, -1.5
        %v536 = vmul.f32 %v504, -1.5
        %v537 = vmul.f32 %v505, -1.5
        %v538 = vmul.f32 %v506, -1.5
        %v539 = vmul.f32 %v507, -1.5
        %v540 = vmul.f32 %v508, -1.5
        %v541 = vmul.f32 %v509, -1.5
        %v542 = vmul.f32 %v510, -1.5
        %v543 = vmul.f32 %v511, -1.5
        %v544 = vmul.f32 %v512, -1.5
        %v545 = vmul.f32 %v513, -1.5
        %v546 = vmul.f32 %v514, -1.5
        %v547 = vmul.f32 %v515, -1.5
        %v548 = vmul.f32 %v516, -1.5
        %v549 = vadd.f32 %v357, %v517
        %v550 = vadd.f32 %v358, %v518
        %v551 = vadd.f32 %v359, %v519
        %v552 = vadd.f32 %v360, %v520
        %v553 = vadd.f32 %v361, %v521
        %v554 = vadd.f32 %v362, %v522
        %v555 = vadd.f32 %v363, %v523
        %v556 = vadd.f32 %v364, %v524
        %v557 = vadd.f32 %v365, %v525
        %v558 = vadd.f32 %v366, %v526
        %v559 = vadd.f32 %v367, %v527
        %v560 = vadd.f32 %v368, %v528
        %v561 = vadd.f32 %v369, %v529
        %v562 = vadd.f32 %v370, %v530
        %v563 = vadd.f32 %v371, %v531
        %v564 = vadd.f32 %v372, %v532
        %v565 = vadd.f32 %v373, %v533
        %v566 = vadd.f32 %v374, %v534
        %v567 = vadd.f32 %v375, %v535
        %v568 = vadd.f32 %v376, %v536
        %v569 = vadd.f32 %v377, %v537
        %v570 = vadd.f32 %v378, %v538
        %v571 = vadd.f32 %v379, %v539
        %v572 = vadd.f32 %v380, %v540
        %v573 = vadd.f32 %v381, %v541
        %v574 = vadd.f32 %v382, %v542
        %v575 = vadd.f32 %v383, %v543
        %v576 = vadd.f32 %v384, %v544
        %v577 = vadd.f32 %v385, %v545
        %v578 = vadd.f32 %v386, %v546
        %v579 = vadd.f32 %v387, %v547
        %v580 = vadd.f32 %v388, %v548
        %v581 = vmul.f32 %v229, 3.0
        %v582 = vmul.f32 %v230, 3.0
        %v583 = vmul.f32 %v231, 3.0
        %v584 = vmul.f32 %v232, 3.0
        %v585 = vmul.f32 %v233, 3.0
        %v586 = vmul.f32 %v234, 3.0
        %v587 = vmul.f32 %v235, 3.0
        %v588 = vmul.f32 %v236, 3.0
        %v589 = vmul.f32 %v237, 3.0
        %v590 = vmul.f32 %v238, 3.0
        %v591 = vmul.f32 %v239, 3.0
        %v592 = vmul.f32 %v240, 3.0
        %v593 = vmul.f32 %v241, 3.0
        %v594 = vmul.f32 %v242, 3.0
        %v595 = vmul.f32 %v243, 3.0
        %v596 = vmul.f32 %v244, 3.0
        %v597 = vmul.f32 %v245, 3.0
        %v598 = vmul.f32 %v246, 3.0
        %v599 = vmul.f32 %v247, 3.0
        %v600 = vmul.f32 %v248, 3.0
        %v601 = vmul.f32 %v249, 3.0
        %v602 = vmul.f32 %v250, 3.0
        %v603 = vmul.f32 %v251, 3.0
        %v604 = vmul.f32 %v252, 3.0
        %v605 = vmul.f32 %v253, 3.0
        %v606 = vmul.f32 %v254, 3.0
        %v607 = vmul.f32 %v255, 3.0
        %v608 = vmul.f32 %v256, 3.0
        %v609 = vmul.f32 %v257, 3.0
        %v610 = vmul.f32 %v258, 3.0
        %v611 = vmul.f32 %v259, 3.0
        %v612 = vmul.f32 %v260, 3.0
        %v613 = vsub.f32 %v161, %v581
        %v614 = vsub.f32 %v162, %v582
        %v615 = vsub.f32 %v163, %v583
        %v616 = vsub.f32 %v164, %v584
        %v617 = vsub.f32 %v165, %v585
        %v618 = vsub.f32 %v166, %v586
        %v619 = vsub.f32 %v167, %v587
        %v620 = vsub.f32 %v168, %v588
        %v621 = vsub.f32 %v169, %v589
        %v622 = vsub.f32 %v170, %v590
        %v623 = vsub.f32 %v171, %v591
        %v624 = vsub.f32 %v172, %v592
        %v625 = vsub.f32 %v173, %v593
        %v626 = vsub.f32 %v174, %v594
        %v627 = vsub.f32 %v175, %v595
        %v628 = vsub.f32 %v176, %v596
        %v629 = vsub.f32 %v177, %v597
        %v630 = vsub.f32 %v178, %v598
        %v631 = vsub.f32 %v179, %v599
        %v632 = vsub.f32 %v180, %v600
        %v633 = vsub.f32 %v181, %v601
        %v634 = vsub.f32 %v182, %v602
        %v635 = vsub.f32 %v183, %v603
        %v636 = vsub.f32 %v184, %v604
        %v637 = vsub.f32 %v185, %v605
        %v638 = vsub.f32 %v186, %v606
        %v639 = vsub.f32 %v187, %v607
        %v640 = vsub.f32 %v188, %v608
        %v641 = vsub.f32 %v189, %v609
        %v642 = vsub.f32 %v190, %v610
        %v643 = vsub.f32 %v191, %v611
        %v644 = vsub.f32 %v192, %v612
        %v645 = vmax.f32 %v613, 0.0
        %v646 = vmax.f32 %v614, 0.0
        %v647 = vmax.f32 %v615, 0.0
        %v648 = vmax.f32 %v616, 0.0
        %v649 = vmax.f32 %v617, 0.0
        %v650 = vmax.f32 %v618, 0.0
        %v651 = vmax.f32 %v619, 0.0
        %v652 = vmax.f32 %v620, 0.0
        %v653 = vmax.f32 %v621, 0.0
        %v654 = vmax.f32 %v622, 0.0
        %v655 = vmax.f32 %v623, 0.0
        %v656 = vmax.f32 %v624, 0.0
        %v657 = vmax.f32 %v625, 0.0
        %v658 = vmax.f32 %v626, 0.0
        %v659 = vmax.f32 %v627, 0.0
        %v660 = vmax.f32 %v628, 0.0
        %v661 = vmax.f32 %v629, 0.0
        %v662 = vmax.f32 %v630, 0.0
        %v663 = vmax.f32 %v631, 0.0
        %v664 = vmax.f32 %v632, 0.0
        %v665 = vmax.f32 %v633, 0.0
        %v666 = vmax.f32 %v634, 0.0
        %v667 = vmax.f32 %v635, 0.0
        %v668 = vmax.f32 %v636, 0.0
        %v669 = vmax.f32 %v637, 0.0
        %v670 = vmax.f32 %v638, 0.0
        %v671 = vmax.f32 %v639, 0.0
        %v672 = vmax.f32 %v640, 0.0
        %v673 = vmax.f32 %v641, 0.0
        %v674 = vmax.f32 %v642, 0.0
        %v675 = vmax.f32 %v643, 0.0
        %v676 = vmax.f32 %v644, 0.0
        %v677 = vsub.f32 %v453, %v645
        %v678 = vsub.f32 %v454, %v646
        %v679 = vsub.f32 %v455, %v647
        %v680 = vsub.f32 %v456, %v648
        %v681 = vsub.f32 %v457, %v649
        %v682 = vsub.f32 %v458, %v650
        %v683 = vsub.f32 %v459, %v651
        %v684 = vsub.f32 %v460, %v652
        %v685 = vsub.f32 %v461, %v653
        %v686 = vsub.f32 %v462, %v654
        %v687 = vsub.f32 %v463, %v655
        %v688 = vsub.f32 %v464, %v656
        %v689 = vsub.f32 %v465, %v657
        %v690 = vsub.f32 %v466, %v658
        %v691 = vsub.f32 %v467, %v659
        %v692 = vsub.f32 %v468, %v660
        %v693 = vsub.f32 %v469, %v661
        %v694 = vsub.f32 %v470, %v662
        %v695 = vsub.f32 %v471, %v663
        %v696 = vsub.f32 %v472, %v664
        %v697 = vsub.f32 %v473, %v665
        %v698 = vsub.f32 %v474, %v666
        %v699 = vsub.f32 %v475, %v667
        %v700 = vsub.f32 %v476, %v668
        %v701 = vsub.f32 %v477, %v669
        %v702 = vsub.f32 %v478, %v670
        %v703 = vsub.f32 %v479, %v671
        %v704 = vsub.f32 %v480, %v672
        %v705 = vsub.f32 %v481, %v673
        %v706 = vsub.f32 %v482, %v674
        %v707 = vsub.f32 %v483, %v675
        %v708 = vsub.f32 %v484, %v676
        %v709 = vmul.f32 %v677, 1.875
        %v710 = vmul.f32 %v678, 1.875
        %v711 = vmul.f32 %v679, 1.875
        %v712 = vmul.f32 %v680, 1.875
        %v713 = vmul.f32 %v681, 1.875
        %v714 = vmul.f32 %v682, 1.875
        %v715 = vmul.f32 %v683, 1.875
        %v716 = vmul.f32 %v684, 1.875
        %v717 = vmul.f32 %v685, 1.875
        %v718 = vmul.f32 %v686, 1.875
        %v719 = vmul.f32 %v687, 1.875
        %v720 = vmul.f32 %v688, 1.875
        %v721 = vmul.f32 %v689, 1.875
        %v722 = vmul.f32 %v690, 1.875
        %v723 = vmul.f32 %v691, 1.875
        %v724 = vmul.f32 %v692, 1.875
        %v725 = vmul.f32 %v693, 1.875
        %v726 = vmul.f32 %v694, 1.875
        %v727 = vmul.f32 %v695, 1.875
        %v728 = vmul.f32 %v696, 1.875
        %v729 = vmul.f32 %v697, 1.875
        %v730 = vmul.f32 %v698, 1.875
        %v731 = vmul.f32 %v699, 1.875
        %v732 = vmul.f32 %v700, 1.875
        %v733 = vmul.f32 %v701, 1.875
        %v734 = vmul.f32 %v702, 1.875
        %v735 = vmul.f32 %v703, 1.875
        %v736 = vmul.f32 %v704, 1.875
        %v737 = vmul.f32 %v705, 1.875
        %v738 = vmul.f32 %v706, 1.875
        %v739 = vmul.f32 %v707, 1.875
        %v740 = vmul.f32 %v708, 1.875
        %v741 = vadd.f32 %v549, %v709
        %v742 = vadd.f32 %v550, %v710
        %v743 = vadd.f32 %v551, %v711
        %v744 = vadd.f32 %v552, %v712
        %v745 = vadd.f32 %v553, %v713
        %v746 = vadd.f32 %v554, %v714
        %v747 = vadd.f32 %v555, %v715
        %v748 = vadd.f32 %v556, %v716
        %v749 = vadd.f32 %v557, %v717
        %v750 = vadd.f32 %v558, %v718
        %v751 = vadd.f32 %v559, %v719
        %v752 = vadd.f32 %v560, %v720
        %v753 = vadd.f32 %v561, %v721
        %v754 = vadd.f32 %v562, %v722
        %v755 = vadd.f32 %v563, %v723
        %v756 = vadd.f32 %v564, %v724
        %v757 = vadd.f32 %v565, %v725
        %v758 = vadd.f32 %v566, %v726
        %v759 = vadd.f32 %v567, %v727
        %v760 = vadd.f32 %v568, %v728
        %v761 = vadd.f32 %v569, %v729
        %v762 = vadd.f32 %v570, %v730
        %v763 = vadd.f32 %v571, %v731
        %v764 = vadd.f32 %v572, %v732
        %v765 = vadd.f32 %v573, %v733
        %v766 = vadd.f32 %v574, %v734
        %v767 = vadd.f32 %v575, %v735
        %v768 = vadd.f32 %v576, %v736
        %v769 = vadd.f32 %v577, %v737
        %v770 = vadd.f32 %v578, %v738
        %v771 = vadd.f32 %v579, %v739
        %v772 = vadd.f32 %v580, %v740
        %v773 = vmul.f32 %v229, 4.0
        %v774 = vmul.f32 %v230, 4.0
        %v775 = vmul.f32 %v231, 4.0
        %v776 = vmul.f32 %v232, 4.0
        %v777 = vmul.f32 %v233, 4.0
        %v778 = vmul.f32 %v234, 4.0
        %v779 = vmul.f32 %v235, 4.0
        %v780 = vmul.f32 %v236, 4.0
        %v781 = vmul.f32 %v237, 4.0
        %v782 = vmul.f32 %v238, 4.0
        %v783 = vmul.f32 %v239, 4.0
        %v784 = vmul.f32 %v240, 4.0
        %v785 = vmul.f32 %v241, 4.0
        %v786 = vmul.f32 %v242, 4.0
        %v787 = vmul.f32 %v243, 4.0
        %v788 = vmul.f32 %v244, 4.0
        %v789 = vmul.f32 %v245, 4.0
        %v790 = vmul.f32 %v246, 4.0
        %v791 = vmul.f32 %v247, 4.0
        %v792 = vmul.f32 %v248, 4.0
        %v793 = vmul.f32 %v249, 4.0
        %v794 = vmul.f32 %v250, 4.0
        %v795 = vmul.f32 %v251, 4.0
        %v796 = vmul.f32 %v252, 4.0
        %v797 = vmul.f32 %v253, 4.0
        %v798 = vmul.f32 %v254, 4.0
        %v799 = vmul.f32 %v255, 4.0
        %v800 = vmul.f32 %v256, 4.0
        %v801 = vmul.f32 %v257, 4.0
        %v802 = vmul.f32 %v258, 4.0
        %v803 = vmul.f32 %v259, 4.0
        %v804 = vmul.f32 %v260, 4.0
        %v805 = vsub.f32 %v161, %v773
        %v806 = vsub.f32 %v162, %v774
        %v807 = vsub.f32 %v163, %v775
        %v808 = vsub.f32 %v164, %v776
        %v809 = vsub.f32 %v165, %v777
        %v810 = vsub.f32 %v166, %v778
        %v811 = vsub.f32 %v167, %v779
        %v812 = vsub.f32 %v168, %v780
        %v813 = vsub.f32 %v169, %v781
        %v814 = vsub.f32 %v170, %v782
        %v815 = vsub.f32 %v171, %v783
        %v816 = vsub.f32 %v172, %v784
        %v817 = vsub.f32 %v173, %v785
        %v818 = vsub.f32 %v174, %v786
        %v819 = vsub.f32 %v175, %v787
        %v820 = vsub.f32 %v176, %v788
        %v821 = vsub.f32 %v177, %v789
        %v822 = vsub.f32 %v178, %v790
        %v823 = vsub.f32 %v179, %v791
        %v824 = vsub.f32 %v180, %v792
        %v825 = vsub.f32 %v181, %v793
        %v826 = vsub.f32 %v182, %v794
        %v827 = vsub.f32 %v183, %v795
        %v828 = vsub.f32 %v184, %v796
        %v829 = vsub.f32 %v185, %v797
        %v830 = vsub.f32 %v186, %v798
        %v831 = vsub.f32 %v187, %v799
        %v832 = vsub.f32 %v188, %v800
        %v833 = vsub.f32 %v189, %v801
        %v834 = vsub.f32 %v190, %v802
        %v835 = vsub.f32 %v191, %v803
        %v836 = vsub.f32 %v192, %v804
        %v837 = vmax.f32 %v805, 0.0
        %v838 = vmax.f32 %v806, 0.0
        %v839 = vmax.f32 %v807, 0.0
        %v840 = vmax.f32 %v808, 0.0
        %v841 = vmax.f32 %v809, 0.0
        %v842 = vmax.f32 %v810, 0.0
        %v843 = vmax.f32 %v811, 0.0
        %v844 = vmax.f32 %v812, 0.0
        %v845 = vmax.f32 %v813, 0.0
        %v846 = vmax.f32 %v814, 0.0
        %v847 = vmax.f32 %v815, 0.0
        %v848 = vmax.f32 %v816, 0.0
        %v849 = vmax.f32 %v817, 0.0
        %v850 = vmax.f32 %v818, 0.0
        %v851 = vmax.f32 %v819, 0.0
        %v852 = vmax.f32 %v820, 0.0
        %v853 = vmax.f32 %v821, 0.0
        %v854 = vmax.f32 %v822, 0.0
        %v855 = vmax.f32 %v823, 0.0
        %v856 = vmax.f32 %v824, 0.0
        %v857 = vmax.f32 %v825, 0.0
        %v858 = vmax.f32 %v826, 0.0
        %v859 = vmax.f32 %v827, 0.0
        %v860 = vmax.f32 %v828, 0.0
        %v861 = vmax.f32 %v829, 0.0
        %v862 = vmax.f32 %v830, 0.0
        %v863 = vmax.f32 %v831, 0.0
        %v864 = vmax.f32 %v832, 0.0
        %v865 = vmax.f32 %v833, 0.0
        %v866 = vmax.f32 %v834, 0.0
        %v867 = vmax.f32 %v835, 0.0
        %v868 = vmax.f32 %v836, 0.0
        %v869 = vsub.f32 %v645, %v837
        %v870 = vsub.f32 %v646, %v838
        %v871 = vsub.f32 %v647, %v839
        %v872 = vsub.f32 %v648, %v840
        %v873 = vsub.f32 %v649, %v841
        %v874 = vsub.f32 %v650, %v842
        %v875 = vsub.f32 %v651, %v843
        %v876 = vsub.f32 %v652, %v844
        %v877 = vsub.f32 %v653, %v845
        %v878 = vsub.f32 %v654, %v846
        %v879 = vsub.f32 %v655, %v847
        %v880 = vsub.f32 %v656, %v848
        %v881 = vsub.f32 %v657, %v849
        %v882 = vsub.f32 %v658, %v850
        %v883 = vsub.f32 %v659, %v851
        %v884 = vsub.f32 %v660, %v852
        %v885 = vsub.f32 %v661, %v853
        %v886 = vsub.f32 %v662, %v854
        %v887 = vsub.f32 %v663, %v855
        %v888 = vsub.f32 %v664, %v856
        %v889 = vsub.f32 %v665, %v857
        %v890 = vsub.f32 %v666, %v858
        %v891 = vsub.f32 %v667, %v859
        %v892 = vsub.f32 %v668, %v860
        %v893 = vsub.f32 %v669, %v861
        %v894 = vsub.f32 %v670, %v862
        %v895 = vsub.f32 %v671, %v863
        %v896 = vsub.f32 %v672, %v864
        %v897 = vsub.f32 %v673, %v865
        %v898 = vsub.f32 %v674, %v866
        %v899 = vsub.f32 %v675, %v867
        %v900 = vsub.f32 %v676, %v868
        %v901 = vmul.f32 %v869, -2.1875
        %v902 = vmul.f32 %v870, -2.1875
        %v903 = vmul.f32 %v871, -2.1875
        %v904 = vmul.f32 %v872, -2.1875
        %v905 = vmul.f32 %v873, -2.1875
        %v906 = vmul.f32 %v874, -2.1875
        %v907 = vmul.f32 %v875, -2.1875
        %v908 = vmul.f32 %v876, -2.1875
        %v909 = vmul.f32 %v877, -2.1875
        %v910 = vmul.f32 %v878, -2.1875
        %v911 = vmul.f32 %v879, -2.1875
        %v912 = vmul.f32 %v880, -2.1875
        %v913 = vmul.f32 %v881, -2.1875
        %v914 = vmul.f32 %v882, -2.1875
        %v915 = vmul.f32 %v883, -2.1875
        %v916 = vmul.f32 %v884, -2.1875
        %v917 = vmul.f32 %v885, -2.1875
        %v918 = vmul.f32 %v886, -2.1875
        %v919 = vmul.f32 %v887, -2.1875
        %v920 = vmul.f32 %v888, -2.1875
        %v921 = vmul.f32 %v889, -2.1875
        %v922 = vmul.f32 %v890, -2.1875
        %v923 = vmul.f32 %v891, -2.1875
        %v924 = vmul.f32 %v892, -2.1875
        %v925 = vmul.f32 %v893, -2.1875
        %v926 = vmul.f32 %v894, -2.1875
        %v927 = vmul.f32 %v895, -2.1875
        %v928 = vmul.f32 %v896, -2.1875
        %v929 = vmul.f32 %v897, -2.1875
        %v930 = vmul.f32 %v898, -2.1875
        %v931 = vmul.f32 %v899, -2.1875
        %v932 = vmul.f32 %v900, -2.1875
        %v933 = vadd.f32 %v741, %v901
        %v934 = vadd.f32 %v742, %v902
        %v935 = vadd.f32 %v743, %v903
        %v936 = vadd.f32 %v744, %v904
        %v937 = vadd.f32 %v745, %v905
        %v938 = vadd.f32 %v746, %v906
        %v939 = vadd.f32 %v747, %v907
        %v940 = vadd.f32 %v748, %v908
        %v941 = vadd.f32 %v749, %v909
        %v942 = vadd.f32 %v750, %v910
        %v943 = vadd.f32 %v751, %v911
        %v944 = vadd.f32 %v752, %v912
        %v945 = vadd.f32 %v753, %v913
        %v946 = vadd.f32 %v754, %v914
        %v947 = vadd.f32 %v755, %v915
        %v948 = vadd.f32 %v756, %v916
        %v949 = vadd.f32 %v757, %v917
        %v950 = vadd.f32 %v758, %v918
        %v951 = vadd.f32 %v759, %v919
        %v952 = vadd.f32 %v760, %v920
        %v953 = vadd.f32 %v761, %v921
        %v954 = vadd.f32 %v762, %v922
        %v955 = vadd.f32 %v763, %v923
        %v956 = vadd.f32 %v764, %v924
        %v957 = vadd.f32 %v765, %v925
        %v958 = vadd.f32 %v766, %v926
        %v959 = vadd.f32 %v767, %v927
        %v960 = vadd.f32 %v768, %v928
        %v961 = vadd.f32 %v769, %v929
        %v962 = vadd.f32 %v770, %v930
        %v963 = vadd.f32 %v771, %v931
        %v964 = vadd.f32 %v772, %v932
        %v965 = vmul.f32 %v229, 5.0
        %v966 = vmul.f32 %v230, 5.0
        %v967 = vmul.f32 %v231, 5.0
        %v968 = vmul.f32 %v232, 5.0
        %v969 = vmul.f32 %v233, 5.0
        %v970 = vmul.f32 %v234, 5.0
        %v971 = vmul.f32 %v235, 5.0
        %v972 = vmul.f32 %v236, 5.0
        %v973 = vmul.f32 %v237, 5.0
        %v974 = vmul.f32 %v238, 5.0
        %v975 = vmul.f32 %v239, 5.0
        %v976 = vmul.f32 %v240, 5.0
        %v977 = vmul.f32 %v241, 5.0
        %v978 = vmul.f32 %v242, 5.0
        %v979 = vmul.f32 %v243, 5.0
        %v980 = vmul.f32 %v244, 5.0
        %v981 = vmul.f32 %v245, 5.0
        %v982 = vmul.f32 %v246, 5.0
        %v983 = vmul.f32 %v247, 5.0
        %v984 = vmul.f32 %v248, 5.0
        %v985 = vmul.f32 %v249, 5.0
        %v986 = vmul.f32 %v250, 5.0
        %v987 = vmul.f32 %v251, 5.0
        %v988 = vmul.f32 %v252, 5.0
        %v989 = vmul.f32 %v253, 5.0
        %v990 = vmul.f32 %v254, 5.0
        %v991 = vmul.f32 %v255, 5.0
        %v992 = vmul.f32 %v256, 5.0
        %v993 = vmul.f32 %v257, 5.0
        %v994 = vmul.f32 %v258, 5.0
        %v995 = vmul.f32 %v259, 5.0
        %v996 = vmul.f32 %v260, 5.0
        %v997 = vsub.f32 %v161, %v965
        %v998 = vsub.f32 %v162, %v966
        %v999 = vsub.f32 %v163, %v967
        %v1000 = vsub.f32 %v164, %v968
        %v1001 = vsub.f32 %v165, %v969
        %v1002 = vsub.f32 %v166, %v970
        %v1003 = vsub.f32 %v167, %v971
        %v1004 = vsub.f32 %v168, %v972
        %v1005 = vsub.f32 %v169, %v973
        %v1006 = vsub.f32 %v170, %v974
        %v1007 = vsub.f32 %v171, %v975
        %v1008 = vsub.f32 %v172, %v976
        %v1009 = vsub.f32 %v173, %v977
        %v1010 = vsub.f32 %v174, %v978
        %v1011 = vsub.f32 %v175, %v979
        %v1012 = vsub.f32 %v176, %v980
        %v1013 = vsub.f32 %v177, %v981
        %v1014 = vsub.f32 %v178, %v982
        %v1015 = vsub.f32 %v179, %v983
        %v1016 = vsub.f32 %v180, %v984
        %v1017 = vsub.f32 %v181, %v985
        %v1018 = vsub.f32 %v182, %v986
        %v1019 = vsub.f32 %v183, %v987
        %v1020 = vsub.f32 %v184, %v988
        %v1021 = vsub.f32 %v185, %v989
        %v1022 = vsub.f32 %v186, %v990
        %v1023 = vsub.f32 %v187, %v991
        %v1024 = vsub.f32 %v188, %v992
        %v1025 = vsub.f32 %v189, %v993
        %v1026 = vsub.f32 %v190, %v994
        %v1027 = vsub.f32 %v191, %v995
        %v1028 = vsub.f32 %v192, %v996
        %v1029 = vmax.f32 %v997, 0.0
        %v1030 = vmax.f32 %v998, 0.0
        %v1031 = vmax.f32 %v999, 0.0
        %v1032 = vmax.f32 %v1000, 0.0
        %v1033 = vmax.f32 %v1001, 0.0
        %v1034 = vmax.f32 %v1002, 0.0
        %v1035 = vmax.f32 %v1003, 0.0
        %v1036 = vmax.f32 %v1004, 0.0
        %v1037 = vmax.f32 %v1005, 0.0
        %v1038 = vmax.f32 %v1006, 0.0
        %v1039 = vmax.f32 %v1007, 0.0
        %v1040 = vmax.f32 %v1008, 0.0
        %v1041 = vmax.f32 %v1009, 0.0
        %v1042 = vmax.f32 %v1010, 0.0
        %v1043 = vmax.f32 %v1011, 0.0
        %v1044 = vmax.f32 %v1012, 0.0
        %v1045 = vmax.f32 %v1013, 0.0
        %v1046 = vmax.f32 %v1014, 0.0
        %v1047 = vmax.f32 %v1015, 0.0
        %v1048 = vmax.f32 %v1016, 0.0
        %v1049 = vmax.f32 %v1017, 0.0
        %v1050 = vmax.f32 %v1018, 0.0
        %v1051 = vmax.f32 %v1019, 0.0
        %v1052 = vmax.f32 %v1020, 0.0
        %v1053 = vmax.f32 %v1021, 0.0
        %v1054 = vmax.f32 %v1022, 0.0
        %v1055 = vmax.f32 %v1023, 0.0
        %v1056 = vmax.f32 %v1024, 0.0
        %v1057 = vmax.f32 %v1025, 0.0
        %v1058 = vmax.f32 %v1026, 0.0
        %v1059 = vmax.f32 %v1027, 0.0
        %v1060 = vmax.f32 %v1028, 0.0
        %v1061 = vsub.f32 %v837, %v1029
        %v1062 = vsub.f32 %v838, %v1030
        %v1063 = vsub.f32 %v839, %v1031
        %v1064 = vsub.f32 %v840, %v1032
        %v1065 = vsub.f32 %v841, %v1033
        %v1066 = vsub.f32 %v842, %v1034
        %v1067 = vsub.f32 %v843, %v1035
        %v1068 = vsub.f32 %v844, %v1036
        %v1069 = vsub.f32 %v845, %v1037
        %v1070 = vsub.f32 %v846, %v1038
        %v1071 = vsub.f32 %v847, %v1039
        %v1072 = vsub.f32 %v848, %v1040
        %v1073 = vsub.f32 %v849, %v1041
        %v1074 = vsub.f32 %v850, %v1042
        %v1075 = vsub.f32 %v851, %v1043
        %v1076 = vsub.f32 %v852, %v1044
        %v1077 = vsub.f32 %v853, %v1045
        %v1078 = vsub.f32 %v854, %v1046
        %v1079 = vsub.f32 %v855, %v1047
        %v1080 = vsub.f32 %v856, %v1048
        %v1081 = vsub.f32 %v857, %v1049
        %v1082 = vsub.f32 %v858, %v1050
        %v1083 = vsub.f32 %v859, %v1051
        %v1084 = vsub.f32 %v860, %v1052
        %v1085 = vsub.f32 %v861, %v1053
        %v1086 = vsub.f32 %v862, %v1054
        %v1087 = vsub.f32 %v863, %v1055
        %v1088 = vsub.f32 %v864, %v1056
        %v1089 = vsub.f32 %v865, %v1057
        %v1090 = vsub.f32 %v866, %v1058
        %v1091 = vsub.f32 %v867, %v1059
        %v1092 = vsub.f32 %v868, %v1060
        %v1093 = vmul.f32 %v1061, 2.4609375
        %v1094 = vmul.f32 %v1062, 2.4609375
        %v1095 = vmul.f32 %v1063, 2.4609375
        %v1096 = vmul.f32 %v1064, 2.4609375
        %v1097 = vmul.f32 %v1065, 2.4609375
        %v1098 = vmul.f32 %v1066, 2.4609375
        %v1099 = vmul.f32 %v1067, 2.4609375
        %v1100 = vmul.f32 %v1068, 2.4609375
        %v1101 = vmul.f32 %v1069, 2.4609375
        %v1102 = vmul.f32 %v1070, 2.4609375
        %v1103 = vmul.f32 %v1071, 2.4609375
        %v1104 = vmul.f32 %v1072, 2.4609375
        %v1105 = vmul.f32 %v1073, 2.4609375
        %v1106 = vmul.f32 %v1074, 2.4609375
        %v1107 = vmul.f32 %v1075, 2.4609375
        %v1108 = vmul.f32 %v1076, 2.4609375
        %v1109 = vmul.f32 %v1077, 2.4609375
        %v1110 = vmul.f32 %v1078, 2.4609375
        %v1111 = vmul.f32 %v1079, 2.4609375
        %v1112 = vmul.f32 %v1080, 2.4609375
        %v1113 = vmul.f32 %v1081, 2.4609375
        %v1114 = vmul.f32 %v1082, 2.4609375
        %v1115 = vmul.f32 %v1083, 2.4609375
        %v1116 = vmul.f32 %v1084, 2.4609375
        %v1117 = vmul.f32 %v1085, 2.4609375
        %v1118 = vmul.f32 %v1086, 2.4609375
        %v1119 = vmul.f32 %v1087, 2.4609375
        %v1120 = vmul.f32 %v1088, 2.4609375
        %v1121 = vmul.f32 %v1089, 2.4609375
        %v1122 = vmul.f32 %v1090, 2.4609375
        %v1123 = vmul.f32 %v1091, 2.4609375
        %v1124 = vmul.f32 %v1092, 2.4609375
        %v1125 = vadd.f32 %v933, %v1093
        %v1126 = vadd.f32 %v934, %v1094
        %v1127 = vadd.f32 %v935, %v1095
        %v1128 = vadd.f32 %v936, %v1096
        %v1129 = vadd.f32 %v937, %v1097
        %v1130 = vadd.f32 %v938, %v1098
        %v1131 = vadd.f32 %v939, %v1099
        %v1132 = vadd.f32 %v940, %v1100
        %v1133 = vadd.f32 %v941, %v1101
        %v1134 = vadd.f32 %v942, %v1102
        %v1135 = vadd.f32 %v943, %v1103
        %v1136 = vadd.f32 %v944, %v1104
        %v1137 = vadd.f32 %v945, %v1105
        %v1138 = vadd.f32 %v946, %v1106
        %v1139 = vadd.f32 %v947, %v1107
        %v1140 = vadd.f32 %v948, %v1108
        %v1141 = vadd.f32 %v949, %v1109
        %v1142 = vadd.f32 %v950, %v1110
        %v1143 = vadd.f32 %v951, %v1111
        %v1144 = vadd.f32 %v952, %v1112
        %v1145 = vadd.f32 %v953, %v1113
        %v1146 = vadd.f32 %v954, %v1114
        %v1147 = vadd.f32 %v955, %v1115
        %v1148 = vadd.f32 %v956, %v1116
        %v1149 = vadd.f32 %v957, %v1117
        %v1150 = vadd.f32 %v958, %v1118
        %v1151 = vadd.f32 %v959, %v1119
        %v1152 = vadd.f32 %v960, %v1120
        %v1153 = vadd.f32 %v961, %v1121
        %v1154 = vadd.f32 %v962, %v1122
        %v1155 = vadd.f32 %v963, %v1123
        %v1156 = vadd.f32 %v964, %v1124
        %v1157 = vmul.f32 %v229, 6.0
        %v1158 = vmul.f32 %v230, 6.0
        %v1159 = vmul.f32 %v231, 6.0
        %v1160 = vmul.f32 %v232, 6.0
        %v1161 = vmul.f32 %v233, 6.0
        %v1162 = vmul.f32 %v234, 6.0
        %v1163 = vmul.f32 %v235, 6.0
        %v1164 = vmul.f32 %v236, 6.0
        %v1165 = vmul.f32 %v237, 6.0
        %v1166 = vmul.f32 %v238, 6.0
        %v1167 = vmul.f32 %v239, 6.0
        %v1168 = vmul.f32 %v240, 6.0
        %v1169 = vmul.f32 %v241, 6.0
        %v1170 = vmul.f32 %v242, 6.0
        %v1171 = vmul.f32 %v243, 6.0
        %v1172 = vmul.f32 %v244, 6.0
        %v1173 = vmul.f32 %v245, 6.0
        %v1174 = vmul.f32 %v246, 6.0
        %v1175 = vmul.f32 %v247, 6.0
        %v1176 = vmul.f32 %v248, 6.0
        %v1177 = vmul.f32 %v249, 6.0
        %v1178 = vmul.f32 %v250, 6.0
        %v1179 = vmul.f32 %v251, 6.0
        %v1180 = vmul.f32 %v252, 6.0
        %v1181 = vmul.f32 %v253, 6.0
        %v1182 = vmul.f32 %v254, 6.0
        %v1183 = vmul.f32 %v255, 6.0
        %v1184 = vmul.f32 %v256, 6.0
        %v1185 = vmul.f32 %v257, 6.0
        %v1186 = vmul.f32 %v258, 6.0
        %v1187 = vmul.f32 %v259, 6.0
        %v1188 = vmul.f32 %v260, 6.0
        %v1189 = vsub.f32 %v161, %v1157
        %v1190 = vsub.f32 %v162, %v1158
        %v1191 = vsub.f32 %v163, %v1159
        %v1192 = vsub.f32 %v164, %v1160
        %v1193 = vsub.f32 %v165, %v1161
        %v1194 = vsub.f32 %v166, %v1162
        %v1195 = vsub.f32 %v167, %v1163
        %v1196 = vsub.f32 %v168, %v1164
        %v1197 = vsub.f32 %v169, %v1165
        %v1198 = vsub.f32 %v170, %v1166
        %v1199 = vsub.f32 %v171, %v1167
        %v1200 = vsub.f32 %v172, %v1168
        %v1201 = vsub.f32 %v173, %v1169
        %v1202 = vsub.f32 %v174, %v1170
        %v1203 = vsub.f32 %v175, %v1171
        %v1204 = vsub.f32 %v176, %v1172
        %v1205 = vsub.f32 %v177, %v1173
        %v1206 = vsub.f32 %v178, %v1174
        %v1207 = vsub.f32 %v179, %v1175
        %v1208 = vsub.f32 %v180, %v1176
        %v1209 = vsub.f32 %v181, %v1177
        %v1210 = vsub.f32 %v182, %v1178
        %v1211 = vsub.f32 %v183, %v1179
        %v1212 = vsub.f32 %v184, %v1180
        %v1213 = vsub.f32 %v185, %v1181
        %v1214 = vsub.f32 %v186, %v1182
        %v1215 = vsub.f32 %v187, %v1183
        %v1216 = vsub.f32 %v188, %v1184
        %v1217 = vsub.f32 %v189, %v1185
        %v1218 = vsub.f32 %v190, %v1186
        %v1219 = vsub.f32 %v191, %v1187
        %v1220 = vsub.f32 %v192, %v1188
        %v1221 = vmax.f32 %v1189, 0.0
        %v1222 = vmax.f32 %v1190, 0.0
        %v1223 = vmax.f32 %v1191, 0.0
        %v1224 = vmax.f32 %v1192, 0.0
        %v1225 = vmax.f32 %v1193, 0.0
        %v1226 = vmax.f32 %v1194, 0.0
        %v1227 = vmax.f32 %v1195, 0.0
        %v1228 = vmax.f32 %v1196, 0.0
        %v1229 = vmax.f32 %v1197, 0.0
        %v1230 = vmax.f32 %v1198, 0.0
        %v1231 = vmax.f32 %v1199, 0.0
        %v1232 = vmax.f32 %v1200, 0.0
        %v1233 = vmax.f32 %v1201, 0.0
        %v1234 = vmax.f32 %v1202, 0.0
        %v1235 = vmax.f32 %v1203, 0.0
        %v1236 = vmax.f32 %v1204, 0.0
        %v1237 = vmax.f32 %v1205, 0.0
        %v1238 = vmax.f32 %v1206, 0.0
        %v1239 = vmax.f32 %v1207, 0.0
        %v1240 = vmax.f32 %v1208, 0.0
        %v1241 = vmax.f32 %v1209, 0.0
        %v1242 = vmax.f32 %v1210, 0.0
        %v1243 = vmax.f32 %v1211, 0.0
        %v1244 = vmax.f32 %v1212, 0.0
        %v1245 = vmax.f32 %v1213, 0.0
        %v1246 = vmax.f32 %v1214, 0.0
        %v1247 = vmax.f32 %v1215, 0.0
        %v1248 = vmax.f32 %v1216, 0.0
        %v1249 = vmax.f32 %v1217, 0.0
        %v1250 = vmax.f32 %v1218, 0.0
        %v1251 = vmax.f32 %v1219, 0.0
        %v1252 = vmax.f32 %v1220, 0.0
        %v1253 = vsub.f32 %v1029, %v1221
        %v1254 = vsub.f32 %v1030, %v1222
        %v1255 = vsub.f32 %v1031, %v1223
        %v1256 = vsub.f32 %v1032, %v1224
        %v1257 = vsub.f32 %v1033, %v1225
        %v1258 = vsub.f32 %v1034, %v1226
        %v1259 = vsub.f32 %v1035, %v1227
        %v1260 = vsub.f32 %v1036, %v1228
        %v1261 = vsub.f32 %v1037, %v1229
        %v1262 = vsub.f32 %v1038, %v1230
        %v1263 = vsub.f32 %v1039, %v1231
        %v1264 = vsub.f32 %v1040, %v1232
        %v1265 = vsub.f32 %v1041, %v1233
        %v1266 = vsub.f32 %v1042, %v1234
        %v1267 = vsub.f32 %v1043, %v1235
        %v1268 = vsub.f32 %v1044, %v1236
        %v1269 = vsub.f32 %v1045, %v1237
        %v1270 = vsub.f32 %v1046, %v1238
        %v1271 = vsub.f32 %v1047, %v1239
        %v1272 = vsub.f32 %v1048, %v1240
        %v1273 = vsub.f32 %v1049, %v1241
        %v1274 = vsub.f32 %v1050, %v1242
        %v1275 = vsub.f32 %v1051, %v1243
        %v1276 = vsub.f32 %v1052, %v1244
        %v1277 = vsub.f32 %v1053, %v1245
        %v1278 = vsub.f32 %v1054, %v1246
        %v1279 = vsub.f32 %v1055, %v1247
        %v1280 = vsub.f32 %v1056, %v1248
        %v1281 = vsub.f32 %v1057, %v1249
        %v1282 = vsub.f32 %v1058, %v1250
        %v1283 = vsub.f32 %v1059, %v1251
        %v1284 = vsub.f32 %v1060, %v1252
        %v1285 = vmul.f32 %v1253, -2.7070313
        %v1286 = vmul.f32 %v1254, -2.7070313
        %v1287 = vmul.f32 %v1255, -2.7070313
        %v1288 = vmul.f32 %v1256, -2.7070313
        %v1289 = vmul.f32 %v1257, -2.7070313
        %v1290 = vmul.f32 %v1258, -2.7070313
        %v1291 = vmul.f32 %v1259, -2.7070313
        %v1292 = vmul.f32 %v1260, -2.7070313
        %v1293 = vmul.f32 %v1261, -2.7070313
        %v1294 = vmul.f32 %v1262, -2.7070313
        %v1295 = vmul.f32 %v1263, -2.7070313
        %v1296 = vmul.f32 %v1264, -2.7070313
        %v1297 = vmul.f32 %v1265, -2.7070313
        %v1298 = vmul.f32 %v1266, -2.7070313
        %v1299 = vmul.f32 %v1267, -2.7070313
        %v1300 = vmul.f32 %v1268, -2.7070313
        %v1301 = vmul.f32 %v1269, -2.7070313
        %v1302 = vmul.f32 %v1270, -2.7070313
        %v1303 = vmul.f32 %v1271, -2.7070313
        %v1304 = vmul.f32 %v1272, -2.7070313
        %v1305 = vmul.f32 %v1273, -2.7070313
        %v1306 = vmul.f32 %v1274, -2.7070313
        %v1307 = vmul.f32 %v1275, -2.7070313
        %v1308 = vmul.f32 %v1276, -2.7070313
        %v1309 = vmul.f32 %v1277, -2.7070313
        %v1310 = vmul.f32 %v1278, -2.7070313
        %v1311 = vmul.f32 %v1279, -2.7070313
        %v1312 = vmul.f32 %v1280, -2.7070313
        %v1313 = vmul.f32 %v1281, -2.7070313
        %v1314 = vmul.f32 %v1282, -2.7070313
        %v1315 = vmul.f32 %v1283, -2.7070313
        %v1316 = vmul.f32 %v1284, -2.7070313
        %v1317 = vadd.f32 %v1125, %v1285
        %v1318 = vadd.f32 %v1126, %v1286
        %v1319 = vadd.f32 %v1127, %v1287
        %v1320 = vadd.f32 %v1128, %v1288
        %v1321 = vadd.f32 %v1129, %v1289
        %v1322 = vadd.f32 %v1130, %v1290
        %v1323 = vadd.f32 %v1131, %v1291
        %v1324 = vadd.f32 %v1132, %v1292
        %v1325 = vadd.f32 %v1133, %v1293
        %v1326 = vadd.f32 %v1134, %v1294
        %v1327 = vadd.f32 %v1135, %v1295
        %v1328 = vadd.f32 %v1136, %v1296
        %v1329 = vadd.f32 %v1137, %v1297
        %v1330 = vadd.f32 %v1138, %v1298
        %v1331 = vadd.f32 %v1139, %v1299
        %v1332 = vadd.f32 %v1140, %v1300
        %v1333 = vadd.f32 %v1141, %v1301
        %v1334 = vadd.f32 %v1142, %v1302
        %v1335 = vadd.f32 %v1143, %v1303
        %v1336 = vadd.f32 %v1144, %v1304
        %v1337 = vadd.f32 %v1145, %v1305
        %v1338 = vadd.f32 %v1146, %v1306
        %v1339 = vadd.f32 %v1147, %v1307
        %v1340 = vadd.f32 %v1148, %v1308
        %v1341 = vadd.f32 %v1149, %v1309
        %v1342 = vadd.f32 %v1150, %v1310
        %v1343 = vadd.f32 %v1151, %v1311
        %v1344 = vadd.f32 %v1152, %v1312
        %v1345 = vadd.f32 %v1153, %v1313
        %v1346 = vadd.f32 %v1154, %v1314
        %v1347 = vadd.f32 %v1155, %v1315
        %v1348 = vadd.f32 %v1156, %v1316
        %v1349 = vmul.f32 %v229, 7.0
        %v1350 = vmul.f32 %v230, 7.0
        %v1351 = vmul.f32 %v231, 7.0
        %v1352 = vmul.f32 %v232, 7.0
        %v1353 = vmul.f32 %v233, 7.0
        %v1354 = vmul.f32 %v234, 7.0
        %v1355 = vmul.f32 %v235, 7.0
        %v1356 = vmul.f32 %v236, 7.0
        %v1357 = vmul.f32 %v237, 7.0
        %v1358 = vmul.f32 %v238, 7.0
        %v1359 = vmul.f32 %v239, 7.0
        %v1360 = vmul.f32 %v240, 7.0
        %v1361 = vmul.f32 %v241, 7.0
        %v1362 = vmul.f32 %v242, 7.0
        %v1363 = vmul.f32 %v243, 7.0
        %v1364 = vmul.f32 %v244, 7.0
        %v1365 = vmul.f32 %v245, 7.0
        %v1366 = vmul.f32 %v246, 7.0
        %v1367 = vmul.f32 %v247, 7.0
        %v1368 = vmul.f32 %v248, 7.0
        %v1369 = vmul.f32 %v249, 7.0
        %v1370 = vmul.f32 %v250, 7.0
        %v1371 = vmul.f32 %v251, 7.0
        %v1372 = vmul.f32 %v252, 7.0
        %v1373 = vmul.f32 %v253, 7.0
        %v1374 = vmul.f32 %v254, 7.0
        %v1375 = vmul.f32 %v255, 7.0
        %v1376 = vmul.f32 %v256, 7.0
        %v1377 = vmul.f32 %v257, 7.0
        %v1378 = vmul.f32 %v258, 7.0
        %v1379 = vmul.f32 %v259, 7.0
        %v1380 = vmul.f32 %v260, 7.0
        %v1381 = vsub.f32 %v161, %v1349
        %v1382 = vsub.f32 %v162, %v1350
        %v1383 = vsub.f32 %v163, %v1351
        %v1384 = vsub.f32 %v164, %v1352
        %v1385 = vsub.f32 %v165, %v1353
        %v1386 = vsub.f32 %v166, %v1354
        %v1387 = vsub.f32 %v167, %v1355
        %v1388 = vsub.f32 %v168, %v1356
        %v1389 = vsub.f32 %v169, %v1357
        %v1390 = vsub.f32 %v170, %v1358
        %v1391 = vsub.f32 %v171, %v1359
        %v1392 = vsub.f32 %v172, %v1360
        %v1393 = vsub.f32 %v173, %v1361
        %v1394 = vsub.f32 %v174, %v1362
        %v1395 = vsub.f32 %v175, %v1363
        %v1396 = vsub.f32 %v176, %v1364
        %v1397 = vsub.f32 %v177, %v1365
        %v1398 = vsub.f32 %v178, %v1366
        %v1399 = vsub.f32 %v179, %v1367
        %v1400 = vsub.f32 %v180, %v1368
        %v1401 = vsub.f32 %v181, %v1369
        %v1402 = vsub.f32 %v182, %v1370
        %v1403 = vsub.f32 %v183, %v1371
        %v1404 = vsub.f32 %v184, %v1372
        %v1405 = vsub.f32 %v185, %v1373
        %v1406 = vsub.f32 %v186, %v1374
        %v1407 = vsub.f32 %v187, %v1375
        %v1408 = vsub.f32 %v188, %v1376
        %v1409 = vsub.f32 %v189, %v1377
        %v1410 = vsub.f32 %v190, %v1378
        %v1411 = vsub.f32 %v191, %v1379
        %v1412 = vsub.f32 %v192, %v1380
        %v1413 = vmax.f32 %v1381, 0.0
        %v1414 = vmax.f32 %v1382, 0.0
        %v1415 = vmax.f32 %v1383, 0.0
        %v1416 = vmax.f32 %v1384, 0.0
        %v1417 = vmax.f32 %v1385, 0.0
        %v1418 = vmax.f32 %v1386, 0.0
        %v1419 = vmax.f32 %v1387, 0.0
        %v1420 = vmax.f32 %v1388, 0.0
        %v1421 = vmax.f32 %v1389, 0.0
        %v1422 = vmax.f32 %v1390, 0.0
        %v1423 = vmax.f32 %v1391, 0.0
        %v1424 = vmax.f32 %v1392, 0.0
        %v1425 = vmax.f32 %v1393, 0.0
        %v1426 = vmax.f32 %v1394, 0.0
        %v1427 = vmax.f32 %v1395, 0.0
        %v1428 = vmax.f32 %v1396, 0.0
        %v1429 = vmax.f32 %v1397, 0.0
        %v1430 = vmax.f32 %v1398, 0.0
        %v1431 = vmax.f32 %v1399, 0.0
        %v1432 = vmax.f32 %v1400, 0.0
        %v1433 = vmax.f32 %v1401, 0.0
        %v1434 = vmax.f32 %v1402, 0.0
        %v1435 = vmax.f32 %v1403, 0.0
        %v1436 = vmax.f32 %v1404, 0.0
        %v1437 = vmax.f32 %v1405, 0.0
        %v1438 = vmax.f32 %v1406, 0.0
        %v1439 = vmax.f32 %v1407, 0.0
        %v1440 = vmax.f32 %v1408, 0.0
        %v1441 = vmax.f32 %v1409, 0.0
        %v1442 = vmax.f32 %v1410, 0.0
        %v1443 = vmax.f32 %v1411, 0.0
        %v1444 = vmax.f32 %v1412, 0.0
        %v1445 = vsub.f32 %v1221, %v1413
        %v1446 = vsub.f32 %v1222, %v1414
        %v1447 = vsub.f32 %v1223, %v1415
        %v1448 = vsub.f32 %v1224, %v1416
        %v1449 = vsub.f32 %v1225, %v1417
        %v1450 = vsub.f32 %v1226, %v1418
        %v1451 = vsub.f32 %v1227, %v1419
        %v1452 = vsub.f32 %v1228, %v1420
        %v1453 = vsub.f32 %v1229, %v1421
        %v1454 = vsub.f32 %v1230, %v1422
        %v1455 = vsub.f32 %v1231, %v1423
        %v1456 = vsub.f32 %v1232, %v1424
        %v1457 = vsub.f32 %v1233, %v1425
        %v1458 = vsub.f32 %v1234, %v1426
        %v1459 = vsub.f32 %v1235, %v1427
        %v1460 = vsub.f32 %v1236, %v1428
        %v1461 = vsub.f32 %v1237, %v1429
        %v1462 = vsub.f32 %v1238, %v1430
        %v1463 = vsub.f32 %v1239, %v1431
        %v1464 = vsub.f32 %v1240, %v1432
        %v1465 = vsub.f32 %v1241, %v1433
        %v1466 = vsub.f32 %v1242, %v1434
        %v1467 = vsub.f32 %v1243, %v1435
        %v1468 = vsub.f32 %v1244, %v1436
        %v1469 = vsub.f32 %v1245, %v1437
        %v1470 = vsub.f32 %v1246, %v1438
        %v1471 = vsub.f32 %v1247, %v1439
        %v1472 = vsub.f32 %v1248, %v1440
        %v1473 = vsub.f32 %v1249, %v1441
        %v1474 = vsub.f32 %v1250, %v1442
        %v1475 = vsub.f32 %v1251, %v1443
        %v1476 = vsub.f32 %v1252, %v1444
        %v1477 = vmul.f32 %v1445, 2.9326172
        %v1478 = vmul.f32 %v1446, 2.9326172
        %v1479 = vmul.f32 %v1447, 2.9326172
        %v1480 = vmul.f32 %v1448, 2.9326172
        %v1481 = vmul.f32 %v1449, 2.9326172
        %v1482 = vmul.f32 %v1450, 2.9326172
        %v1483 = vmul.f32 %v1451, 2.9326172
        %v1484 = vmul.f32 %v1452, 2.9326172
        %v1485 = vmul.f32 %v1453, 2.9326172
        %v1486 = vmul.f32 %v1454, 2.9326172
        %v1487 = vmul.f32 %v1455, 2.9326172
        %v1488 = vmul.f32 %v1456, 2.9326172
        %v1489 = vmul.f32 %v1457, 2.9326172
        %v1490 = vmul.f32 %v1458, 2.9326172
        %v1491 = vmul.f32 %v1459, 2.9326172
        %v1492 = vmul.f32 %v1460, 2.9326172
        %v1493 = vmul.f32 %v1461, 2.9326172
        %v1494 = vmul.f32 %v1462, 2.9326172
        %v1495 = vmul.f32 %v1463, 2.9326172
        %v1496 = vmul.f32 %v1464, 2.9326172
        %v1497 = vmul.f32 %v1465, 2.9326172
        %v1498 = vmul.f32 %v1466, 2.9326172
        %v1499 = vmul.f32 %v1467, 2.9326172
        %v1500 = vmul.f32 %v1468, 2.9326172
        %v1501 = vmul.f32 %v1469, 2.9326172
        %v1502 = vmul.f32 %v1470, 2.9326172
        %v1503 = vmul.f32 %v1471, 2.9326172
        %v1504 = vmul.f32 %v1472, 2.9326172
        %v1505 = vmul.f32 %v1473, 2.9326172
        %v1506 = vmul.f32 %v1474, 2.9326172
        %v1507 = vmul.f32 %v1475, 2.9326172
        %v1508 = vmul.f32 %v1476, 2.9326172
        %v1509 = vadd.f32 %v1317, %v1477
        %v1510 = vadd.f32 %v1318, %v1478
        %v1511 = vadd.f32 %v1319, %v1479
        %v1512 = vadd.f32 %v1320, %v1480
        %v1513 = vadd.f32 %v1321, %v1481
        %v1514 = vadd.f32 %v1322, %v1482
        %v1515 = vadd.f32 %v1323, %v1483
        %v1516 = vadd.f32 %v1324, %v1484
        %v1517 = vadd.f32 %v1325, %v1485
        %v1518 = vadd.f32 %v1326, %v1486
        %v1519 = vadd.f32 %v1327, %v1487
        %v1520 = vadd.f32 %v1328, %v1488
        %v1521 = vadd.f32 %v1329, %v1489
        %v1522 = vadd.f32 %v1330, %v1490
        %v1523 = vadd.f32 %v1331, %v1491
        %v1524 = vadd.f32 %v1332, %v1492
        %v1525 = vadd.f32 %v1333, %v1493
        %v1526 = vadd.f32 %v1334, %v1494
        %v1527 = vadd.f32 %v1335, %v1495
        %v1528 = vadd.f32 %v1336, %v1496
        %v1529 = vadd.f32 %v1337, %v1497
        %v1530 = vadd.f32 %v1338, %v1498
        %v1531 = vadd.f32 %v1339, %v1499
        %v1532 = vadd.f32 %v1340, %v1500
        %v1533 = vadd.f32 %v1341, %v1501
        %v1534 = vadd.f32 %v1342, %v1502
        %v1535 = vadd.f32 %v1343, %v1503
        %v1536 = vadd.f32 %v1344, %v1504
        %v1537 = vadd.f32 %v1345, %v1505
        %v1538 = vadd.f32 %v1346, %v1506
        %v1539 = vadd.f32 %v1347, %v1507
        %v1540 = vadd.f32 %v1348, %v1508
        %v1541 = vmul.f32 %v229, 8.0
        %v1542 = vmul.f32 %v230, 8.0
        %v1543 = vmul.f32 %v231, 8.0
        %v1544 = vmul.f32 %v232, 8.0
        %v1545 = vmul.f32 %v233, 8.0
        %v1546 = vmul.f32 %v234, 8.0
        %v1547 = vmul.f32 %v235, 8.0
        %v1548 = vmul.f32 %v236, 8.0
        %v1549 = vmul.f32 %v237, 8.0
        %v1550 = vmul.f32 %v238, 8.0
        %v1551 = vmul.f32 %v239, 8.0
        %v1552 = vmul.f32 %v240, 8.0
        %v1553 = vmul.f32 %v241, 8.0
        %v1554 = vmul.f32 %v242, 8.0
        %v1555 = vmul.f32 %v243, 8.0
        %v1556 = vmul.f32 %v244, 8.0
        %v1557 = vmul.f32 %v245, 8.0
        %v1558 = vmul.f32 %v246, 8.0
        %v1559 = vmul.f32 %v247, 8.0
        %v1560 = vmul.f32 %v248, 8.0
        %v1561 = vmul.f32 %v249, 8.0
        %v1562 = vmul.f32 %v250, 8.0
        %v1563 = vmul.f32 %v251, 8.0
        %v1564 = vmul.f32 %v252, 8.0
        %v1565 = vmul.f32 %v253, 8.0
        %v1566 = vmul.f32 %v254, 8.0
        %v1567 = vmul.f32 %v255, 8.0
        %v1568 = vmul.f32 %v256, 8.0
        %v1569 = vmul.f32 %v257, 8.0
        %v1570 = vmul.f32 %v258, 8.0
        %v1571 = vmul.f32 %v259, 8.0
        %v1572 = vmul.f32 %v260, 8.0
        %v1573 = vsub.f32 %v161, %v1541
        %v1574 = vsub.f32 %v162, %v1542
        %v1575 = vsub.f32 %v163, %v1543
        %v1576 = vsub.f32 %v164, %v1544
        %v1577 = vsub.f32 %v165, %v1545
        %v1578 = vsub.f32 %v166, %v1546
        %v1579 = vsub.f32 %v167, %v1547
        %v1580 = vsub.f32 %v168, %v1548
        %v1581 = vsub.f32 %v169, %v1549
        %v1582 = vsub.f32 %v170, %v1550
        %v1583 = vsub.f32 %v171, %v1551
        %v1584 = vsub.f32 %v172, %v1552
        %v1585 = vsub.f32 %v173, %v1553
        %v1586 = vsub.f32 %v174, %v1554
        %v1587 = vsub.f32 %v175, %v1555
        %v1588 = vsub.f32 %v176, %v1556
        %v1589 = vsub.f32 %v177, %v1557
        %v1590 = vsub.f32 %v178, %v1558
        %v1591 = vsub.f32 %v179, %v1559
        %v1592 = vsub.f32 %v180, %v1560
        %v1593 = vsub.f32 %v181, %v1561
        %v1594 = vsub.f32 %v182, %v1562
        %v1595 = vsub.f32 %v183, %v1563
        %v1596 = vsub.f32 %v184, %v1564
        %v1597 = vsub.f32 %v185, %v1565
        %v1598 = vsub.f32 %v186, %v1566
        %v1599 = vsub.f32 %v187, %v1567
        %v1600 = vsub.f32 %v188, %v1568
        %v1601 = vsub.f32 %v189, %v1569
        %v1602 = vsub.f32 %v190, %v1570
        %v1603 = vsub.f32 %v191, %v1571
        %v1604 = vsub.f32 %v192, %v1572
        %v1605 = vmax.f32 %v1573, 0.0
        %v1606 = vmax.f32 %v1574, 0.0
        %v1607 = vmax.f32 %v1575, 0.0
        %v1608 = vmax.f32 %v1576, 0.0
        %v1609 = vmax.f32 %v1577, 0.0
        %v1610 = vmax.f32 %v1578, 0.0
        %v1611 = vmax.f32 %v1579, 0.0
        %v1612 = vmax.f32 %v1580, 0.0
        %v1613 = vmax.f32 %v1581, 0.0
        %v1614 = vmax.f32 %v1582, 0.0
        %v1615 = vmax.f32 %v1583, 0.0
        %v1616 = vmax.f32 %v1584, 0.0
        %v1617 = vmax.f32 %v1585, 0.0
        %v1618 = vmax.f32 %v1586, 0.0
        %v1619 = vmax.f32 %v1587, 0.0
        %v1620 = vmax.f32 %v1588, 0.0
        %v1621 = vmax.f32 %v1589, 0.0
        %v1622 = vmax.f32 %v1590, 0.0
        %v1623 = vmax.f32 %v1591, 0.0
        %v1624 = vmax.f32 %v1592, 0.0
        %v1625 = vmax.f32 %v1593, 0.0
        %v1626 = vmax.f32 %v1594, 0.0
        %v1627 = vmax.f32 %v1595, 0.0
        %v1628 = vmax.f32 %v1596, 0.0
        %v1629 = vmax.f32 %v1597, 0.0
        %v1630 = vmax.f32 %v1598, 0.0
        %v1631 = vmax.f32 %v1599, 0.0
        %v1632 = vmax.f32 %v1600, 0.0
        %v1633 = vmax.f32 %v1601, 0.0
        %v1634 = vmax.f32 %v1602, 0.0
        %v1635 = vmax.f32 %v1603, 0.0
        %v1636 = vmax.f32 %v1604, 0.0
        %v1637 = vsub.f32 %v1413, %v1605
        %v1638 = vsub.f32 %v1414, %v1606
        %v1639 = vsub.f32 %v1415, %v1607
        %v1640 = vsub.f32 %v1416, %v1608
        %v1641 = vsub.f32 %v1417, %v1609
        %v1642 = vsub.f32 %v1418, %v1610
        %v1643 = vsub.f32 %v1419, %v1611
        %v1644 = vsub.f32 %v1420, %v1612
        %v1645 = vsub.f32 %v1421, %v1613
        %v1646 = vsub.f32 %v1422, %v1614
        %v1647 = vsub.f32 %v1423, %v1615
        %v1648 = vsub.f32 %v1424, %v1616
        %v1649 = vsub.f32 %v1425, %v1617
        %v1650 = vsub.f32 %v1426, %v1618
        %v1651 = vsub.f32 %v1427, %v1619
        %v1652 = vsub.f32 %v1428, %v1620
        %v1653 = vsub.f32 %v1429, %v1621
        %v1654 = vsub.f32 %v1430, %v1622
        %v1655 = vsub.f32 %v1431, %v1623
        %v1656 = vsub.f32 %v1432, %v1624
        %v1657 = vsub.f32 %v1433, %v1625
        %v1658 = vsub.f32 %v1434, %v1626
        %v1659 = vsub.f32 %v1435, %v1627
        %v1660 = vsub.f32 %v1436, %v1628
        %v1661 = vsub.f32 %v1437, %v1629
        %v1662 = vsub.f32 %v1438, %v1630
        %v1663 = vsub.f32 %v1439, %v1631
        %v1664 = vsub.f32 %v1440, %v1632
        %v1665 = vsub.f32 %v1441, %v1633
        %v1666 = vsub.f32 %v1442, %v1634
        %v1667 = vsub.f32 %v1443, %v1635
        %v1668 = vsub.f32 %v1444, %v1636
        %v1669 = vmul.f32 %v1637, -3.1420898
        %v1670 = vmul.f32 %v1638, -3.1420898
        %v1671 = vmul.f32 %v1639, -3.1420898
        %v1672 = vmul.f32 %v1640, -3.1420898
        %v1673 = vmul.f32 %v1641, -3.1420898
        %v1674 = vmul.f32 %v1642, -3.1420898
        %v1675 = vmul.f32 %v1643, -3.1420898
        %v1676 = vmul.f32 %v1644, -3.1420898
        %v1677 = vmul.f32 %v1645, -3.1420898
        %v1678 = vmul.f32 %v1646, -3.1420898
        %v1679 = vmul.f32 %v1647, -3.1420898
        %v1680 = vmul.f32 %v1648, -3.1420898
        %v1681 = vmul.f32 %v1649, -3.1420898
        %v1682 = vmul.f32 %v1650, -3.1420898
        %v1683 = vmul.f32 %v1651, -3.1420898
        %v1684 = vmul.f32 %v1652, -3.1420898
        %v1685 = vmul.f32 %v1653, -3.1420898
        %v1686 = vmul.f32 %v1654, -3.1420898
        %v1687 = vmul.f32 %v1655, -3.1420898
        %v1688 = vmul.f32 %v1656, -3.1420898
        %v1689 = vmul.f32 %v1657, -3.1420898
        %v1690 = vmul.f32 %v1658, -3.1420898
        %v1691 = vmul.f32 %v1659, -3.1420898
        %v1692 = vmul.f32 %v1660, -3.1420898
        %v1693 = vmul.f32 %v1661, -3.1420898
        %v1694 = vmul.f32 %v1662, -3.1420898
        %v1695 = vmul.f32 %v1663, -3.1420898
        %v1696 = vmul.f32 %v1664, -3.1420898
        %v1697 = vmul.f32 %v1665, -3.1420898
        %v1698 = vmul.f32 %v1666, -3.1420898
        %v1699 = vmul.f32 %v1667, -3.1420898
        %v1700 = vmul.f32 %v1668, -3.1420898
        %v1701 = vadd.f32 %v1509, %v1669
        %v1702 = vadd.f32 %v1510, %v1670
        %v1703 = vadd.f32 %v1511, %v1671
        %v1704 = vadd.f32 %v1512, %v1672
        %v1705 = vadd.f32 %v1513, %v1673
        %v1706 = vadd.f32 %v1514, %v1674
        %v1707 = vadd.f32 %v1515, %v1675
        %v1708 = vadd.f32 %v1516, %v1676
        %v1709 = vadd.f32 %v1517, %v1677
        %v1710 = vadd.f32 %v1518, %v1678
        %v1711 = vadd.f32 %v1519, %v1679
        %v1712 = vadd.f32 %v1520, %v1680
        %v1713 = vadd.f32 %v1521, %v1681
        %v1714 = vadd.f32 %v1522, %v1682
        %v1715 = vadd.f32 %v1523, %v1683
        %v1716 = vadd.f32 %v1524, %v1684
        %v1717 = vadd.f32 %v1525, %v1685
        %v1718 = vadd.f32 %v1526, %v1686
        %v1719 = vadd.f32 %v1527, %v1687
        %v1720 = vadd.f32 %v1528, %v1688
        %v1721 = vadd.f32 %v1529, %v1689
        %v1722 = vadd.f32 %v1530, %v1690
        %v1723 = vadd.f32 %v1531, %v1691
        %v1724 = vadd.f32 %v1532, %v1692
        %v1725 = vadd.f32 %v1533, %v1693
        %v1726 = vadd.f32 %v1534, %v1694
        %v1727 = vadd.f32 %v1535, %v1695
        %v1728 = vadd.f32 %v1536, %v1696
        %v1729 = vadd.f32 %v1537, %v1697
        %v1730 = vadd.f32 %v1538, %v1698
        %v1731 = vadd.f32 %v1539, %v1699
        %v1732 = vadd.f32 %v1540, %v1700
        %v1733 = vmul.f32 %v229, 9.0
        %v1734 = vmul.f32 %v230, 9.0
        %v1735 = vmul.f32 %v231, 9.0
        %v1736 = vmul.f32 %v232, 9.0
        %v1737 = vmul.f32 %v233, 9.0
        %v1738 = vmul.f32 %v234, 9.0
        %v1739 = vmul.f32 %v235, 9.0
        %v1740 = vmul.f32 %v236, 9.0
        %v1741 = vmul.f32 %v237, 9.0
        %v1742 = vmul.f32 %v238, 9.0
        %v1743 = vmul.f32 %v239, 9.0
        %v1744 = vmul.f32 %v240, 9.0
        %v1745 = vmul.f32 %v241, 9.0
        %v1746 = vmul.f32 %v242, 9.0
        %v1747 = vmul.f32 %v243, 9.0
        %v1748 = vmul.f32 %v244, 9.0
        %v1749 = vmul.f32 %v245, 9.0
        %v1750 = vmul.f32 %v246, 9.0
        %v1751 = vmul.f32 %v247, 9.0
        %v1752 = vmul.f32 %v248, 9.0
        %v1753 = vmul.f32 %v249, 9.0
        %v1754 = vmul.f32 %v250, 9.0
        %v1755 = vmul.f32 %v251, 9.0
        %v1756 = vmul.f32 %v252, 9.0
        %v1757 = vmul.f32 %v253, 9.0
        %v1758 = vmul.f32 %v254, 9.0
        %v1759 = vmul.f32 %v255, 9.0
        %v1760 = vmul.f32 %v256, 9.0
        %v1761 = vmul.f32 %v257, 9.0
        %v1762 = vmul.f32 %v258, 9.0
        %v1763 = vmul.f32 %v259, 9.0
        %v1764 = vmul.f32 %v260, 9.0
        %v1765 = vsub.f32 %v161, %v1733
        %v1766 = vsub.f32 %v162, %v1734
        %v1767 = vsub.f32 %v163, %v1735
        %v1768 = vsub.f32 %v164, %v1736
        %v1769 = vsub.f32 %v165, %v1737
        %v1770 = vsub.f32 %v166, %v1738
        %v1771 = vsub.f32 %v167, %v1739
        %v1772 = vsub.f32 %v168, %v1740
        %v1773 = vsub.f32 %v169, %v1741
        %v1774 = vsub.f32 %v170, %v1742
        %v1775 = vsub.f32 %v171, %v1743
        %v1776 = vsub.f32 %v172, %v1744
        %v1777 = vsub.f32 %v173, %v1745
        %v1778 = vsub.f32 %v174, %v1746
        %v1779 = vsub.f32 %v175, %v1747
        %v1780 = vsub.f32 %v176, %v1748
        %v1781 = vsub.f32 %v177, %v1749
        %v1782 = vsub.f32 %v178, %v1750
        %v1783 = vsub.f32 %v179, %v1751
        %v1784 = vsub.f32 %v180, %v1752
        %v1785 = vsub.f32 %v181, %v1753
        %v1786 = vsub.f32 %v182, %v1754
        %v1787 = vsub.f32 %v183, %v1755
        %v1788 = vsub.f32 %v184, %v1756
        %v1789 = vsub.f32 %v185, %v1757
        %v1790 = vsub.f32 %v186, %v1758
        %v1791 = vsub.f32 %v187, %v1759
        %v1792 = vsub.f32 %v188, %v1760
        %v1793 = vsub.f32 %v189, %v1761
        %v1794 = vsub.f32 %v190, %v1762
        %v1795 = vsub.f32 %v191, %v1763
        %v1796 = vsub.f32 %v192, %v1764
        %v1797 = vmax.f32 %v1765, 0.0
        %v1798 = vmax.f32 %v1766, 0.0
        %v1799 = vmax.f32 %v1767, 0.0
        %v1800 = vmax.f32 %v1768, 0.0
        %v1801 = vmax.f32 %v1769, 0.0
        %v1802 = vmax.f32 %v1770, 0.0
        %v1803 = vmax.f32 %v1771, 0.0
        %v1804 = vmax.f32 %v1772, 0.0
        %v1805 = vmax.f32 %v1773, 0.0
        %v1806 = vmax.f32 %v1774, 0.0
        %v1807 = vmax.f32 %v1775, 0.0
        %v1808 = vmax.f32 %v1776, 0.0
        %v1809 = vmax.f32 %v1777, 0.0
        %v1810 = vmax.f32 %v1778, 0.0
        %v1811 = vmax.f32 %v1779, 0.0
        %v1812 = vmax.f32 %v1780, 0.0
        %v1813 = vmax.f32 %v1781, 0.0
        %v1814 = vmax.f32 %v1782, 0.0
        %v1815 = vmax.f32 %v1783, 0.0
        %v1816 = vmax.f32 %v1784, 0.0
        %v1817 = vmax.f32 %v1785, 0.0
        %v1818 = vmax.f32 %v1786, 0.0
        %v1819 = vmax.f32 %v1787, 0.0
        %v1820 = vmax.f32 %v1788, 0.0
        %v1821 = vmax.f32 %v1789, 0.0
        %v1822 = vmax.f32 %v1790, 0.0
        %v1823 = vmax.f32 %v1791, 0.0
        %v1824 = vmax.f32 %v1792, 0.0
        %v1825 = vmax.f32 %v1793, 0.0
        %v1826 = vmax.f32 %v1794, 0.0
        %v1827 = vmax.f32 %v1795, 0.0
        %v1828 = vmax.f32 %v1796, 0.0
        %v1829 = vsub.f32 %v1605, %v1797
        %v1830 = vsub.f32 %v1606, %v1798
        %v1831 = vsub.f32 %v1607, %v1799
        %v1832 = vsub.f32 %v1608, %v1800
        %v1833 = vsub.f32 %v1609, %v1801
        %v1834 = vsub.f32 %v1610, %v1802
        %v1835 = vsub.f32 %v1611, %v1803
        %v1836 = vsub.f32 %v1612, %v1804
        %v1837 = vsub.f32 %v1613, %v1805
        %v1838 = vsub.f32 %v1614, %v1806
        %v1839 = vsub.f32 %v1615, %v1807
        %v1840 = vsub.f32 %v1616, %v1808
        %v1841 = vsub.f32 %v1617, %v1809
        %v1842 = vsub.f32 %v1618, %v1810
        %v1843 = vsub.f32 %v1619, %v1811
        %v1844 = vsub.f32 %v1620, %v1812
        %v1845 = vsub.f32 %v1621, %v1813
        %v1846 = vsub.f32 %v1622, %v1814
        %v1847 = vsub.f32 %v1623, %v1815
        %v1848 = vsub.f32 %v1624, %v1816
        %v1849 = vsub.f32 %v1625, %v1817
        %v1850 = vsub.f32 %v1626, %v1818
        %v1851 = vsub.f32 %v1627, %v1819
        %v1852 = vsub.f32 %v1628, %v1820
        %v1853 = vsub.f32 %v1629, %v1821
        %v1854 = vsub.f32 %v1630, %v1822
        %v1855 = vsub.f32 %v1631, %v1823
        %v1856 = vsub.f32 %v1632, %v1824
        %v1857 = vsub.f32 %v1633, %v1825
        %v1858 = vsub.f32 %v1634, %v1826
        %v1859 = vsub.f32 %v1635, %v1827
        %v1860 = vsub.f32 %v1636, %v1828
        %v1861 = vmul.f32 %v1829, 3.3384705
        %v1862 = vmul.f32 %v1830, 3.3384705
        %v1863 = vmul.f32 %v1831, 3.3384705
        %v1864 = vmul.f32 %v1832, 3.3384705
        %v1865 = vmul.f32 %v1833, 3.3384705
        %v1866 = vmul.f32 %v1834, 3.3384705
        %v1867 = vmul.f32 %v1835, 3.3384705
        %v1868 = vmul.f32 %v1836, 3.3384705
        %v1869 = vmul.f32 %v1837, 3.3384705
        %v1870 = vmul.f32 %v1838, 3.3384705
        %v1871 = vmul.f32 %v1839, 3.3384705
        %v1872 = vmul.f32 %v1840, 3.3384705
        %v1873 = vmul.f32 %v1841, 3.3384705
        %v1874 = vmul.f32 %v1842, 3.3384705
        %v1875 = vmul.f32 %v1843, 3.3384705
        %v1876 = vmul.f32 %v1844, 3.3384705
        %v1877 = vmul.f32 %v1845, 3.3384705
        %v1878 = vmul.f32 %v1846, 3.3384705
        %v1879 = vmul.f32 %v1847, 3.3384705
        %v1880 = vmul.f32 %v1848, 3.3384705
        %v1881 = vmul.f32 %v1849, 3.3384705
        %v1882 = vmul.f32 %v1850, 3.3384705
        %v1883 = vmul.f32 %v1851, 3.3384705
        %v1884 = vmul.f32 %v1852, 3.3384705
        %v1885 = vmul.f32 %v1853, 3.3384705
        %v1886 = vmul.f32 %v1854, 3.3384705
        %v1887 = vmul.f32 %v1855, 3.3384705
        %v1888 = vmul.f32 %v1856, 3.3384705
        %v1889 = vmul.f32 %v1857, 3.3384705
        %v1890 = vmul.f32 %v1858, 3.3384705
        %v1891 = vmul.f32 %v1859, 3.3384705
        %v1892 = vmul.f32 %v1860, 3.3384705
        %v1893 = vadd.f32 %v1701, %v1861
        %v1894 = vadd.f32 %v1702, %v1862
        %v1895 = vadd.f32 %v1703, %v1863
        %v1896 = vadd.f32 %v1704, %v1864
        %v1897 = vadd.f32 %v1705, %v1865
        %v1898 = vadd.f32 %v1706, %v1866
        %v1899 = vadd.f32 %v1707, %v1867
        %v1900 = vadd.f32 %v1708, %v1868
        %v1901 = vadd.f32 %v1709, %v1869
        %v1902 = vadd.f32 %v1710, %v1870
        %v1903 = vadd.f32 %v1711, %v1871
        %v1904 = vadd.f32 %v1712, %v1872
        %v1905 = vadd.f32 %v1713, %v1873
        %v1906 = vadd.f32 %v1714, %v1874
        %v1907 = vadd.f32 %v1715, %v1875
        %v1908 = vadd.f32 %v1716, %v1876
        %v1909 = vadd.f32 %v1717, %v1877
        %v1910 = vadd.f32 %v1718, %v1878
        %v1911 = vadd.f32 %v1719, %v1879
        %v1912 = vadd.f32 %v1720, %v1880
        %v1913 = vadd.f32 %v1721, %v1881
        %v1914 = vadd.f32 %v1722, %v1882
        %v1915 = vadd.f32 %v1723, %v1883
        %v1916 = vadd.f32 %v1724, %v1884
        %v1917 = vadd.f32 %v1725, %v1885
        %v1918 = vadd.f32 %v1726, %v1886
        %v1919 = vadd.f32 %v1727, %v1887
        %v1920 = vadd.f32 %v1728, %v1888
        %v1921 = vadd.f32 %v1729, %v1889
        %v1922 = vadd.f32 %v1730, %v1890
        %v1923 = vadd.f32 %v1731, %v1891
        %v1924 = vadd.f32 %v1732, %v1892
        %v1925 = vmul.f32 %v229, 10.0
        %v1926 = vmul.f32 %v230, 10.0
        %v1927 = vmul.f32 %v231, 10.0
        %v1928 = vmul.f32 %v232, 10.0
        %v1929 = vmul.f32 %v233, 10.0
        %v1930 = vmul.f32 %v234, 10.0
        %v1931 = vmul.f32 %v235, 10.0
        %v1932 = vmul.f32 %v236, 10.0
        %v1933 = vmul.f32 %v237, 10.0
        %v1934 = vmul.f32 %v238, 10.0
        %v1935 = vmul.f32 %v239, 10.0
        %v1936 = vmul.f32 %v240, 10.0
        %v1937 = vmul.f32 %v241, 10.0
        %v1938 = vmul.f32 %v242, 10.0
        %v1939 = vmul.f32 %v243, 10.0
        %v1940 = vmul.f32 %v244, 10.0
        %v1941 = vmul.f32 %v245, 10.0
        %v1942 = vmul.f32 %v246, 10.0
        %v1943 = vmul.f32 %v247, 10.0
        %v1944 = vmul.f32 %v248, 10.0
        %v1945 = vmul.f32 %v249, 10.0
        %v1946 = vmul.f32 %v250, 10.0
        %v1947 = vmul.f32 %v251, 10.0
        %v1948 = vmul.f32 %v252, 10.0
        %v1949 = vmul.f32 %v253, 10.0
        %v1950 = vmul.f32 %v254, 10.0
        %v1951 = vmul.f32 %v255, 10.0
        %v1952 = vmul.f32 %v256, 10.0
        %v1953 = vmul.f32 %v257, 10.0
        %v1954 = vmul.f32 %v258, 10.0
        %v1955 = vmul.f32 %v259, 10.0
        %v1956 = vmul.f32 %v260, 10.0
        %v1957 = vsub.f32 %v161, %v1925
        %v1958 = vsub.f32 %v162, %v1926
        %v1959 = vsub.f32 %v163, %v1927
        %v1960 = vsub.f32 %v164, %v1928
        %v1961 = vsub.f32 %v165, %v1929
        %v1962 = vsub.f32 %v166, %v1930
        %v1963 = vsub.f32 %v167, %v1931
        %v1964 = vsub.f32 %v168, %v1932
        %v1965 = vsub.f32 %v169, %v1933
        %v1966 = vsub.f32 %v170, %v1934
        %v1967 = vsub.f32 %v171, %v1935
        %v1968 = vsub.f32 %v172, %v1936
        %v1969 = vsub.f32 %v173, %v1937
        %v1970 = vsub.f32 %v174, %v1938
        %v1971 = vsub.f32 %v175, %v1939
        %v1972 = vsub.f32 %v176, %v1940
        %v1973 = vsub.f32 %v177, %v1941
        %v1974 = vsub.f32 %v178, %v1942
        %v1975 = vsub.f32 %v179, %v1943
        %v1976 = vsub.f32 %v180, %v1944
        %v1977 = vsub.f32 %v181, %v1945
        %v1978 = vsub.f32 %v182, %v1946
        %v1979 = vsub.f32 %v183, %v1947
        %v1980 = vsub.f32 %v184, %v1948
        %v1981 = vsub.f32 %v185, %v1949
        %v1982 = vsub.f32 %v186, %v1950
        %v1983 = vsub.f32 %v187, %v1951
        %v1984 = vsub.f32 %v188, %v1952
        %v1985 = vsub.f32 %v189, %v1953
        %v1986 = vsub.f32 %v190, %v1954
        %v1987 = vsub.f32 %v191, %v1955
        %v1988 = vsub.f32 %v192, %v1956
        %v1989 = vmax.f32 %v1957, 0.0
        %v1990 = vmax.f32 %v1958, 0.0
        %v1991 = vmax.f32 %v1959, 0.0
        %v1992 = vmax.f32 %v1960, 0.0
        %v1993 = vmax.f32 %v1961, 0.0
        %v1994 = vmax.f32 %v1962, 0.0
        %v1995 = vmax.f32 %v1963, 0.0
        %v1996 = vmax.f32 %v1964, 0.0
        %v1997 = vmax.f32 %v1965, 0.0
        %v1998 = vmax.f32 %v1966, 0.0
        %v1999 = vmax.f32 %v1967, 0.0
        %v2000 = vmax.f32 %v1968, 0.0
        %v2001 = vmax.f32 %v1969, 0.0
        %v2002 = vmax.f32 %v1970, 0.0
        %v2003 = vmax.f32 %v1971, 0.0
        %v2004 = vmax.f32 %v1972, 0.0
        %v2005 = vmax.f32 %v1973, 0.0
        %v2006 = vmax.f32 %v1974, 0.0
        %v2007 = vmax.f32 %v1975, 0.0
        %v2008 = vmax.f32 %v1976, 0.0
        %v2009 = vmax.f32 %v1977, 0.0
        %v2010 = vmax.f32 %v1978, 0.0
        %v2011 = vmax.f32 %v1979, 0.0
        %v2012 = vmax.f32 %v1980, 0.0
        %v2013 = vmax.f32 %v1981, 0.0
        %v2014 = vmax.f32 %v1982, 0.0
        %v2015 = vmax.f32 %v1983, 0.0
        %v2016 = vmax.f32 %v1984, 0.0
        %v2017 = vmax.f32 %v1985, 0.0
        %v2018 = vmax.f32 %v1986, 0.0
        %v2019 = vmax.f32 %v1987, 0.0
        %v2020 = vmax.f32 %v1988, 0.0
        %v2021 = vsub.f32 %v1797, %v1989
        %v2022 = vsub.f32 %v1798, %v1990
        %v2023 = vsub.f32 %v1799, %v1991
        %v2024 = vsub.f32 %v1800, %v1992
        %v2025 = vsub.f32 %v1801, %v1993
        %v2026 = vsub.f32 %v1802, %v1994
        %v2027 = vsub.f32 %v1803, %v1995
        %v2028 = vsub.f32 %v1804, %v1996
        %v2029 = vsub.f32 %v1805, %v1997
        %v2030 = vsub.f32 %v1806, %v1998
        %v2031 = vsub.f32 %v1807, %v1999
        %v2032 = vsub.f32 %v1808, %v2000
        %v2033 = vsub.f32 %v1809, %v2001
        %v2034 = vsub.f32 %v1810, %v2002
        %v2035 = vsub.f32 %v1811, %v2003
        %v2036 = vsub.f32 %v1812, %v2004
        %v2037 = vsub.f32 %v1813, %v2005
        %v2038 = vsub.f32 %v1814, %v2006
        %v2039 = vsub.f32 %v1815, %v2007
        %v2040 = vsub.f32 %v1816, %v2008
        %v2041 = vsub.f32 %v1817, %v2009
        %v2042 = vsub.f32 %v1818, %v2010
        %v2043 = vsub.f32 %v1819, %v2011
        %v2044 = vsub.f32 %v1820, %v2012
        %v2045 = vsub.f32 %v1821, %v2013
        %v2046 = vsub.f32 %v1822, %v2014
        %v2047 = vsub.f32 %v1823, %v2015
        %v2048 = vsub.f32 %v1824, %v2016
        %v2049 = vsub.f32 %v1825, %v2017
        %v2050 = vsub.f32 %v1826, %v2018
        %v2051 = vsub.f32 %v1827, %v2019
        %v2052 = vsub.f32 %v1828, %v2020
        %v2053 = vmul.f32 %v2021, -3.523941
        %v2054 = vmul.f32 %v2022, -3.523941
        %v2055 = vmul.f32 %v2023, -3.523941
        %v2056 = vmul.f32 %v2024, -3.523941
        %v2057 = vmul.f32 %v2025, -3.523941
        %v2058 = vmul.f32 %v2026, -3.523941
        %v2059 = vmul.f32 %v2027, -3.523941
        %v2060 = vmul.f32 %v2028, -3.523941
        %v2061 = vmul.f32 %v2029, -3.523941
        %v2062 = vmul.f32 %v2030, -3.523941
        %v2063 = vmul.f32 %v2031, -3.523941
        %v2064 = vmul.f32 %v2032, -3.523941
        %v2065 = vmul.f32 %v2033, -3.523941
        %v2066 = vmul.f32 %v2034, -3.523941
        %v2067 = vmul.f32 %v2035, -3.523941
        %v2068 = vmul.f32 %v2036, -3.523941
        %v2069 = vmul.f32 %v2037, -3.523941
        %v2070 = vmul.f32 %v2038, -3.523941
        %v2071 = vmul.f32 %v2039, -3.523941
        %v2072 = vmul.f32 %v2040, -3.523941
        %v2073 = vmul.f32 %v2041, -3.523941
        %v2074 = vmul.f32 %v2042, -3.523941
        %v2075 = vmul.f32 %v2043, -3.523941
        %v2076 = vmul.f32 %v2044, -3.523941
        %v2077 = vmul.f32 %v2045, -3.523941
        %v2078 = vmul.f32 %v2046, -3.523941
        %v2079 = vmul.f32 %v2047, -3.523941
        %v2080 = vmul.f32 %v2048, -3.523941
        %v2081 = vmul.f32 %v2049, -3.523941
        %v2082 = vmul.f32 %v2050, -3.523941
        %v2083 = vmul.f32 %v2051, -3.523941
        %v2084 = vmul.f32 %v2052, -3.523941
        %v2085 = vadd.f32 %v1893, %v2053
        %v2086 = vadd.f32 %v1894, %v2054
        %v2087 = vadd.f32 %v1895, %v2055
        %v2088 = vadd.f32 %v1896, %v2056
        %v2089 = vadd.f32 %v1897, %v2057
        %v2090 = vadd.f32 %v1898, %v2058
        %v2091 = vadd.f32 %v1899, %v2059
        %v2092 = vadd.f32 %v1900, %v2060
        %v2093 = vadd.f32 %v1901, %v2061
        %v2094 = vadd.f32 %v1902, %v2062
        %v2095 = vadd.f32 %v1903, %v2063
        %v2096 = vadd.f32 %v1904, %v2064
        %v2097 = vadd.f32 %v1905, %v2065
        %v2098 = vadd.f32 %v1906, %v2066
        %v2099 = vadd.f32 %v1907, %v2067
        %v2100 = vadd.f32 %v1908, %v2068
        %v2101 = vadd.f32 %v1909, %v2069
        %v2102 = vadd.f32 %v1910, %v2070
        %v2103 = vadd.f32 %v1911, %v2071
        %v2104 = vadd.f32 %v1912, %v2072
        %v2105 = vadd.f32 %v1913, %v2073
        %v2106 = vadd.f32 %v1914, %v2074
        %v2107 = vadd.f32 %v1915, %v2075
        %v2108 = vadd.f32 %v1916, %v2076
        %v2109 = vadd.f32 %v1917, %v2077
        %v2110 = vadd.f32 %v1918, %v2078
        %v2111 = vadd.f32 %v1919, %v2079
        %v2112 = vadd.f32 %v1920, %v2080
        %v2113 = vadd.f32 %v1921, %v2081
        %v2114 = vadd.f32 %v1922, %v2082
        %v2115 = vadd.f32 %v1923, %v2083
        %v2116 = vadd.f32 %v1924, %v2084
        %v2117 = vmul.f32 %v229, 11.0
        %v2118 = vmul.f32 %v230, 11.0
        %v2119 = vmul.f32 %v231, 11.0
        %v2120 = vmul.f32 %v232, 11.0
        %v2121 = vmul.f32 %v233, 11.0
        %v2122 = vmul.f32 %v234, 11.0
        %v2123 = vmul.f32 %v235, 11.0
        %v2124 = vmul.f32 %v236, 11.0
        %v2125 = vmul.f32 %v237, 11.0
        %v2126 = vmul.f32 %v238, 11.0
        %v2127 = vmul.f32 %v239, 11.0
        %v2128 = vmul.f32 %v240, 11.0
        %v2129 = vmul.f32 %v241, 11.0
        %v2130 = vmul.f32 %v242, 11.0
        %v2131 = vmul.f32 %v243, 11.0
        %v2132 = vmul.f32 %v244, 11.0
        %v2133 = vmul.f32 %v245, 11.0
        %v2134 = vmul.f32 %v246, 11.0
        %v2135 = vmul.f32 %v247, 11.0
        %v2136 = vmul.f32 %v248, 11.0
        %v2137 = vmul.f32 %v249, 11.0
        %v2138 = vmul.f32 %v250, 11.0
        %v2139 = vmul.f32 %v251, 11.0
        %v2140 = vmul.f32 %v252, 11.0
        %v2141 = vmul.f32 %v253, 11.0
        %v2142 = vmul.f32 %v254, 11.0
        %v2143 = vmul.f32 %v255, 11.0
        %v2144 = vmul.f32 %v256, 11.0
        %v2145 = vmul.f32 %v257, 11.0
        %v2146 = vmul.f32 %v258, 11.0
        %v2147 = vmul.f32 %v259, 11.0
        %v2148 = vmul.f32 %v260, 11.0
        %v2149 = vsub.f32 %v161, %v2117
        %v2150 = vsub.f32 %v162, %v2118
        %v2151 = vsub.f32 %v163, %v2119
        %v2152 = vsub.f32 %v164, %v2120
        %v2153 = vsub.f32 %v165, %v2121
        %v2154 = vsub.f32 %v166, %v2122
        %v2155 = vsub.f32 %v167, %v2123
        %v2156 = vsub.f32 %v168, %v2124
        %v2157 = vsub.f32 %v169, %v2125
        %v2158 = vsub.f32 %v170, %v2126
        %v2159 = vsub.f32 %v171, %v2127
        %v2160 = vsub.f32 %v172, %v2128
        %v2161 = vsub.f32 %v173, %v2129
        %v2162 = vsub.f32 %v174, %v2130
        %v2163 = vsub.f32 %v175, %v2131
        %v2164 = vsub.f32 %v176, %v2132
        %v2165 = vsub.f32 %v177, %v2133
        %v2166 = vsub.f32 %v178, %v2134
        %v2167 = vsub.f32 %v179, %v2135
        %v2168 = vsub.f32 %v180, %v2136
        %v2169 = vsub.f32 %v181, %v2137
        %v2170 = vsub.f32 %v182, %v2138
        %v2171 = vsub.f32 %v183, %v2139
        %v2172 = vsub.f32 %v184, %v2140
        %v2173 = vsub.f32 %v185, %v2141
        %v2174 = vsub.f32 %v186, %v2142
        %v2175 = vsub.f32 %v187, %v2143
        %v2176 = vsub.f32 %v188, %v2144
        %v2177 = vsub.f32 %v189, %v2145
        %v2178 = vsub.f32 %v190, %v2146
        %v2179 = vsub.f32 %v191, %v2147
        %v2180 = vsub.f32 %v192, %v2148
        %v2181 = vmax.f32 %v2149, 0.0
        %v2182 = vmax.f32 %v2150, 0.0
        %v2183 = vmax.f32 %v2151, 0.0
        %v2184 = vmax.f32 %v2152, 0.0
        %v2185 = vmax.f32 %v2153, 0.0
        %v2186 = vmax.f32 %v2154, 0.0
        %v2187 = vmax.f32 %v2155, 0.0
        %v2188 = vmax.f32 %v2156, 0.0
        %v2189 = vmax.f32 %v2157, 0.0
        %v2190 = vmax.f32 %v2158, 0.0
        %v2191 = vmax.f32 %v2159, 0.0
        %v2192 = vmax.f32 %v2160, 0.0
        %v2193 = vmax.f32 %v2161, 0.0
        %v2194 = vmax.f32 %v2162, 0.0
        %v2195 = vmax.f32 %v2163, 0.0
        %v2196 = vmax.f32 %v2164, 0.0
        %v2197 = vmax.f32 %v2165, 0.0
        %v2198 = vmax.f32 %v2166, 0.0
        %v2199 = vmax.f32 %v2167, 0.0
        %v2200 = vmax.f32 %v2168, 0.0
        %v2201 = vmax.f32 %v2169, 0.0
        %v2202 = vmax.f32 %v2170, 0.0
        %v2203 = vmax.f32 %v2171, 0.0
        %v2204 = vmax.f32 %v2172, 0.0
        %v2205 = vmax.f32 %v2173, 0.0
        %v2206 = vmax.f32 %v2174, 0.0
        %v2207 = vmax.f32 %v2175, 0.0
        %v2208 = vmax.f32 %v2176, 0.0
        %v2209 = vmax.f32 %v2177, 0.0
        %v2210 = vmax.f32 %v2178, 0.0
        %v2211 = vmax.f32 %v2179, 0.0
        %v2212 = vmax.f32 %v2180, 0.0
        %v2213 = vsub.f32 %v1989, %v2181
        %v2214 = vsub.f32 %v1990, %v2182
        %v2215 = vsub.f32 %v1991, %v2183
        %v2216 = vsub.f32 %v1992, %v2184
        %v2217 = vsub.f32 %v1993, %v2185
        %v2218 = vsub.f32 %v1994, %v2186
        %v2219 = vsub.f32 %v1995, %v2187
        %v2220 = vsub.f32 %v1996, %v2188
        %v2221 = vsub.f32 %v1997, %v2189
        %v2222 = vsub.f32 %v1998, %v2190
        %v2223 = vsub.f32 %v1999, %v2191
        %v2224 = vsub.f32 %v2000, %v2192
        %v2225 = vsub.f32 %v2001, %v2193
        %v2226 = vsub.f32 %v2002, %v2194
        %v2227 = vsub.f32 %v2003, %v2195
        %v2228 = vsub.f32 %v2004, %v2196
        %v2229 = vsub.f32 %v2005, %v2197
        %v2230 = vsub.f32 %v2006, %v2198
        %v2231 = vsub.f32 %v2007, %v2199
        %v2232 = vsub.f32 %v2008, %v2200
        %v2233 = vsub.f32 %v2009, %v2201
        %v2234 = vsub.f32 %v2010, %v2202
        %v2235 = vsub.f32 %v2011, %v2203
        %v2236 = vsub.f32 %v2012, %v2204
        %v2237 = vsub.f32 %v2013, %v2205
        %v2238 = vsub.f32 %v2014, %v2206
        %v2239 = vsub.f32 %v2015, %v2207
        %v2240 = vsub.f32 %v2016, %v2208
        %v2241 = vsub.f32 %v2017, %v2209
        %v2242 = vsub.f32 %v2018, %v2210
        %v2243 = vsub.f32 %v2019, %v2211
        %v2244 = vsub.f32 %v2020, %v2212
        %v2245 = vmul.f32 %v2213, 3.700138
        %v2246 = vmul.f32 %v2214, 3.700138
        %v2247 = vmul.f32 %v2215, 3.700138
        %v2248 = vmul.f32 %v2216, 3.700138
        %v2249 = vmul.f32 %v2217, 3.700138
        %v2250 = vmul.f32 %v2218, 3.700138
        %v2251 = vmul.f32 %v2219, 3.700138
        %v2252 = vmul.f32 %v2220, 3.700138
        %v2253 = vmul.f32 %v2221, 3.700138
        %v2254 = vmul.f32 %v2222, 3.700138
        %v2255 = vmul.f32 %v2223, 3.700138
        %v2256 = vmul.f32 %v2224, 3.700138
        %v2257 = vmul.f32 %v2225, 3.700138
        %v2258 = vmul.f32 %v2226, 3.700138
        %v2259 = vmul.f32 %v2227, 3.700138
        %v2260 = vmul.f32 %v2228, 3.700138
        %v2261 = vmul.f32 %v2229, 3.700138
        %v2262 = vmul.f32 %v2230, 3.700138
        %v2263 = vmul.f32 %v2231, 3.700138
        %v2264 = vmul.f32 %v2232, 3.700138
        %v2265 = vmul.f32 %v2233, 3.700138
        %v2266 = vmul.f32 %v2234, 3.700138
        %v2267 = vmul.f32 %v2235, 3.700138
        %v2268 = vmul.f32 %v2236, 3.700138
        %v2269 = vmul.f32 %v2237, 3.700138
        %v2270 = vmul.f32 %v2238, 3.700138
        %v2271 = vmul.f32 %v2239, 3.700138
        %v2272 = vmul.f32 %v2240, 3.700138
        %v2273 = vmul.f32 %v2241, 3.700138
        %v2274 = vmul.f32 %v2242, 3.700138
        %v2275 = vmul.f32 %v2243, 3.700138
        %v2276 = vmul.f32 %v2244, 3.700138
        %v2277 = vadd.f32 %v2085, %v2245
        %v2278 = vadd.f32 %v2086, %v2246
        %v2279 = vadd.f32 %v2087, %v2247
        %v2280 = vadd.f32 %v2088, %v2248
        %v2281 = vadd.f32 %v2089, %v2249
        %v2282 = vadd.f32 %v2090, %v2250
        %v2283 = vadd.f32 %v2091, %v2251
        %v2284 = vadd.f32 %v2092, %v2252
        %v2285 = vadd.f32 %v2093, %v2253
        %v2286 = vadd.f32 %v2094, %v2254
        %v2287 = vadd.f32 %v2095, %v2255
        %v2288 = vadd.f32 %v2096, %v2256
        %v2289 = vadd.f32 %v2097, %v2257
        %v2290 = vadd.f32 %v2098, %v2258
        %v2291 = vadd.f32 %v2099, %v2259
        %v2292 = vadd.f32 %v2100, %v2260
        %v2293 = vadd.f32 %v2101, %v2261
        %v2294 = vadd.f32 %v2102, %v2262
        %v2295 = vadd.f32 %v2103, %v2263
        %v2296 = vadd.f32 %v2104, %v2264
        %v2297 = vadd.f32 %v2105, %v2265
        %v2298 = vadd.f32 %v2106, %v2266
        %v2299 = vadd.f32 %v2107, %v2267
        %v2300 = vadd.f32 %v2108, %v2268
        %v2301 = vadd.f32 %v2109, %v2269
        %v2302 = vadd.f32 %v2110, %v2270
        %v2303 = vadd.f32 %v2111, %v2271
        %v2304 = vadd.f32 %v2112, %v2272
        %v2305 = vadd.f32 %v2113, %v2273
        %v2306 = vadd.f32 %v2114, %v2274
        %v2307 = vadd.f32 %v2115, %v2275
        %v2308 = vadd.f32 %v2116, %v2276
        %v2309 = vmul.f32 %v229, 12.0
        %v2310 = vmul.f32 %v230, 12.0
        %v2311 = vmul.f32 %v231, 12.0
        %v2312 = vmul.f32 %v232, 12.0
        %v2313 = vmul.f32 %v233, 12.0
        %v2314 = vmul.f32 %v234, 12.0
        %v2315 = vmul.f32 %v235, 12.0
        %v2316 = vmul.f32 %v236, 12.0
        %v2317 = vmul.f32 %v237, 12.0
        %v2318 = vmul.f32 %v238, 12.0
        %v2319 = vmul.f32 %v239, 12.0
        %v2320 = vmul.f32 %v240, 12.0
        %v2321 = vmul.f32 %v241, 12.0
        %v2322 = vmul.f32 %v242, 12.0
        %v2323 = vmul.f32 %v243, 12.0
        %v2324 = vmul.f32 %v244, 12.0
        %v2325 = vmul.f32 %v245, 12.0
        %v2326 = vmul.f32 %v246, 12.0
        %v2327 = vmul.f32 %v247, 12.0
        %v2328 = vmul.f32 %v248, 12.0
        %v2329 = vmul.f32 %v249, 12.0
        %v2330 = vmul.f32 %v250, 12.0
        %v2331 = vmul.f32 %v251, 12.0
        %v2332 = vmul.f32 %v252, 12.0
        %v2333 = vmul.f32 %v253, 12.0
        %v2334 = vmul.f32 %v254, 12.0
        %v2335 = vmul.f32 %v255, 12.0
        %v2336 = vmul.f32 %v256, 12.0
        %v2337 = vmul.f32 %v257, 12.0
        %v2338 = vmul.f32 %v258, 12.0
        %v2339 = vmul.f32 %v259, 12.0
        %v2340 = vmul.f32 %v260, 12.0
        %v2341 = vsub.f32 %v161, %v2309
        %v2342 = vsub.f32 %v162, %v2310
        %v2343 = vsub.f32 %v163, %v2311
        %v2344 = vsub.f32 %v164, %v2312
        %v2345 = vsub.f32 %v165, %v2313
        %v2346 = vsub.f32 %v166, %v2314
        %v2347 = vsub.f32 %v167, %v2315
        %v2348 = vsub.f32 %v168, %v2316
        %v2349 = vsub.f32 %v169, %v2317
        %v2350 = vsub.f32 %v170, %v2318
        %v2351 = vsub.f32 %v171, %v2319
        %v2352 = vsub.f32 %v172, %v2320
        %v2353 = vsub.f32 %v173, %v2321
        %v2354 = vsub.f32 %v174, %v2322
        %v2355 = vsub.f32 %v175, %v2323
        %v2356 = vsub.f32 %v176, %v2324
        %v2357 = vsub.f32 %v177, %v2325
        %v2358 = vsub.f32 %v178, %v2326
        %v2359 = vsub.f32 %v179, %v2327
        %v2360 = vsub.f32 %v180, %v2328
        %v2361 = vsub.f32 %v181, %v2329
        %v2362 = vsub.f32 %v182, %v2330
        %v2363 = vsub.f32 %v183, %v2331
        %v2364 = vsub.f32 %v184, %v2332
        %v2365 = vsub.f32 %v185, %v2333
        %v2366 = vsub.f32 %v186, %v2334
        %v2367 = vsub.f32 %v187, %v2335
        %v2368 = vsub.f32 %v188, %v2336
        %v2369 = vsub.f32 %v189, %v2337
        %v2370 = vsub.f32 %v190, %v2338
        %v2371 = vsub.f32 %v191, %v2339
        %v2372 = vsub.f32 %v192, %v2340
        %v2373 = vmax.f32 %v2341, 0.0
        %v2374 = vmax.f32 %v2342, 0.0
        %v2375 = vmax.f32 %v2343, 0.0
        %v2376 = vmax.f32 %v2344, 0.0
        %v2377 = vmax.f32 %v2345, 0.0
        %v2378 = vmax.f32 %v2346, 0.0
        %v2379 = vmax.f32 %v2347, 0.0
        %v2380 = vmax.f32 %v2348, 0.0
        %v2381 = vmax.f32 %v2349, 0.0
        %v2382 = vmax.f32 %v2350, 0.0
        %v2383 = vmax.f32 %v2351, 0.0
        %v2384 = vmax.f32 %v2352, 0.0
        %v2385 = vmax.f32 %v2353, 0.0
        %v2386 = vmax.f32 %v2354, 0.0
        %v2387 = vmax.f32 %v2355, 0.0
        %v2388 = vmax.f32 %v2356, 0.0
        %v2389 = vmax.f32 %v2357, 0.0
        %v2390 = vmax.f32 %v2358, 0.0
        %v2391 = vmax.f32 %v2359, 0.0
        %v2392 = vmax.f32 %v2360, 0.0
        %v2393 = vmax.f32 %v2361, 0.0
        %v2394 = vmax.f32 %v2362, 0.0
        %v2395 = vmax.f32 %v2363, 0.0
        %v2396 = vmax.f32 %v2364, 0.0
        %v2397 = vmax.f32 %v2365, 0.0
        %v2398 = vmax.f32 %v2366, 0.0
        %v2399 = vmax.f32 %v2367, 0.0
        %v2400 = vmax.f32 %v2368, 0.0
        %v2401 = vmax.f32 %v2369, 0.0
        %v2402 = vmax.f32 %v2370, 0.0
        %v2403 = vmax.f32 %v2371, 0.0
        %v2404 = vmax.f32 %v2372, 0.0
        %v2405 = vsub.f32 %v2181, %v2373
        %v2406 = vsub.f32 %v2182, %v2374
        %v2407 = vsub.f32 %v2183, %v2375
        %v2408 = vsub.f32 %v2184, %v2376
        %v2409 = vsub.f32 %v2185, %v2377
        %v2410 = vsub.f32 %v2186, %v2378
        %v2411 = vsub.f32 %v2187, %v2379
        %v2412 = vsub.f32 %v2188, %v2380
        %v2413 = vsub.f32 %v2189, %v2381
        %v2414 = vsub.f32 %v2190, %v2382
        %v2415 = vsub.f32 %v2191, %v2383
        %v2416 = vsub.f32 %v2192, %v2384
        %v2417 = vsub.f32 %v2193, %v2385
        %v2418 = vsub.f32 %v2194, %v2386
        %v2419 = vsub.f32 %v2195, %v2387
        %v2420 = vsub.f32 %v2196, %v2388
        %v2421 = vsub.f32 %v2197, %v2389
        %v2422 = vsub.f32 %v2198, %v2390
        %v2423 = vsub.f32 %v2199, %v2391
        %v2424 = vsub.f32 %v2200, %v2392
        %v2425 = vsub.f32 %v2201, %v2393
        %v2426 = vsub.f32 %v2202, %v2394
        %v2427 = vsub.f32 %v2203, %v2395
        %v2428 = vsub.f32 %v2204, %v2396
        %v2429 = vsub.f32 %v2205, %v2397
        %v2430 = vsub.f32 %v2206, %v2398
        %v2431 = vsub.f32 %v2207, %v2399
        %v2432 = vsub.f32 %v2208, %v2400
        %v2433 = vsub.f32 %v2209, %v2401
        %v2434 = vsub.f32 %v2210, %v2402
        %v2435 = vsub.f32 %v2211, %v2403
        %v2436 = vsub.f32 %v2212, %v2404
        %v2437 = vmul.f32 %v2405, -3.8683262
        %v2438 = vmul.f32 %v2406, -3.8683262
        %v2439 = vmul.f32 %v2407, -3.8683262
        %v2440 = vmul.f32 %v2408, -3.8683262
        %v2441 = vmul.f32 %v2409, -3.8683262
        %v2442 = vmul.f32 %v2410, -3.8683262
        %v2443 = vmul.f32 %v2411, -3.8683262
        %v2444 = vmul.f32 %v2412, -3.8683262
        %v2445 = vmul.f32 %v2413, -3.8683262
        %v2446 = vmul.f32 %v2414, -3.8683262
        %v2447 = vmul.f32 %v2415, -3.8683262
        %v2448 = vmul.f32 %v2416, -3.8683262
        %v2449 = vmul.f32 %v2417, -3.8683262
        %v2450 = vmul.f32 %v2418, -3.8683262
        %v2451 = vmul.f32 %v2419, -3.8683262
        %v2452 = vmul.f32 %v2420, -3.8683262
        %v2453 = vmul.f32 %v2421, -3.8683262
        %v2454 = vmul.f32 %v2422, -3.8683262
        %v2455 = vmul.f32 %v2423, -3.8683262
        %v2456 = vmul.f32 %v2424, -3.8683262
        %v2457 = vmul.f32 %v2425, -3.8683262
        %v2458 = vmul.f32 %v2426, -3.8683262
        %v2459 = vmul.f32 %v2427, -3.8683262
        %v2460 = vmul.f32 %v2428, -3.8683262
        %v2461 = vmul.f32 %v2429, -3.8683262
        %v2462 = vmul.f32 %v2430, -3.8683262
        %v2463 = vmul.f32 %v2431, -3.8683262
        %v2464 = vmul.f32 %v2432, -3.8683262
        %v2465 = vmul.f32 %v2433, -3.8683262
        %v2466 = vmul.f32 %v2434, -3.8683262
        %v2467 = vmul.f32 %v2435, -3.8683262
        %v2468 = vmul.f32 %v2436, -3.8683262
        %v2469 = vadd.f32 %v2277, %v2437
        %v2470 = vadd.f32 %v2278, %v2438
        %v2471 = vadd.f32 %v2279, %v2439
        %v2472 = vadd.f32 %v2280, %v2440
        %v2473 = vadd.f32 %v2281, %v2441
        %v2474 = vadd.f32 %v2282, %v2442
        %v2475 = vadd.f32 %v2283, %v2443
        %v2476 = vadd.f32 %v2284, %v2444
        %v2477 = vadd.f32 %v2285, %v2445
        %v2478 = vadd.f32 %v2286, %v2446
        %v2479 = vadd.f32 %v2287, %v2447
        %v2480 = vadd.f32 %v2288, %v2448
        %v2481 = vadd.f32 %v2289, %v2449
        %v2482 = vadd.f32 %v2290, %v2450
        %v2483 = vadd.f32 %v2291, %v2451
        %v2484 = vadd.f32 %v2292, %v2452
        %v2485 = vadd.f32 %v2293, %v2453
        %v2486 = vadd.f32 %v2294, %v2454
        %v2487 = vadd.f32 %v2295, %v2455
        %v2488 = vadd.f32 %v2296, %v2456
        %v2489 = vadd.f32 %v2297, %v2457
        %v2490 = vadd.f32 %v2298, %v2458
        %v2491 = vadd.f32 %v2299, %v2459
        %v2492 = vadd.f32 %v2300, %v2460
        %v2493 = vadd.f32 %v2301, %v2461
        %v2494 = vadd.f32 %v2302, %v2462
        %v2495 = vadd.f32 %v2303, %v2463
        %v2496 = vadd.f32 %v2304, %v2464
        %v2497 = vadd.f32 %v2305, %v2465
        %v2498 = vadd.f32 %v2306, %v2466
        %v2499 = vadd.f32 %v2307, %v2467
        %v2500 = vadd.f32 %v2308, %v2468
        %v2501 = vmul.f32 %v229, 13.0
        %v2502 = vmul.f32 %v230, 13.0
        %v2503 = vmul.f32 %v231, 13.0
        %v2504 = vmul.f32 %v232, 13.0
        %v2505 = vmul.f32 %v233, 13.0
        %v2506 = vmul.f32 %v234, 13.0
        %v2507 = vmul.f32 %v235, 13.0
        %v2508 = vmul.f32 %v236, 13.0
        %v2509 = vmul.f32 %v237, 13.0
        %v2510 = vmul.f32 %v238, 13.0
        %v2511 = vmul.f32 %v239, 13.0
        %v2512 = vmul.f32 %v240, 13.0
        %v2513 = vmul.f32 %v241, 13.0
        %v2514 = vmul.f32 %v242, 13.0
        %v2515 = vmul.f32 %v243, 13.0
        %v2516 = vmul.f32 %v244, 13.0
        %v2517 = vmul.f32 %v245, 13.0
        %v2518 = vmul.f32 %v246, 13.0
        %v2519 = vmul.f32 %v247, 13.0
        %v2520 = vmul.f32 %v248, 13.0
        %v2521 = vmul.f32 %v249, 13.0
        %v2522 = vmul.f32 %v250, 13.0
        %v2523 = vmul.f32 %v251, 13.0
        %v2524 = vmul.f32 %v252, 13.0
        %v2525 = vmul.f32 %v253, 13.0
        %v2526 = vmul.f32 %v254, 13.0
        %v2527 = vmul.f32 %v255, 13.0
        %v2528 = vmul.f32 %v256, 13.0
        %v2529 = vmul.f32 %v257, 13.0
        %v2530 = vmul.f32 %v258, 13.0
        %v2531 = vmul.f32 %v259, 13.0
        %v2532 = vmul.f32 %v260, 13.0
        %v2533 = vsub.f32 %v161, %v2501
        %v2534 = vsub.f32 %v162, %v2502
        %v2535 = vsub.f32 %v163, %v2503
        %v2536 = vsub.f32 %v164, %v2504
        %v2537 = vsub.f32 %v165, %v2505
        %v2538 = vsub.f32 %v166, %v2506
        %v2539 = vsub.f32 %v167, %v2507
        %v2540 = vsub.f32 %v168, %v2508
        %v2541 = vsub.f32 %v169, %v2509
        %v2542 = vsub.f32 %v170, %v2510
        %v2543 = vsub.f32 %v171, %v2511
        %v2544 = vsub.f32 %v172, %v2512
        %v2545 = vsub.f32 %v173, %v2513
        %v2546 = vsub.f32 %v174, %v2514
        %v2547 = vsub.f32 %v175, %v2515
        %v2548 = vsub.f32 %v176, %v2516
        %v2549 = vsub.f32 %v177, %v2517
        %v2550 = vsub.f32 %v178, %v2518
        %v2551 = vsub.f32 %v179, %v2519
        %v2552 = vsub.f32 %v180, %v2520
        %v2553 = vsub.f32 %v181, %v2521
        %v2554 = vsub.f32 %v182, %v2522
        %v2555 = vsub.f32 %v183, %v2523
        %v2556 = vsub.f32 %v184, %v2524
        %v2557 = vsub.f32 %v185, %v2525
        %v2558 = vsub.f32 %v186, %v2526
        %v2559 = vsub.f32 %v187, %v2527
        %v2560 = vsub.f32 %v188, %v2528
        %v2561 = vsub.f32 %v189, %v2529
        %v2562 = vsub.f32 %v190, %v2530
        %v2563 = vsub.f32 %v191, %v2531
        %v2564 = vsub.f32 %v192, %v2532
        %v2565 = vmax.f32 %v2533, 0.0
        %v2566 = vmax.f32 %v2534, 0.0
        %v2567 = vmax.f32 %v2535, 0.0
        %v2568 = vmax.f32 %v2536, 0.0
        %v2569 = vmax.f32 %v2537, 0.0
        %v2570 = vmax.f32 %v2538, 0.0
        %v2571 = vmax.f32 %v2539, 0.0
        %v2572 = vmax.f32 %v2540, 0.0
        %v2573 = vmax.f32 %v2541, 0.0
        %v2574 = vmax.f32 %v2542, 0.0
        %v2575 = vmax.f32 %v2543, 0.0
        %v2576 = vmax.f32 %v2544, 0.0
        %v2577 = vmax.f32 %v2545, 0.0
        %v2578 = vmax.f32 %v2546, 0.0
        %v2579 = vmax.f32 %v2547, 0.0
        %v2580 = vmax.f32 %v2548, 0.0
        %v2581 = vmax.f32 %v2549, 0.0
        %v2582 = vmax.f32 %v2550, 0.0
        %v2583 = vmax.f32 %v2551, 0.0
        %v2584 = vmax.f32 %v2552, 0.0
        %v2585 = vmax.f32 %v2553, 0.0
        %v2586 = vmax.f32 %v2554, 0.0
        %v2587 = vmax.f32 %v2555, 0.0
        %v2588 = vmax.f32 %v2556, 0.0
        %v2589 = vmax.f32 %v2557, 0.0
        %v2590 = vmax.f32 %v2558, 0.0
        %v2591 = vmax.f32 %v2559, 0.0
        %v2592 = vmax.f32 %v2560, 0.0
        %v2593 = vmax.f32 %v2561, 0.0
        %v2594 = vmax.f32 %v2562, 0.0
        %v2595 = vmax.f32 %v2563, 0.0
        %v2596 = vmax.f32 %v2564, 0.0
        %v2597 = vsub.f32 %v2373, %v2565
        %v2598 = vsub.f32 %v2374, %v2566
        %v2599 = vsub.f32 %v2375, %v2567
        %v2600 = vsub.f32 %v2376, %v2568
        %v2601 = vsub.f32 %v2377, %v2569
        %v2602 = vsub.f32 %v2378, %v2570
        %v2603 = vsub.f32 %v2379, %v2571
        %v2604 = vsub.f32 %v2380, %v2572
        %v2605 = vsub.f32 %v2381, %v2573
        %v2606 = vsub.f32 %v2382, %v2574
        %v2607 = vsub.f32 %v2383, %v2575
        %v2608 = vsub.f32 %v2384, %v2576
        %v2609 = vsub.f32 %v2385, %v2577
        %v2610 = vsub.f32 %v2386, %v2578
        %v2611 = vsub.f32 %v2387, %v2579
        %v2612 = vsub.f32 %v2388, %v2580
        %v2613 = vsub.f32 %v2389, %v2581
        %v2614 = vsub.f32 %v2390, %v2582
        %v2615 = vsub.f32 %v2391, %v2583
        %v2616 = vsub.f32 %v2392, %v2584
        %v2617 = vsub.f32 %v2393, %v2585
        %v2618 = vsub.f32 %v2394, %v2586
        %v2619 = vsub.f32 %v2395, %v2587
        %v2620 = vsub.f32 %v2396, %v2588
        %v2621 = vsub.f32 %v2397, %v2589
        %v2622 = vsub.f32 %v2398, %v2590
        %v2623 = vsub.f32 %v2399, %v2591
        %v2624 = vsub.f32 %v2400, %v2592
        %v2625 = vsub.f32 %v2401, %v2593
        %v2626 = vsub.f32 %v2402, %v2594
        %v2627 = vsub.f32 %v2403, %v2595
        %v2628 = vsub.f32 %v2404, %v2596
        %v2629 = vmul.f32 %v2597, 4.029506
        %v2630 = vmul.f32 %v2598, 4.029506
        %v2631 = vmul.f32 %v2599, 4.029506
        %v2632 = vmul.f32 %v2600, 4.029506
        %v2633 = vmul.f32 %v2601, 4.029506
        %v2634 = vmul.f32 %v2602, 4.029506
        %v2635 = vmul.f32 %v2603, 4.029506
        %v2636 = vmul.f32 %v2604, 4.029506
        %v2637 = vmul.f32 %v2605, 4.029506
        %v2638 = vmul.f32 %v2606, 4.029506
        %v2639 = vmul.f32 %v2607, 4.029506
        %v2640 = vmul.f32 %v2608, 4.029506
        %v2641 = vmul.f32 %v2609, 4.029506
        %v2642 = vmul.f32 %v2610, 4.029506
        %v2643 = vmul.f32 %v2611, 4.029506
        %v2644 = vmul.f32 %v2612, 4.029506
        %v2645 = vmul.f32 %v2613, 4.029506
        %v2646 = vmul.f32 %v2614, 4.029506
        %v2647 = vmul.f32 %v2615, 4.029506
        %v2648 = vmul.f32 %v2616, 4.029506
        %v2649 = vmul.f32 %v2617, 4.029506
        %v2650 = vmul.f32 %v2618, 4.029506
        %v2651 = vmul.f32 %v2619, 4.029506
        %v2652 = vmul.f32 %v2620, 4.029506
        %v2653 = vmul.f32 %v2621, 4.029506
        %v2654 = vmul.f32 %v2622, 4.029506
        %v2655 = vmul.f32 %v2623, 4.029506
        %v2656 = vmul.f32 %v2624, 4.029506
        %v2657 = vmul.f32 %v2625, 4.029506
        %v2658 = vmul.f32 %v2626, 4.029506
        %v2659 = vmul.f32 %v2627, 4.029506
        %v2660 = vmul.f32 %v2628, 4.029506
        %v2661 = vadd.f32 %v2469, %v2629
        %v2662 = vadd.f32 %v2470, %v2630
        %v2663 = vadd.f32 %v2471, %v2631
        %v2664 = vadd.f32 %v2472, %v2632
        %v2665 = vadd.f32 %v2473, %v2633
        %v2666 = vadd.f32 %v2474, %v2634
        %v2667 = vadd.f32 %v2475, %v2635
        %v2668 = vadd.f32 %v2476, %v2636
        %v2669 = vadd.f32 %v2477, %v2637
        %v2670 = vadd.f32 %v2478, %v2638
        %v2671 = vadd.f32 %v2479, %v2639
        %v2672 = vadd.f32 %v2480, %v2640
        %v2673 = vadd.f32 %v2481, %v2641
        %v2674 = vadd.f32 %v2482, %v2642
        %v2675 = vadd.f32 %v2483, %v2643
        %v2676 = vadd.f32 %v2484, %v2644
        %v2677 = vadd.f32 %v2485, %v2645
        %v2678 = vadd.f32 %v2486, %v2646
        %v2679 = vadd.f32 %v2487, %v2647
        %v2680 = vadd.f32 %v2488, %v2648
        %v2681 = vadd.f32 %v2489, %v2649
        %v2682 = vadd.f32 %v2490, %v2650
        %v2683 = vadd.f32 %v2491, %v2651
        %v2684 = vadd.f32 %v2492, %v2652
        %v2685 = vadd.f32 %v2493, %v2653
        %v2686 = vadd.f32 %v2494, %v2654
        %v2687 = vadd.f32 %v2495, %v2655
        %v2688 = vadd.f32 %v2496, %v2656
        %v2689 = vadd.f32 %v2497, %v2657
        %v2690 = vadd.f32 %v2498, %v2658
        %v2691 = vadd.f32 %v2499, %v2659
        %v2692 = vadd.f32 %v2500, %v2660
        %v2693 = vmul.f32 %v229, 14.0
        %v2694 = vmul.f32 %v230, 14.0
        %v2695 = vmul.f32 %v231, 14.0
        %v2696 = vmul.f32 %v232, 14.0
        %v2697 = vmul.f32 %v233, 14.0
        %v2698 = vmul.f32 %v234, 14.0
        %v2699 = vmul.f32 %v235, 14.0
        %v2700 = vmul.f32 %v236, 14.0
        %v2701 = vmul.f32 %v237, 14.0
        %v2702 = vmul.f32 %v238, 14.0
        %v2703 = vmul.f32 %v239, 14.0
        %v2704 = vmul.f32 %v240, 14.0
        %v2705 = vmul.f32 %v241, 14.0
        %v2706 = vmul.f32 %v242, 14.0
        %v2707 = vmul.f32 %v243, 14.0
        %v2708 = vmul.f32 %v244, 14.0
        %v2709 = vmul.f32 %v245, 14.0
        %v2710 = vmul.f32 %v246, 14.0
        %v2711 = vmul.f32 %v247, 14.0
        %v2712 = vmul.f32 %v248, 14.0
        %v2713 = vmul.f32 %v249, 14.0
        %v2714 = vmul.f32 %v250, 14.0
        %v2715 = vmul.f32 %v251, 14.0
        %v2716 = vmul.f32 %v252, 14.0
        %v2717 = vmul.f32 %v253, 14.0
        %v2718 = vmul.f32 %v254, 14.0
        %v2719 = vmul.f32 %v255, 14.0
        %v2720 = vmul.f32 %v256, 14.0
        %v2721 = vmul.f32 %v257, 14.0
        %v2722 = vmul.f32 %v258, 14.0
        %v2723 = vmul.f32 %v259, 14.0
        %v2724 = vmul.f32 %v260, 14.0
        %v2725 = vsub.f32 %v161, %v2693
        %v2726 = vsub.f32 %v162, %v2694
        %v2727 = vsub.f32 %v163, %v2695
        %v2728 = vsub.f32 %v164, %v2696
        %v2729 = vsub.f32 %v165, %v2697
        %v2730 = vsub.f32 %v166, %v2698
        %v2731 = vsub.f32 %v167, %v2699
        %v2732 = vsub.f32 %v168, %v2700
        %v2733 = vsub.f32 %v169, %v2701
        %v2734 = vsub.f32 %v170, %v2702
        %v2735 = vsub.f32 %v171, %v2703
        %v2736 = vsub.f32 %v172, %v2704
        %v2737 = vsub.f32 %v173, %v2705
        %v2738 = vsub.f32 %v174, %v2706
        %v2739 = vsub.f32 %v175, %v2707
        %v2740 = vsub.f32 %v176, %v2708
        %v2741 = vsub.f32 %v177, %v2709
        %v2742 = vsub.f32 %v178, %v2710
        %v2743 = vsub.f32 %v179, %v2711
        %v2744 = vsub.f32 %v180, %v2712
        %v2745 = vsub.f32 %v181, %v2713
        %v2746 = vsub.f32 %v182, %v2714
        %v2747 = vsub.f32 %v183, %v2715
        %v2748 = vsub.f32 %v184, %v2716
        %v2749 = vsub.f32 %v185, %v2717
        %v2750 = vsub.f32 %v186, %v2718
        %v2751 = vsub.f32 %v187, %v2719
        %v2752 = vsub.f32 %v188, %v2720
        %v2753 = vsub.f32 %v189, %v2721
        %v2754 = vsub.f32 %v190, %v2722
        %v2755 = vsub.f32 %v191, %v2723
        %v2756 = vsub.f32 %v192, %v2724
        %v2757 = vmax.f32 %v2725, 0.0
        %v2758 = vmax.f32 %v2726, 0.0
        %v2759 = vmax.f32 %v2727, 0.0
        %v2760 = vmax.f32 %v2728, 0.0
        %v2761 = vmax.f32 %v2729, 0.0
        %v2762 = vmax.f32 %v2730, 0.0
        %v2763 = vmax.f32 %v2731, 0.0
        %v2764 = vmax.f32 %v2732, 0.0
        %v2765 = vmax.f32 %v2733, 0.0
        %v2766 = vmax.f32 %v2734, 0.0
        %v2767 = vmax.f32 %v2735, 0.0
        %v2768 = vmax.f32 %v2736, 0.0
        %v2769 = vmax.f32 %v2737, 0.0
        %v2770 = vmax.f32 %v2738, 0.0
        %v2771 = vmax.f32 %v2739, 0.0
        %v2772 = vmax.f32 %v2740, 0.0
        %v2773 = vmax.f32 %v2741, 0.0
        %v2774 = vmax.f32 %v2742, 0.0
        %v2775 = vmax.f32 %v2743, 0.0
        %v2776 = vmax.f32 %v2744, 0.0
        %v2777 = vmax.f32 %v2745, 0.0
        %v2778 = vmax.f32 %v2746, 0.0
        %v2779 = vmax.f32 %v2747, 0.0
        %v2780 = vmax.f32 %v2748, 0.0
        %v2781 = vmax.f32 %v2749, 0.0
        %v2782 = vmax.f32 %v2750, 0.0
        %v2783 = vmax.f32 %v2751, 0.0
        %v2784 = vmax.f32 %v2752, 0.0
        %v2785 = vmax.f32 %v2753, 0.0
        %v2786 = vmax.f32 %v2754, 0.0
        %v2787 = vmax.f32 %v2755, 0.0
        %v2788 = vmax.f32 %v2756, 0.0
        %v2789 = vsub.f32 %v2565, %v2757
        %v2790 = vsub.f32 %v2566, %v2758
        %v2791 = vsub.f32 %v2567, %v2759
        %v2792 = vsub.f32 %v2568, %v2760
        %v2793 = vsub.f32 %v2569, %v2761
        %v2794 = vsub.f32 %v2570, %v2762
        %v2795 = vsub.f32 %v2571, %v2763
        %v2796 = vsub.f32 %v2572, %v2764
        %v2797 = vsub.f32 %v2573, %v2765
        %v2798 = vsub.f32 %v2574, %v2766
        %v2799 = vsub.f32 %v2575, %v2767
        %v2800 = vsub.f32 %v2576, %v2768
        %v2801 = vsub.f32 %v2577, %v2769
        %v2802 = vsub.f32 %v2578, %v2770
        %v2803 = vsub.f32 %v2579, %v2771
        %v2804 = vsub.f32 %v2580, %v2772
        %v2805 = vsub.f32 %v2581, %v2773
        %v2806 = vsub.f32 %v2582, %v2774
        %v2807 = vsub.f32 %v2583, %v2775
        %v2808 = vsub.f32 %v2584, %v2776
        %v2809 = vsub.f32 %v2585, %v2777
        %v2810 = vsub.f32 %v2586, %v2778
        %v2811 = vsub.f32 %v2587, %v2779
        %v2812 = vsub.f32 %v2588, %v2780
        %v2813 = vsub.f32 %v2589, %v2781
        %v2814 = vsub.f32 %v2590, %v2782
        %v2815 = vsub.f32 %v2591, %v2783
        %v2816 = vsub.f32 %v2592, %v2784
        %v2817 = vsub.f32 %v2593, %v2785
        %v2818 = vsub.f32 %v2594, %v2786
        %v2819 = vsub.f32 %v2595, %v2787
        %v2820 = vsub.f32 %v2596, %v2788
        %v2821 = vmul.f32 %v2789, -4.1844873
        %v2822 = vmul.f32 %v2790, -4.1844873
        %v2823 = vmul.f32 %v2791, -4.1844873
        %v2824 = vmul.f32 %v2792, -4.1844873
        %v2825 = vmul.f32 %v2793, -4.1844873
        %v2826 = vmul.f32 %v2794, -4.1844873
        %v2827 = vmul.f32 %v2795, -4.1844873
        %v2828 = vmul.f32 %v2796, -4.1844873
        %v2829 = vmul.f32 %v2797, -4.1844873
        %v2830 = vmul.f32 %v2798, -4.1844873
        %v2831 = vmul.f32 %v2799, -4.1844873
        %v2832 = vmul.f32 %v2800, -4.1844873
        %v2833 = vmul.f32 %v2801, -4.1844873
        %v2834 = vmul.f32 %v2802, -4.1844873
        %v2835 = vmul.f32 %v2803, -4.1844873
        %v2836 = vmul.f32 %v2804, -4.1844873
        %v2837 = vmul.f32 %v2805, -4.1844873
        %v2838 = vmul.f32 %v2806, -4.1844873
        %v2839 = vmul.f32 %v2807, -4.1844873
        %v2840 = vmul.f32 %v2808, -4.1844873
        %v2841 = vmul.f32 %v2809, -4.1844873
        %v2842 = vmul.f32 %v2810, -4.1844873
        %v2843 = vmul.f32 %v2811, -4.1844873
        %v2844 = vmul.f32 %v2812, -4.1844873
        %v2845 = vmul.f32 %v2813, -4.1844873
        %v2846 = vmul.f32 %v2814, -4.1844873
        %v2847 = vmul.f32 %v2815, -4.1844873
        %v2848 = vmul.f32 %v2816, -4.1844873
        %v2849 = vmul.f32 %v2817, -4.1844873
        %v2850 = vmul.f32 %v2818, -4.1844873
        %v2851 = vmul.f32 %v2819, -4.1844873
        %v2852 = vmul.f32 %v2820, -4.1844873
        %v2853 = vadd.f32 %v2661, %v2821
        %v2854 = vadd.f32 %v2662, %v2822
        %v2855 = vadd.f32 %v2663, %v2823
        %v2856 = vadd.f32 %v2664, %v2824
        %v2857 = vadd.f32 %v2665, %v2825
        %v2858 = vadd.f32 %v2666, %v2826
        %v2859 = vadd.f32 %v2667, %v2827
        %v2860 = vadd.f32 %v2668, %v2828
        %v2861 = vadd.f32 %v2669, %v2829
        %v2862 = vadd.f32 %v2670, %v2830
        %v2863 = vadd.f32 %v2671, %v2831
        %v2864 = vadd.f32 %v2672, %v2832
        %v2865 = vadd.f32 %v2673, %v2833
        %v2866 = vadd.f32 %v2674, %v2834
        %v2867 = vadd.f32 %v2675, %v2835
        %v2868 = vadd.f32 %v2676, %v2836
        %v2869 = vadd.f32 %v2677, %v2837
        %v2870 = vadd.f32 %v2678, %v2838
        %v2871 = vadd.f32 %v2679, %v2839
        %v2872 = vadd.f32 %v2680, %v2840
        %v2873 = vadd.f32 %v2681, %v2841
        %v2874 = vadd.f32 %v2682, %v2842
        %v2875 = vadd.f32 %v2683, %v2843
        %v2876 = vadd.f32 %v2684, %v2844
        %v2877 = vadd.f32 %v2685, %v2845
        %v2878 = vadd.f32 %v2686, %v2846
        %v2879 = vadd.f32 %v2687, %v2847
        %v2880 = vadd.f32 %v2688, %v2848
        %v2881 = vadd.f32 %v2689, %v2849
        %v2882 = vadd.f32 %v2690, %v2850
        %v2883 = vadd.f32 %v2691, %v2851
        %v2884 = vadd.f32 %v2692, %v2852
        %v2885 = vmul.f32 %v229, 15.0
        %v2886 = vmul.f32 %v230, 15.0
        %v2887 = vmul.f32 %v231, 15.0
        %v2888 = vmul.f32 %v232, 15.0
        %v2889 = vmul.f32 %v233, 15.0
        %v2890 = vmul.f32 %v234, 15.0
        %v2891 = vmul.f32 %v235, 15.0
        %v2892 = vmul.f32 %v236, 15.0
        %v2893 = vmul.f32 %v237, 15.0
        %v2894 = vmul.f32 %v238, 15.0
        %v2895 = vmul.f32 %v239, 15.0
        %v2896 = vmul.f32 %v240, 15.0
        %v2897 = vmul.f32 %v241, 15.0
        %v2898 = vmul.f32 %v242, 15.0
        %v2899 = vmul.f32 %v243, 15.0
        %v2900 = vmul.f32 %v244, 15.0
        %v2901 = vmul.f32 %v245, 15.0
        %v2902 = vmul.f32 %v246, 15.0
        %v2903 = vmul.f32 %v247, 15.0
        %v2904 = vmul.f32 %v248, 15.0
        %v2905 = vmul.f32 %v249, 15.0
        %v2906 = vmul.f32 %v250, 15.0
        %v2907 = vmul.f32 %v251, 15.0
        %v2908 = vmul.f32 %v252, 15.0
        %v2909 = vmul.f32 %v253, 15.0
        %v2910 = vmul.f32 %v254, 15.0
        %v2911 = vmul.f32 %v255, 15.0
        %v2912 = vmul.f32 %v256, 15.0
        %v2913 = vmul.f32 %v257, 15.0
        %v2914 = vmul.f32 %v258, 15.0
        %v2915 = vmul.f32 %v259, 15.0
        %v2916 = vmul.f32 %v260, 15.0
        %v2917 = vsub.f32 %v161, %v2885
        %v2918 = vsub.f32 %v162, %v2886
        %v2919 = vsub.f32 %v163, %v2887
        %v2920 = vsub.f32 %v164, %v2888
        %v2921 = vsub.f32 %v165, %v2889
        %v2922 = vsub.f32 %v166, %v2890
        %v2923 = vsub.f32 %v167, %v2891
        %v2924 = vsub.f32 %v168, %v2892
        %v2925 = vsub.f32 %v169, %v2893
        %v2926 = vsub.f32 %v170, %v2894
        %v2927 = vsub.f32 %v171, %v2895
        %v2928 = vsub.f32 %v172, %v2896
        %v2929 = vsub.f32 %v173, %v2897
        %v2930 = vsub.f32 %v174, %v2898
        %v2931 = vsub.f32 %v175, %v2899
        %v2932 = vsub.f32 %v176, %v2900
        %v2933 = vsub.f32 %v177, %v2901
        %v2934 = vsub.f32 %v178, %v2902
        %v2935 = vsub.f32 %v179, %v2903
        %v2936 = vsub.f32 %v180, %v2904
        %v2937 = vsub.f32 %v181, %v2905
        %v2938 = vsub.f32 %v182, %v2906
        %v2939 = vsub.f32 %v183, %v2907
        %v2940 = vsub.f32 %v184, %v2908
        %v2941 = vsub.f32 %v185, %v2909
        %v2942 = vsub.f32 %v186, %v2910
        %v2943 = vsub.f32 %v187, %v2911
        %v2944 = vsub.f32 %v188, %v2912
        %v2945 = vsub.f32 %v189, %v2913
        %v2946 = vsub.f32 %v190, %v2914
        %v2947 = vsub.f32 %v191, %v2915
        %v2948 = vsub.f32 %v192, %v2916
        %v2949 = vmax.f32 %v2917, 0.0
        %v2950 = vmax.f32 %v2918, 0.0
        %v2951 = vmax.f32 %v2919, 0.0
        %v2952 = vmax.f32 %v2920, 0.0
        %v2953 = vmax.f32 %v2921, 0.0
        %v2954 = vmax.f32 %v2922, 0.0
        %v2955 = vmax.f32 %v2923, 0.0
        %v2956 = vmax.f32 %v2924, 0.0
        %v2957 = vmax.f32 %v2925, 0.0
        %v2958 = vmax.f32 %v2926, 0.0
        %v2959 = vmax.f32 %v2927, 0.0
        %v2960 = vmax.f32 %v2928, 0.0
        %v2961 = vmax.f32 %v2929, 0.0
        %v2962 = vmax.f32 %v2930, 0.0
        %v2963 = vmax.f32 %v2931, 0.0
        %v2964 = vmax.f32 %v2932, 0.0
        %v2965 = vmax.f32 %v2933, 0.0
        %v2966 = vmax.f32 %v2934, 0.0
        %v2967 = vmax.f32 %v2935, 0.0
        %v2968 = vmax.f32 %v2936, 0.0
        %v2969 = vmax.f32 %v2937, 0.0
        %v2970 = vmax.f32 %v2938, 0.0
        %v2971 = vmax.f32 %v2939, 0.0
        %v2972 = vmax.f32 %v2940, 0.0
        %v2973 = vmax.f32 %v2941, 0.0
        %v2974 = vmax.f32 %v2942, 0.0
        %v2975 = vmax.f32 %v2943, 0.0
        %v2976 = vmax.f32 %v2944, 0.0
        %v2977 = vmax.f32 %v2945, 0.0
        %v2978 = vmax.f32 %v2946, 0.0
        %v2979 = vmax.f32 %v2947, 0.0
        %v2980 = vmax.f32 %v2948, 0.0
        %v2981 = vsub.f32 %v2757, %v2949
        %v2982 = vsub.f32 %v2758, %v2950
        %v2983 = vsub.f32 %v2759, %v2951
        %v2984 = vsub.f32 %v2760, %v2952
        %v2985 = vsub.f32 %v2761, %v2953
        %v2986 = vsub.f32 %v2762, %v2954
        %v2987 = vsub.f32 %v2763, %v2955
        %v2988 = vsub.f32 %v2764, %v2956
        %v2989 = vsub.f32 %v2765, %v2957
        %v2990 = vsub.f32 %v2766, %v2958
        %v2991 = vsub.f32 %v2767, %v2959
        %v2992 = vsub.f32 %v2768, %v2960
        %v2993 = vsub.f32 %v2769, %v2961
        %v2994 = vsub.f32 %v2770, %v2962
        %v2995 = vsub.f32 %v2771, %v2963
        %v2996 = vsub.f32 %v2772, %v2964
        %v2997 = vsub.f32 %v2773, %v2965
        %v2998 = vsub.f32 %v2774, %v2966
        %v2999 = vsub.f32 %v2775, %v2967
        %v3000 = vsub.f32 %v2776, %v2968
        %v3001 = vsub.f32 %v2777, %v2969
        %v3002 = vsub.f32 %v2778, %v2970
        %v3003 = vsub.f32 %v2779, %v2971
        %v3004 = vsub.f32 %v2780, %v2972
        %v3005 = vsub.f32 %v2781, %v2973
        %v3006 = vsub.f32 %v2782, %v2974
        %v3007 = vsub.f32 %v2783, %v2975
        %v3008 = vsub.f32 %v2784, %v2976
        %v3009 = vsub.f32 %v2785, %v2977
        %v3010 = vsub.f32 %v2786, %v2978
        %v3011 = vsub.f32 %v2787, %v2979
        %v3012 = vsub.f32 %v2788, %v2980
        %v3013 = vmul.f32 %v2981, 4.3339334
        %v3014 = vmul.f32 %v2982, 4.3339334
        %v3015 = vmul.f32 %v2983, 4.3339334
        %v3016 = vmul.f32 %v2984, 4.3339334
        %v3017 = vmul.f32 %v2985, 4.3339334
        %v3018 = vmul.f32 %v2986, 4.3339334
        %v3019 = vmul.f32 %v2987, 4.3339334
        %v3020 = vmul.f32 %v2988, 4.3339334
        %v3021 = vmul.f32 %v2989, 4.3339334
        %v3022 = vmul.f32 %v2990, 4.3339334
        %v3023 = vmul.f32 %v2991, 4.3339334
        %v3024 = vmul.f32 %v2992, 4.3339334
        %v3025 = vmul.f32 %v2993, 4.3339334
        %v3026 = vmul.f32 %v2994, 4.3339334
        %v3027 = vmul.f32 %v2995, 4.3339334
        %v3028 = vmul.f32 %v2996, 4.3339334
        %v3029 = vmul.f32 %v2997, 4.3339334
        %v3030 = vmul.f32 %v2998, 4.3339334
        %v3031 = vmul.f32 %v2999, 4.3339334
        %v3032 = vmul.f32 %v3000, 4.3339334
        %v3033 = vmul.f32 %v3001, 4.3339334
        %v3034 = vmul.f32 %v3002, 4.3339334
        %v3035 = vmul.f32 %v3003, 4.3339334
        %v3036 = vmul.f32 %v3004, 4.3339334
        %v3037 = vmul.f32 %v3005, 4.3339334
        %v3038 = vmul.f32 %v3006, 4.3339334
        %v3039 = vmul.f32 %v3007, 4.3339334
        %v3040 = vmul.f32 %v3008, 4.3339334
        %v3041 = vmul.f32 %v3009, 4.3339334
        %v3042 = vmul.f32 %v3010, 4.3339334
        %v3043 = vmul.f32 %v3011, 4.3339334
        %v3044 = vmul.f32 %v3012, 4.3339334
        %v3045 = vadd.f32 %v2853, %v3013
        %v3046 = vadd.f32 %v2854, %v3014
        %v3047 = vadd.f32 %v2855, %v3015
        %v3048 = vadd.f32 %v2856, %v3016
        %v3049 = vadd.f32 %v2857, %v3017
        %v3050 = vadd.f32 %v2858, %v3018
        %v3051 = vadd.f32 %v2859, %v3019
        %v3052 = vadd.f32 %v2860, %v3020
        %v3053 = vadd.f32 %v2861, %v3021
        %v3054 = vadd.f32 %v2862, %v3022
        %v3055 = vadd.f32 %v2863, %v3023
        %v3056 = vadd.f32 %v2864, %v3024
        %v3057 = vadd.f32 %v2865, %v3025
        %v3058 = vadd.f32 %v2866, %v3026
        %v3059 = vadd.f32 %v2867, %v3027
        %v3060 = vadd.f32 %v2868, %v3028
        %v3061 = vadd.f32 %v2869, %v3029
        %v3062 = vadd.f32 %v2870, %v3030
        %v3063 = vadd.f32 %v2871, %v3031
        %v3064 = vadd.f32 %v2872, %v3032
        %v3065 = vadd.f32 %v2873, %v3033
        %v3066 = vadd.f32 %v2874, %v3034
        %v3067 = vadd.f32 %v2875, %v3035
        %v3068 = vadd.f32 %v2876, %v3036
        %v3069 = vadd.f32 %v2877, %v3037
        %v3070 = vadd.f32 %v2878, %v3038
        %v3071 = vadd.f32 %v2879, %v3039
        %v3072 = vadd.f32 %v2880, %v3040
        %v3073 = vadd.f32 %v2881, %v3041
        %v3074 = vadd.f32 %v2882, %v3042
        %v3075 = vadd.f32 %v2883, %v3043
        %v3076 = vadd.f32 %v2884, %v3044
        %v3077 = vmul.f32 %v229, 16.0
        %v3078 = vmul.f32 %v230, 16.0
        %v3079 = vmul.f32 %v231, 16.0
        %v3080 = vmul.f32 %v232, 16.0
        %v3081 = vmul.f32 %v233, 16.0
        %v3082 = vmul.f32 %v234, 16.0
        %v3083 = vmul.f32 %v235, 16.0
        %v3084 = vmul.f32 %v236, 16.0
        %v3085 = vmul.f32 %v237, 16.0
        %v3086 = vmul.f32 %v238, 16.0
        %v3087 = vmul.f32 %v239, 16.0
        %v3088 = vmul.f32 %v240, 16.0
        %v3089 = vmul.f32 %v241, 16.0
        %v3090 = vmul.f32 %v242, 16.0
        %v3091 = vmul.f32 %v243, 16.0
        %v3092 = vmul.f32 %v244, 16.0
        %v3093 = vmul.f32 %v245, 16.0
        %v3094 = vmul.f32 %v246, 16.0
        %v3095 = vmul.f32 %v247, 16.0
        %v3096 = vmul.f32 %v248, 16.0
        %v3097 = vmul.f32 %v249, 16.0
        %v3098 = vmul.f32 %v250, 16.0
        %v3099 = vmul.f32 %v251, 16.0
        %v3100 = vmul.f32 %v252, 16.0
        %v3101 = vmul.f32 %v253, 16.0
        %v3102 = vmul.f32 %v254, 16.0
        %v3103 = vmul.f32 %v255, 16.0
        %v3104 = vmul.f32 %v256, 16.0
        %v3105 = vmul.f32 %v257, 16.0
        %v3106 = vmul.f32 %v258, 16.0
        %v3107 = vmul.f32 %v259, 16.0
        %v3108 = vmul.f32 %v260, 16.0
        %v3109 = vsub.f32 %v161, %v3077
        %v3110 = vsub.f32 %v162, %v3078
        %v3111 = vsub.f32 %v163, %v3079
        %v3112 = vsub.f32 %v164, %v3080
        %v3113 = vsub.f32 %v165, %v3081
        %v3114 = vsub.f32 %v166, %v3082
        %v3115 = vsub.f32 %v167, %v3083
        %v3116 = vsub.f32 %v168, %v3084
        %v3117 = vsub.f32 %v169, %v3085
        %v3118 = vsub.f32 %v170, %v3086
        %v3119 = vsub.f32 %v171, %v3087
        %v3120 = vsub.f32 %v172, %v3088
        %v3121 = vsub.f32 %v173, %v3089
        %v3122 = vsub.f32 %v174, %v3090
        %v3123 = vsub.f32 %v175, %v3091
        %v3124 = vsub.f32 %v176, %v3092
        %v3125 = vsub.f32 %v177, %v3093
        %v3126 = vsub.f32 %v178, %v3094
        %v3127 = vsub.f32 %v179, %v3095
        %v3128 = vsub.f32 %v180, %v3096
        %v3129 = vsub.f32 %v181, %v3097
        %v3130 = vsub.f32 %v182, %v3098
        %v3131 = vsub.f32 %v183, %v3099
        %v3132 = vsub.f32 %v184, %v3100
        %v3133 = vsub.f32 %v185, %v3101
        %v3134 = vsub.f32 %v186, %v3102
        %v3135 = vsub.f32 %v187, %v3103
        %v3136 = vsub.f32 %v188, %v3104
        %v3137 = vsub.f32 %v189, %v3105
        %v3138 = vsub.f32 %v190, %v3106
        %v3139 = vsub.f32 %v191, %v3107
        %v3140 = vsub.f32 %v192, %v3108
        %v3141 = vmax.f32 %v3109, 0.0
        %v3142 = vmax.f32 %v3110, 0.0
        %v3143 = vmax.f32 %v3111, 0.0
        %v3144 = vmax.f32 %v3112, 0.0
        %v3145 = vmax.f32 %v3113, 0.0
        %v3146 = vmax.f32 %v3114, 0.0
        %v3147 = vmax.f32 %v3115, 0.0
        %v3148 = vmax.f32 %v3116, 0.0
        %v3149 = vmax.f32 %v3117, 0.0
        %v3150 = vmax.f32 %v3118, 0.0
        %v3151 = vmax.f32 %v3119, 0.0
        %v3152 = vmax.f32 %v3120, 0.0
        %v3153 = vmax.f32 %v3121, 0.0
        %v3154 = vmax.f32 %v3122, 0.0
        %v3155 = vmax.f32 %v3123, 0.0
        %v3156 = vmax.f32 %v3124, 0.0
        %v3157 = vmax.f32 %v3125, 0.0
        %v3158 = vmax.f32 %v3126, 0.0
        %v3159 = vmax.f32 %v3127, 0.0
        %v3160 = vmax.f32 %v3128, 0.0
        %v3161 = vmax.f32 %v3129, 0.0
        %v3162 = vmax.f32 %v3130, 0.0
        %v3163 = vmax.f32 %v3131, 0.0
        %v3164 = vmax.f32 %v3132, 0.0
        %v3165 = vmax.f32 %v3133, 0.0
        %v3166 = vmax.f32 %v3134, 0.0
        %v3167 = vmax.f32 %v3135, 0.0
        %v3168 = vmax.f32 %v3136, 0.0
        %v3169 = vmax.f32 %v3137, 0.0
        %v3170 = vmax.f32 %v3138, 0.0
        %v3171 = vmax.f32 %v3139, 0.0
        %v3172 = vmax.f32 %v3140, 0.0
        %v3173 = vsub.f32 %v2949, %v3141
        %v3174 = vsub.f32 %v2950, %v3142
        %v3175 = vsub.f32 %v2951, %v3143
        %v3176 = vsub.f32 %v2952, %v3144
        %v3177 = vsub.f32 %v2953, %v3145
        %v3178 = vsub.f32 %v2954, %v3146
        %v3179 = vsub.f32 %v2955, %v3147
        %v3180 = vsub.f32 %v2956, %v3148
        %v3181 = vsub.f32 %v2957, %v3149
        %v3182 = vsub.f32 %v2958, %v3150
        %v3183 = vsub.f32 %v2959, %v3151
        %v3184 = vsub.f32 %v2960, %v3152
        %v3185 = vsub.f32 %v2961, %v3153
        %v3186 = vsub.f32 %v2962, %v3154
        %v3187 = vsub.f32 %v2963, %v3155
        %v3188 = vsub.f32 %v2964, %v3156
        %v3189 = vsub.f32 %v2965, %v3157
        %v3190 = vsub.f32 %v2966, %v3158
        %v3191 = vsub.f32 %v2967, %v3159
        %v3192 = vsub.f32 %v2968, %v3160
        %v3193 = vsub.f32 %v2969, %v3161
        %v3194 = vsub.f32 %v2970, %v3162
        %v3195 = vsub.f32 %v2971, %v3163
        %v3196 = vsub.f32 %v2972, %v3164
        %v3197 = vsub.f32 %v2973, %v3165
        %v3198 = vsub.f32 %v2974, %v3166
        %v3199 = vsub.f32 %v2975, %v3167
        %v3200 = vsub.f32 %v2976, %v3168
        %v3201 = vsub.f32 %v2977, %v3169
        %v3202 = vsub.f32 %v2978, %v3170
        %v3203 = vsub.f32 %v2979, %v3171
        %v3204 = vsub.f32 %v2980, %v3172
        %v3205 = vmul.f32 %v3173, -4.478398
        %v3206 = vmul.f32 %v3174, -4.478398
        %v3207 = vmul.f32 %v3175, -4.478398
        %v3208 = vmul.f32 %v3176, -4.478398
        %v3209 = vmul.f32 %v3177, -4.478398
        %v3210 = vmul.f32 %v3178, -4.478398
        %v3211 = vmul.f32 %v3179, -4.478398
        %v3212 = vmul.f32 %v3180, -4.478398
        %v3213 = vmul.f32 %v3181, -4.478398
        %v3214 = vmul.f32 %v3182, -4.478398
        %v3215 = vmul.f32 %v3183, -4.478398
        %v3216 = vmul.f32 %v3184, -4.478398
        %v3217 = vmul.f32 %v3185, -4.478398
        %v3218 = vmul.f32 %v3186, -4.478398
        %v3219 = vmul.f32 %v3187, -4.478398
        %v3220 = vmul.f32 %v3188, -4.478398
        %v3221 = vmul.f32 %v3189, -4.478398
        %v3222 = vmul.f32 %v3190, -4.478398
        %v3223 = vmul.f32 %v3191, -4.478398
        %v3224 = vmul.f32 %v3192, -4.478398
        %v3225 = vmul.f32 %v3193, -4.478398
        %v3226 = vmul.f32 %v3194, -4.478398
        %v3227 = vmul.f32 %v3195, -4.478398
        %v3228 = vmul.f32 %v3196, -4.478398
        %v3229 = vmul.f32 %v3197, -4.478398
        %v3230 = vmul.f32 %v3198, -4.478398
        %v3231 = vmul.f32 %v3199, -4.478398
        %v3232 = vmul.f32 %v3200, -4.478398
        %v3233 = vmul.f32 %v3201, -4.478398
        %v3234 = vmul.f32 %v3202, -4.478398
        %v3235 = vmul.f32 %v3203, -4.478398
        %v3236 = vmul.f32 %v3204, -4.478398
        %v3237 = vadd.f32 %v3045, %v3205
        %v3238 = vadd.f32 %v3046, %v3206
        %v3239 = vadd.f32 %v3047, %v3207
        %v3240 = vadd.f32 %v3048, %v3208
        %v3241 = vadd.f32 %v3049, %v3209
        %v3242 = vadd.f32 %v3050, %v3210
        %v3243 = vadd.f32 %v3051, %v3211
        %v3244 = vadd.f32 %v3052, %v3212
        %v3245 = vadd.f32 %v3053, %v3213
        %v3246 = vadd.f32 %v3054, %v3214
        %v3247 = vadd.f32 %v3055, %v3215
        %v3248 = vadd.f32 %v3056, %v3216
        %v3249 = vadd.f32 %v3057, %v3217
        %v3250 = vadd.f32 %v3058, %v3218
        %v3251 = vadd.f32 %v3059, %v3219
        %v3252 = vadd.f32 %v3060, %v3220
        %v3253 = vadd.f32 %v3061, %v3221
        %v3254 = vadd.f32 %v3062, %v3222
        %v3255 = vadd.f32 %v3063, %v3223
        %v3256 = vadd.f32 %v3064, %v3224
        %v3257 = vadd.f32 %v3065, %v3225
        %v3258 = vadd.f32 %v3066, %v3226
        %v3259 = vadd.f32 %v3067, %v3227
        %v3260 = vadd.f32 %v3068, %v3228
        %v3261 = vadd.f32 %v3069, %v3229
        %v3262 = vadd.f32 %v3070, %v3230
        %v3263 = vadd.f32 %v3071, %v3231
        %v3264 = vadd.f32 %v3072, %v3232
        %v3265 = vadd.f32 %v3073, %v3233
        %v3266 = vadd.f32 %v3074, %v3234
        %v3267 = vadd.f32 %v3075, %v3235
        %v3268 = vadd.f32 %v3076, %v3236
        %v3269 = vmul.f32 %v229, 17.0
        %v3270 = vmul.f32 %v230, 17.0
        %v3271 = vmul.f32 %v231, 17.0
        %v3272 = vmul.f32 %v232, 17.0
        %v3273 = vmul.f32 %v233, 17.0
        %v3274 = vmul.f32 %v234, 17.0
        %v3275 = vmul.f32 %v235, 17.0
        %v3276 = vmul.f32 %v236, 17.0
        %v3277 = vmul.f32 %v237, 17.0
        %v3278 = vmul.f32 %v238, 17.0
        %v3279 = vmul.f32 %v239, 17.0
        %v3280 = vmul.f32 %v240, 17.0
        %v3281 = vmul.f32 %v241, 17.0
        %v3282 = vmul.f32 %v242, 17.0
        %v3283 = vmul.f32 %v243, 17.0
        %v3284 = vmul.f32 %v244, 17.0
        %v3285 = vmul.f32 %v245, 17.0
        %v3286 = vmul.f32 %v246, 17.0
        %v3287 = vmul.f32 %v247, 17.0
        %v3288 = vmul.f32 %v248, 17.0
        %v3289 = vmul.f32 %v249, 17.0
        %v3290 = vmul.f32 %v250, 17.0
        %v3291 = vmul.f32 %v251, 17.0
        %v3292 = vmul.f32 %v252, 17.0
        %v3293 = vmul.f32 %v253, 17.0
        %v3294 = vmul.f32 %v254, 17.0
        %v3295 = vmul.f32 %v255, 17.0
        %v3296 = vmul.f32 %v256, 17.0
        %v3297 = vmul.f32 %v257, 17.0
        %v3298 = vmul.f32 %v258, 17.0
        %v3299 = vmul.f32 %v259, 17.0
        %v3300 = vmul.f32 %v260, 17.0
        %v3301 = vsub.f32 %v161, %v3269
        %v3302 = vsub.f32 %v162, %v3270
        %v3303 = vsub.f32 %v163, %v3271
        %v3304 = vsub.f32 %v164, %v3272
        %v3305 = vsub.f32 %v165, %v3273
        %v3306 = vsub.f32 %v166, %v3274
        %v3307 = vsub.f32 %v167, %v3275
        %v3308 = vsub.f32 %v168, %v3276
        %v3309 = vsub.f32 %v169, %v3277
        %v3310 = vsub.f32 %v170, %v3278
        %v3311 = vsub.f32 %v171, %v3279
        %v3312 = vsub.f32 %v172, %v3280
        %v3313 = vsub.f32 %v173, %v3281
        %v3314 = vsub.f32 %v174, %v3282
        %v3315 = vsub.f32 %v175, %v3283
        %v3316 = vsub.f32 %v176, %v3284
        %v3317 = vsub.f32 %v177, %v3285
        %v3318 = vsub.f32 %v178, %v3286
        %v3319 = vsub.f32 %v179, %v3287
        %v3320 = vsub.f32 %v180, %v3288
        %v3321 = vsub.f32 %v181, %v3289
        %v3322 = vsub.f32 %v182, %v3290
        %v3323 = vsub.f32 %v183, %v3291
        %v3324 = vsub.f32 %v184, %v3292
        %v3325 = vsub.f32 %v185, %v3293
        %v3326 = vsub.f32 %v186, %v3294
        %v3327 = vsub.f32 %v187, %v3295
        %v3328 = vsub.f32 %v188, %v3296
        %v3329 = vsub.f32 %v189, %v3297
        %v3330 = vsub.f32 %v190, %v3298
        %v3331 = vsub.f32 %v191, %v3299
        %v3332 = vsub.f32 %v192, %v3300
        %v3333 = vmax.f32 %v3301, 0.0
        %v3334 = vmax.f32 %v3302, 0.0
        %v3335 = vmax.f32 %v3303, 0.0
        %v3336 = vmax.f32 %v3304, 0.0
        %v3337 = vmax.f32 %v3305, 0.0
        %v3338 = vmax.f32 %v3306, 0.0
        %v3339 = vmax.f32 %v3307, 0.0
        %v3340 = vmax.f32 %v3308, 0.0
        %v3341 = vmax.f32 %v3309, 0.0
        %v3342 = vmax.f32 %v3310, 0.0
        %v3343 = vmax.f32 %v3311, 0.0
        %v3344 = vmax.f32 %v3312, 0.0
        %v3345 = vmax.f32 %v3313, 0.0
        %v3346 = vmax.f32 %v3314, 0.0
        %v3347 = vmax.f32 %v3315, 0.0
        %v3348 = vmax.f32 %v3316, 0.0
        %v3349 = vmax.f32 %v3317, 0.0
        %v3350 = vmax.f32 %v3318, 0.0
        %v3351 = vmax.f32 %v3319, 0.0
        %v3352 = vmax.f32 %v3320, 0.0
        %v3353 = vmax.f32 %v3321, 0.0
        %v3354 = vmax.f32 %v3322, 0.0
        %v3355 = vmax.f32 %v3323, 0.0
        %v3356 = vmax.f32 %v3324, 0.0
        %v3357 = vmax.f32 %v3325, 0.0
        %v3358 = vmax.f32 %v3326, 0.0
        %v3359 = vmax.f32 %v3327, 0.0
        %v3360 = vmax.f32 %v3328, 0.0
        %v3361 = vmax.f32 %v3329, 0.0
        %v3362 = vmax.f32 %v3330, 0.0
        %v3363 = vmax.f32 %v3331, 0.0
        %v3364 = vmax.f32 %v3332, 0.0
        %v3365 = vsub.f32 %v3141, %v3333
        %v3366 = vsub.f32 %v3142, %v3334
        %v3367 = vsub.f32 %v3143, %v3335
        %v3368 = vsub.f32 %v3144, %v3336
        %v3369 = vsub.f32 %v3145, %v3337
        %v3370 = vsub.f32 %v3146, %v3338
        %v3371 = vsub.f32 %v3147, %v3339
        %v3372 = vsub.f32 %v3148, %v3340
        %v3373 = vsub.f32 %v3149, %v3341
        %v3374 = vsub.f32 %v3150, %v3342
        %v3375 = vsub.f32 %v3151, %v3343
        %v3376 = vsub.f32 %v3152, %v3344
        %v3377 = vsub.f32 %v3153, %v3345
        %v3378 = vsub.f32 %v3154, %v3346
        %v3379 = vsub.f32 %v3155, %v3347
        %v3380 = vsub.f32 %v3156, %v3348
        %v3381 = vsub.f32 %v3157, %v3349
        %v3382 = vsub.f32 %v3158, %v3350
        %v3383 = vsub.f32 %v3159, %v3351
        %v3384 = vsub.f32 %v3160, %v3352
        %v3385 = vsub.f32 %v3161, %v3353
        %v3386 = vsub.f32 %v3162, %v3354
        %v3387 = vsub.f32 %v3163, %v3355
        %v3388 = vsub.f32 %v3164, %v3356
        %v3389 = vsub.f32 %v3165, %v3357
        %v3390 = vsub.f32 %v3166, %v3358
        %v3391 = vsub.f32 %v3167, %v3359
        %v3392 = vsub.f32 %v3168, %v3360
        %v3393 = vsub.f32 %v3169, %v3361
        %v3394 = vsub.f32 %v3170, %v3362
        %v3395 = vsub.f32 %v3171, %v3363
        %v3396 = vsub.f32 %v3172, %v3364
        %v3397 = vmul.f32 %v3365, 4.6183476
        %v3398 = vmul.f32 %v3366, 4.6183476
        %v3399 = vmul.f32 %v3367, 4.6183476
        %v3400 = vmul.f32 %v3368, 4.6183476
        %v3401 = vmul.f32 %v3369, 4.6183476
        %v3402 = vmul.f32 %v3370, 4.6183476
        %v3403 = vmul.f32 %v3371, 4.6183476
        %v3404 = vmul.f32 %v3372, 4.6183476
        %v3405 = vmul.f32 %v3373, 4.6183476
        %v3406 = vmul.f32 %v3374, 4.6183476
        %v3407 = vmul.f32 %v3375, 4.6183476
        %v3408 = vmul.f32 %v3376, 4.6183476
        %v3409 = vmul.f32 %v3377, 4.6183476
        %v3410 = vmul.f32 %v3378, 4.6183476
        %v3411 = vmul.f32 %v3379, 4.6183476
        %v3412 = vmul.f32 %v3380, 4.6183476
        %v3413 = vmul.f32 %v3381, 4.6183476
        %v3414 = vmul.f32 %v3382, 4.6183476
        %v3415 = vmul.f32 %v3383, 4.6183476
        %v3416 = vmul.f32 %v3384, 4.6183476
        %v3417 = vmul.f32 %v3385, 4.6183476
        %v3418 = vmul.f32 %v3386, 4.6183476
        %v3419 = vmul.f32 %v3387, 4.6183476
        %v3420 = vmul.f32 %v3388, 4.6183476
        %v3421 = vmul.f32 %v3389, 4.6183476
        %v3422 = vmul.f32 %v3390, 4.6183476
        %v3423 = vmul.f32 %v3391, 4.6183476
        %v3424 = vmul.f32 %v3392, 4.6183476
        %v3425 = vmul.f32 %v3393, 4.6183476
        %v3426 = vmul.f32 %v3394, 4.6183476
        %v3427 = vmul.f32 %v3395, 4.6183476
        %v3428 = vmul.f32 %v3396, 4.6183476
        %v3429 = vadd.f32 %v3237, %v3397
        %v3430 = vadd.f32 %v3238, %v3398
        %v3431 = vadd.f32 %v3239, %v3399
        %v3432 = vadd.f32 %v3240, %v3400
        %v3433 = vadd.f32 %v3241, %v3401
        %v3434 = vadd.f32 %v3242, %v3402
        %v3435 = vadd.f32 %v3243, %v3403
        %v3436 = vadd.f32 %v3244, %v3404
        %v3437 = vadd.f32 %v3245, %v3405
        %v3438 = vadd.f32 %v3246, %v3406
        %v3439 = vadd.f32 %v3247, %v3407
        %v3440 = vadd.f32 %v3248, %v3408
        %v3441 = vadd.f32 %v3249, %v3409
        %v3442 = vadd.f32 %v3250, %v3410
        %v3443 = vadd.f32 %v3251, %v3411
        %v3444 = vadd.f32 %v3252, %v3412
        %v3445 = vadd.f32 %v3253, %v3413
        %v3446 = vadd.f32 %v3254, %v3414
        %v3447 = vadd.f32 %v3255, %v3415
        %v3448 = vadd.f32 %v3256, %v3416
        %v3449 = vadd.f32 %v3257, %v3417
        %v3450 = vadd.f32 %v3258, %v3418
        %v3451 = vadd.f32 %v3259, %v3419
        %v3452 = vadd.f32 %v3260, %v3420
        %v3453 = vadd.f32 %v3261, %v3421
        %v3454 = vadd.f32 %v3262, %v3422
        %v3455 = vadd.f32 %v3263, %v3423
        %v3456 = vadd.f32 %v3264, %v3424
        %v3457 = vadd.f32 %v3265, %v3425
        %v3458 = vadd.f32 %v3266, %v3426
        %v3459 = vadd.f32 %v3267, %v3427
        %v3460 = vadd.f32 %v3268, %v3428
        %v3461 = vmul.f32 %v229, 18.0
        %v3462 = vmul.f32 %v230, 18.0
        %v3463 = vmul.f32 %v231, 18.0
        %v3464 = vmul.f32 %v232, 18.0
        %v3465 = vmul.f32 %v233, 18.0
        %v3466 = vmul.f32 %v234, 18.0
        %v3467 = vmul.f32 %v235, 18.0
        %v3468 = vmul.f32 %v236, 18.0
        %v3469 = vmul.f32 %v237, 18.0
        %v3470 = vmul.f32 %v238, 18.0
        %v3471 = vmul.f32 %v239, 18.0
        %v3472 = vmul.f32 %v240, 18.0
        %v3473 = vmul.f32 %v241, 18.0
        %v3474 = vmul.f32 %v242, 18.0
        %v3475 = vmul.f32 %v243, 18.0
        %v3476 = vmul.f32 %v244, 18.0
        %v3477 = vmul.f32 %v245, 18.0
        %v3478 = vmul.f32 %v246, 18.0
        %v3479 = vmul.f32 %v247, 18.0
        %v3480 = vmul.f32 %v248, 18.0
        %v3481 = vmul.f32 %v249, 18.0
        %v3482 = vmul.f32 %v250, 18.0
        %v3483 = vmul.f32 %v251, 18.0
        %v3484 = vmul.f32 %v252, 18.0
        %v3485 = vmul.f32 %v253, 18.0
        %v3486 = vmul.f32 %v254, 18.0
        %v3487 = vmul.f32 %v255, 18.0
        %v3488 = vmul.f32 %v256, 18.0
        %v3489 = vmul.f32 %v257, 18.0
        %v3490 = vmul.f32 %v258, 18.0
        %v3491 = vmul.f32 %v259, 18.0
        %v3492 = vmul.f32 %v260, 18.0
        %v3493 = vsub.f32 %v161, %v3461
        %v3494 = vsub.f32 %v162, %v3462
        %v3495 = vsub.f32 %v163, %v3463
        %v3496 = vsub.f32 %v164, %v3464
        %v3497 = vsub.f32 %v165, %v3465
        %v3498 = vsub.f32 %v166, %v3466
        %v3499 = vsub.f32 %v167, %v3467
        %v3500 = vsub.f32 %v168, %v3468
        %v3501 = vsub.f32 %v169, %v3469
        %v3502 = vsub.f32 %v170, %v3470
        %v3503 = vsub.f32 %v171, %v3471
        %v3504 = vsub.f32 %v172, %v3472
        %v3505 = vsub.f32 %v173, %v3473
        %v3506 = vsub.f32 %v174, %v3474
        %v3507 = vsub.f32 %v175, %v3475
        %v3508 = vsub.f32 %v176, %v3476
        %v3509 = vsub.f32 %v177, %v3477
        %v3510 = vsub.f32 %v178, %v3478
        %v3511 = vsub.f32 %v179, %v3479
        %v3512 = vsub.f32 %v180, %v3480
        %v3513 = vsub.f32 %v181, %v3481
        %v3514 = vsub.f32 %v182, %v3482
        %v3515 = vsub.f32 %v183, %v3483
        %v3516 = vsub.f32 %v184, %v3484
        %v3517 = vsub.f32 %v185, %v3485
        %v3518 = vsub.f32 %v186, %v3486
        %v3519 = vsub.f32 %v187, %v3487
        %v3520 = vsub.f32 %v188, %v3488
        %v3521 = vsub.f32 %v189, %v3489
        %v3522 = vsub.f32 %v190, %v3490
        %v3523 = vsub.f32 %v191, %v3491
        %v3524 = vsub.f32 %v192, %v3492
        %v3525 = vmax.f32 %v3493, 0.0
        %v3526 = vmax.f32 %v3494, 0.0
        %v3527 = vmax.f32 %v3495, 0.0
        %v3528 = vmax.f32 %v3496, 0.0
        %v3529 = vmax.f32 %v3497, 0.0
        %v3530 = vmax.f32 %v3498, 0.0
        %v3531 = vmax.f32 %v3499, 0.0
        %v3532 = vmax.f32 %v3500, 0.0
        %v3533 = vmax.f32 %v3501, 0.0
        %v3534 = vmax.f32 %v3502, 0.0
        %v3535 = vmax.f32 %v3503, 0.0
        %v3536 = vmax.f32 %v3504, 0.0
        %v3537 = vmax.f32 %v3505, 0.0
        %v3538 = vmax.f32 %v3506, 0.0
        %v3539 = vmax.f32 %v3507, 0.0
        %v3540 = vmax.f32 %v3508, 0.0
        %v3541 = vmax.f32 %v3509, 0.0
        %v3542 = vmax.f32 %v3510, 0.0
        %v3543 = vmax.f32 %v3511, 0.0
        %v3544 = vmax.f32 %v3512, 0.0
        %v3545 = vmax.f32 %v3513, 0.0
        %v3546 = vmax.f32 %v3514, 0.0
        %v3547 = vmax.f32 %v3515, 0.0
        %v3548 = vmax.f32 %v3516, 0.0
        %v3549 = vmax.f32 %v3517, 0.0
        %v3550 = vmax.f32 %v3518, 0.0
        %v3551 = vmax.f32 %v3519, 0.0
        %v3552 = vmax.f32 %v3520, 0.0
        %v3553 = vmax.f32 %v3521, 0.0
        %v3554 = vmax.f32 %v3522, 0.0
        %v3555 = vmax.f32 %v3523, 0.0
        %v3556 = vmax.f32 %v3524, 0.0
        %v3557 = vsub.f32 %v3333, %v3525
        %v3558 = vsub.f32 %v3334, %v3526
        %v3559 = vsub.f32 %v3335, %v3527
        %v3560 = vsub.f32 %v3336, %v3528
        %v3561 = vsub.f32 %v3337, %v3529
        %v3562 = vsub.f32 %v3338, %v3530
        %v3563 = vsub.f32 %v3339, %v3531
        %v3564 = vsub.f32 %v3340, %v3532
        %v3565 = vsub.f32 %v3341, %v3533
        %v3566 = vsub.f32 %v3342, %v3534
        %v3567 = vsub.f32 %v3343, %v3535
        %v3568 = vsub.f32 %v3344, %v3536
        %v3569 = vsub.f32 %v3345, %v3537
        %v3570 = vsub.f32 %v3346, %v3538
        %v3571 = vsub.f32 %v3347, %v3539
        %v3572 = vsub.f32 %v3348, %v3540
        %v3573 = vsub.f32 %v3349, %v3541
        %v3574 = vsub.f32 %v3350, %v3542
        %v3575 = vsub.f32 %v3351, %v3543
        %v3576 = vsub.f32 %v3352, %v3544
        %v3577 = vsub.f32 %v3353, %v3545
        %v3578 = vsub.f32 %v3354, %v3546
        %v3579 = vsub.f32 %v3355, %v3547
        %v3580 = vsub.f32 %v3356, %v3548
        %v3581 = vsub.f32 %v3357, %v3549
        %v3582 = vsub.f32 %v3358, %v3550
        %v3583 = vsub.f32 %v3359, %v3551
        %v3584 = vsub.f32 %v3360, %v3552
        %v3585 = vsub.f32 %v3361, %v3553
        %v3586 = vsub.f32 %v3362, %v3554
        %v3587 = vsub.f32 %v3363, %v3555
        %v3588 = vsub.f32 %v3364, %v3556
        %v3589 = vmul.f32 %v3557, -4.7541814
        %v3590 = vmul.f32 %v3558, -4.7541814
        %v3591 = vmul.f32 %v3559, -4.7541814
        %v3592 = vmul.f32 %v3560, -4.7541814
        %v3593 = vmul.f32 %v3561, -4.7541814
        %v3594 = vmul.f32 %v3562, -4.7541814
        %v3595 = vmul.f32 %v3563, -4.7541814
        %v3596 = vmul.f32 %v3564, -4.7541814
        %v3597 = vmul.f32 %v3565, -4.7541814
        %v3598 = vmul.f32 %v3566, -4.7541814
        %v3599 = vmul.f32 %v3567, -4.7541814
        %v3600 = vmul.f32 %v3568, -4.7541814
        %v3601 = vmul.f32 %v3569, -4.7541814
        %v3602 = vmul.f32 %v3570, -4.7541814
        %v3603 = vmul.f32 %v3571, -4.7541814
        %v3604 = vmul.f32 %v3572, -4.7541814
        %v3605 = vmul.f32 %v3573, -4.7541814
        %v3606 = vmul.f32 %v3574, -4.7541814
        %v3607 = vmul.f32 %v3575, -4.7541814
        %v3608 = vmul.f32 %v3576, -4.7541814
        %v3609 = vmul.f32 %v3577, -4.7541814
        %v3610 = vmul.f32 %v3578, -4.7541814
        %v3611 = vmul.f32 %v3579, -4.7541814
        %v3612 = vmul.f32 %v3580, -4.7541814
        %v3613 = vmul.f32 %v3581, -4.7541814
        %v3614 = vmul.f32 %v3582, -4.7541814
        %v3615 = vmul.f32 %v3583, -4.7541814
        %v3616 = vmul.f32 %v3584, -4.7541814
        %v3617 = vmul.f32 %v3585, -4.7541814
        %v3618 = vmul.f32 %v3586, -4.7541814
        %v3619 = vmul.f32 %v3587, -4.7541814
        %v3620 = vmul.f32 %v3588, -4.7541814
        %v3621 = vadd.f32 %v3429, %v3589
        %v3622 = vadd.f32 %v3430, %v3590
        %v3623 = vadd.f32 %v3431, %v3591
        %v3624 = vadd.f32 %v3432, %v3592
        %v3625 = vadd.f32 %v3433, %v3593
        %v3626 = vadd.f32 %v3434, %v3594
        %v3627 = vadd.f32 %v3435, %v3595
        %v3628 = vadd.f32 %v3436, %v3596
        %v3629 = vadd.f32 %v3437, %v3597
        %v3630 = vadd.f32 %v3438, %v3598
        %v3631 = vadd.f32 %v3439, %v3599
        %v3632 = vadd.f32 %v3440, %v3600
        %v3633 = vadd.f32 %v3441, %v3601
        %v3634 = vadd.f32 %v3442, %v3602
        %v3635 = vadd.f32 %v3443, %v3603
        %v3636 = vadd.f32 %v3444, %v3604
        %v3637 = vadd.f32 %v3445, %v3605
        %v3638 = vadd.f32 %v3446, %v3606
        %v3639 = vadd.f32 %v3447, %v3607
        %v3640 = vadd.f32 %v3448, %v3608
        %v3641 = vadd.f32 %v3449, %v3609
        %v3642 = vadd.f32 %v3450, %v3610
        %v3643 = vadd.f32 %v3451, %v3611
        %v3644 = vadd.f32 %v3452, %v3612
        %v3645 = vadd.f32 %v3453, %v3613
        %v3646 = vadd.f32 %v3454, %v3614
        %v3647 = vadd.f32 %v3455, %v3615
        %v3648 = vadd.f32 %v3456, %v3616
        %v3649 = vadd.f32 %v3457, %v3617
        %v3650 = vadd.f32 %v3458, %v3618
        %v3651 = vadd.f32 %v3459, %v3619
        %v3652 = vadd.f32 %v3460, %v3620
        %v3653 = vmul.f32 %v229, 19.0
        %v3654 = vmul.f32 %v230, 19.0
        %v3655 = vmul.f32 %v231, 19.0
        %v3656 = vmul.f32 %v232, 19.0
        %v3657 = vmul.f32 %v233, 19.0
        %v3658 = vmul.f32 %v234, 19.0
        %v3659 = vmul.f32 %v235, 19.0
        %v3660 = vmul.f32 %v236, 19.0
        %v3661 = vmul.f32 %v237, 19.0
        %v3662 = vmul.f32 %v238, 19.0
        %v3663 = vmul.f32 %v239, 19.0
        %v3664 = vmul.f32 %v240, 19.0
        %v3665 = vmul.f32 %v241, 19.0
        %v3666 = vmul.f32 %v242, 19.0
        %v3667 = vmul.f32 %v243, 19.0
        %v3668 = vmul.f32 %v244, 19.0
        %v3669 = vmul.f32 %v245, 19.0
        %v3670 = vmul.f32 %v246, 19.0
        %v3671 = vmul.f32 %v247, 19.0
        %v3672 = vmul.f32 %v248, 19.0
        %v3673 = vmul.f32 %v249, 19.0
        %v3674 = vmul.f32 %v250, 19.0
        %v3675 = vmul.f32 %v251, 19.0
        %v3676 = vmul.f32 %v252, 19.0
        %v3677 = vmul.f32 %v253, 19.0
        %v3678 = vmul.f32 %v254, 19.0
        %v3679 = vmul.f32 %v255, 19.0
        %v3680 = vmul.f32 %v256, 19.0
        %v3681 = vmul.f32 %v257, 19.0
        %v3682 = vmul.f32 %v258, 19.0
        %v3683 = vmul.f32 %v259, 19.0
        %v3684 = vmul.f32 %v260, 19.0
        %v3685 = vsub.f32 %v161, %v3653
        %v3686 = vsub.f32 %v162, %v3654
        %v3687 = vsub.f32 %v163, %v3655
        %v3688 = vsub.f32 %v164, %v3656
        %v3689 = vsub.f32 %v165, %v3657
        %v3690 = vsub.f32 %v166, %v3658
        %v3691 = vsub.f32 %v167, %v3659
        %v3692 = vsub.f32 %v168, %v3660
        %v3693 = vsub.f32 %v169, %v3661
        %v3694 = vsub.f32 %v170, %v3662
        %v3695 = vsub.f32 %v171, %v3663
        %v3696 = vsub.f32 %v172, %v3664
        %v3697 = vsub.f32 %v173, %v3665
        %v3698 = vsub.f32 %v174, %v3666
        %v3699 = vsub.f32 %v175, %v3667
        %v3700 = vsub.f32 %v176, %v3668
        %v3701 = vsub.f32 %v177, %v3669
        %v3702 = vsub.f32 %v178, %v3670
        %v3703 = vsub.f32 %v179, %v3671
        %v3704 = vsub.f32 %v180, %v3672
        %v3705 = vsub.f32 %v181, %v3673
        %v3706 = vsub.f32 %v182, %v3674
        %v3707 = vsub.f32 %v183, %v3675
        %v3708 = vsub.f32 %v184, %v3676
        %v3709 = vsub.f32 %v185, %v3677
        %v3710 = vsub.f32 %v186, %v3678
        %v3711 = vsub.f32 %v187, %v3679
        %v3712 = vsub.f32 %v188, %v3680
        %v3713 = vsub.f32 %v189, %v3681
        %v3714 = vsub.f32 %v190, %v3682
        %v3715 = vsub.f32 %v191, %v3683
        %v3716 = vsub.f32 %v192, %v3684
        %v3717 = vmax.f32 %v3685, 0.0
        %v3718 = vmax.f32 %v3686, 0.0
        %v3719 = vmax.f32 %v3687, 0.0
        %v3720 = vmax.f32 %v3688, 0.0
        %v3721 = vmax.f32 %v3689, 0.0
        %v3722 = vmax.f32 %v3690, 0.0
        %v3723 = vmax.f32 %v3691, 0.0
        %v3724 = vmax.f32 %v3692, 0.0
        %v3725 = vmax.f32 %v3693, 0.0
        %v3726 = vmax.f32 %v3694, 0.0
        %v3727 = vmax.f32 %v3695, 0.0
        %v3728 = vmax.f32 %v3696, 0.0
        %v3729 = vmax.f32 %v3697, 0.0
        %v3730 = vmax.f32 %v3698, 0.0
        %v3731 = vmax.f32 %v3699, 0.0
        %v3732 = vmax.f32 %v3700, 0.0
        %v3733 = vmax.f32 %v3701, 0.0
        %v3734 = vmax.f32 %v3702, 0.0
        %v3735 = vmax.f32 %v3703, 0.0
        %v3736 = vmax.f32 %v3704, 0.0
        %v3737 = vmax.f32 %v3705, 0.0
        %v3738 = vmax.f32 %v3706, 0.0
        %v3739 = vmax.f32 %v3707, 0.0
        %v3740 = vmax.f32 %v3708, 0.0
        %v3741 = vmax.f32 %v3709, 0.0
        %v3742 = vmax.f32 %v3710, 0.0
        %v3743 = vmax.f32 %v3711, 0.0
        %v3744 = vmax.f32 %v3712, 0.0
        %v3745 = vmax.f32 %v3713, 0.0
        %v3746 = vmax.f32 %v3714, 0.0
        %v3747 = vmax.f32 %v3715, 0.0
        %v3748 = vmax.f32 %v3716, 0.0
        %v3749 = vsub.f32 %v3525, %v3717
        %v3750 = vsub.f32 %v3526, %v3718
        %v3751 = vsub.f32 %v3527, %v3719
        %v3752 = vsub.f32 %v3528, %v3720
        %v3753 = vsub.f32 %v3529, %v3721
        %v3754 = vsub.f32 %v3530, %v3722
        %v3755 = vsub.f32 %v3531, %v3723
        %v3756 = vsub.f32 %v3532, %v3724
        %v3757 = vsub.f32 %v3533, %v3725
        %v3758 = vsub.f32 %v3534, %v3726
        %v3759 = vsub.f32 %v3535, %v3727
        %v3760 = vsub.f32 %v3536, %v3728
        %v3761 = vsub.f32 %v3537, %v3729
        %v3762 = vsub.f32 %v3538, %v3730
        %v3763 = vsub.f32 %v3539, %v3731
        %v3764 = vsub.f32 %v3540, %v3732
        %v3765 = vsub.f32 %v3541, %v3733
        %v3766 = vsub.f32 %v3542, %v3734
        %v3767 = vsub.f32 %v3543, %v3735
        %v3768 = vsub.f32 %v3544, %v3736
        %v3769 = vsub.f32 %v3545, %v3737
        %v3770 = vsub.f32 %v3546, %v3738
        %v3771 = vsub.f32 %v3547, %v3739
        %v3772 = vsub.f32 %v3548, %v3740
        %v3773 = vsub.f32 %v3549, %v3741
        %v3774 = vsub.f32 %v3550, %v3742
        %v3775 = vsub.f32 %v3551, %v3743
        %v3776 = vsub.f32 %v3552, %v3744
        %v3777 = vsub.f32 %v3553, %v3745
        %v3778 = vsub.f32 %v3554, %v3746
        %v3779 = vsub.f32 %v3555, %v3747
        %v3780 = vsub.f32 %v3556, %v3748
        %v3781 = vmul.f32 %v3749, 4.8862424
        %v3782 = vmul.f32 %v3750, 4.8862424
        %v3783 = vmul.f32 %v3751, 4.8862424
        %v3784 = vmul.f32 %v3752, 4.8862424
        %v3785 = vmul.f32 %v3753, 4.8862424
        %v3786 = vmul.f32 %v3754, 4.8862424
        %v3787 = vmul.f32 %v3755, 4.8862424
        %v3788 = vmul.f32 %v3756, 4.8862424
        %v3789 = vmul.f32 %v3757, 4.8862424
        %v3790 = vmul.f32 %v3758, 4.8862424
        %v3791 = vmul.f32 %v3759, 4.8862424
        %v3792 = vmul.f32 %v3760, 4.8862424
        %v3793 = vmul.f32 %v3761, 4.8862424
        %v3794 = vmul.f32 %v3762, 4.8862424
        %v3795 = vmul.f32 %v3763, 4.8862424
        %v3796 = vmul.f32 %v3764, 4.8862424
        %v3797 = vmul.f32 %v3765, 4.8862424
        %v3798 = vmul.f32 %v3766, 4.8862424
        %v3799 = vmul.f32 %v3767, 4.8862424
        %v3800 = vmul.f32 %v3768, 4.8862424
        %v3801 = vmul.f32 %v3769, 4.8862424
        %v3802 = vmul.f32 %v3770, 4.8862424
        %v3803 = vmul.f32 %v3771, 4.8862424
        %v3804 = vmul.f32 %v3772, 4.8862424
        %v3805 = vmul.f32 %v3773, 4.8862424
        %v3806 = vmul.f32 %v3774, 4.8862424
        %v3807 = vmul.f32 %v3775, 4.8862424
        %v3808 = vmul.f32 %v3776, 4.8862424
        %v3809 = vmul.f32 %v3777, 4.8862424
        %v3810 = vmul.f32 %v3778, 4.8862424
        %v3811 = vmul.f32 %v3779, 4.8862424
        %v3812 = vmul.f32 %v3780, 4.8862424
        %v3813 = vadd.f32 %v3621, %v3781
        %v3814 = vadd.f32 %v3622, %v3782
        %v3815 = vadd.f32 %v3623, %v3783
        %v3816 = vadd.f32 %v3624, %v3784
        %v3817 = vadd.f32 %v3625, %v3785
        %v3818 = vadd.f32 %v3626, %v3786
        %v3819 = vadd.f32 %v3627, %v3787
        %v3820 = vadd.f32 %v3628, %v3788
        %v3821 = vadd.f32 %v3629, %v3789
        %v3822 = vadd.f32 %v3630, %v3790
        %v3823 = vadd.f32 %v3631, %v3791
        %v3824 = vadd.f32 %v3632, %v3792
        %v3825 = vadd.f32 %v3633, %v3793
        %v3826 = vadd.f32 %v3634, %v3794
        %v3827 = vadd.f32 %v3635, %v3795
        %v3828 = vadd.f32 %v3636, %v3796
        %v3829 = vadd.f32 %v3637, %v3797
        %v3830 = vadd.f32 %v3638, %v3798
        %v3831 = vadd.f32 %v3639, %v3799
        %v3832 = vadd.f32 %v3640, %v3800
        %v3833 = vadd.f32 %v3641, %v3801
        %v3834 = vadd.f32 %v3642, %v3802
        %v3835 = vadd.f32 %v3643, %v3803
        %v3836 = vadd.f32 %v3644, %v3804
        %v3837 = vadd.f32 %v3645, %v3805
        %v3838 = vadd.f32 %v3646, %v3806
        %v3839 = vadd.f32 %v3647, %v3807
        %v3840 = vadd.f32 %v3648, %v3808
        %v3841 = vadd.f32 %v3649, %v3809
        %v3842 = vadd.f32 %v3650, %v3810
        %v3843 = vadd.f32 %v3651, %v3811
        %v3844 = vadd.f32 %v3652, %v3812
        %v3845 = vmul.f32 %v229, 20.0
        %v3846 = vmul.f32 %v230, 20.0
        %v3847 = vmul.f32 %v231, 20.0
        %v3848 = vmul.f32 %v232, 20.0
        %v3849 = vmul.f32 %v233, 20.0
        %v3850 = vmul.f32 %v234, 20.0
        %v3851 = vmul.f32 %v235, 20.0
        %v3852 = vmul.f32 %v236, 20.0
        %v3853 = vmul.f32 %v237, 20.0
        %v3854 = vmul.f32 %v238, 20.0
        %v3855 = vmul.f32 %v239, 20.0
        %v3856 = vmul.f32 %v240, 20.0
        %v3857 = vmul.f32 %v241, 20.0
        %v3858 = vmul.f32 %v242, 20.0
        %v3859 = vmul.f32 %v243, 20.0
        %v3860 = vmul.f32 %v244, 20.0
        %v3861 = vmul.f32 %v245, 20.0
        %v3862 = vmul.f32 %v246, 20.0
        %v3863 = vmul.f32 %v247, 20.0
        %v3864 = vmul.f32 %v248, 20.0
        %v3865 = vmul.f32 %v249, 20.0
        %v3866 = vmul.f32 %v250, 20.0
        %v3867 = vmul.f32 %v251, 20.0
        %v3868 = vmul.f32 %v252, 20.0
        %v3869 = vmul.f32 %v253, 20.0
        %v3870 = vmul.f32 %v254, 20.0
        %v3871 = vmul.f32 %v255, 20.0
        %v3872 = vmul.f32 %v256, 20.0
        %v3873 = vmul.f32 %v257, 20.0
        %v3874 = vmul.f32 %v258, 20.0
        %v3875 = vmul.f32 %v259, 20.0
        %v3876 = vmul.f32 %v260, 20.0
        %v3877 = vsub.f32 %v161, %v3845
        %v3878 = vsub.f32 %v162, %v3846
        %v3879 = vsub.f32 %v163, %v3847
        %v3880 = vsub.f32 %v164, %v3848
        %v3881 = vsub.f32 %v165, %v3849
        %v3882 = vsub.f32 %v166, %v3850
        %v3883 = vsub.f32 %v167, %v3851
        %v3884 = vsub.f32 %v168, %v3852
        %v3885 = vsub.f32 %v169, %v3853
        %v3886 = vsub.f32 %v170, %v3854
        %v3887 = vsub.f32 %v171, %v3855
        %v3888 = vsub.f32 %v172, %v3856
        %v3889 = vsub.f32 %v173, %v3857
        %v3890 = vsub.f32 %v174, %v3858
        %v3891 = vsub.f32 %v175, %v3859
        %v3892 = vsub.f32 %v176, %v3860
        %v3893 = vsub.f32 %v177, %v3861
        %v3894 = vsub.f32 %v178, %v3862
        %v3895 = vsub.f32 %v179, %v3863
        %v3896 = vsub.f32 %v180, %v3864
        %v3897 = vsub.f32 %v181, %v3865
        %v3898 = vsub.f32 %v182, %v3866
        %v3899 = vsub.f32 %v183, %v3867
        %v3900 = vsub.f32 %v184, %v3868
        %v3901 = vsub.f32 %v185, %v3869
        %v3902 = vsub.f32 %v186, %v3870
        %v3903 = vsub.f32 %v187, %v3871
        %v3904 = vsub.f32 %v188, %v3872
        %v3905 = vsub.f32 %v189, %v3873
        %v3906 = vsub.f32 %v190, %v3874
        %v3907 = vsub.f32 %v191, %v3875
        %v3908 = vsub.f32 %v192, %v3876
        %v3909 = vmax.f32 %v3877, 0.0
        %v3910 = vmax.f32 %v3878, 0.0
        %v3911 = vmax.f32 %v3879, 0.0
        %v3912 = vmax.f32 %v3880, 0.0
        %v3913 = vmax.f32 %v3881, 0.0
        %v3914 = vmax.f32 %v3882, 0.0
        %v3915 = vmax.f32 %v3883, 0.0
        %v3916 = vmax.f32 %v3884, 0.0
        %v3917 = vmax.f32 %v3885, 0.0
        %v3918 = vmax.f32 %v3886, 0.0
        %v3919 = vmax.f32 %v3887, 0.0
        %v3920 = vmax.f32 %v3888, 0.0
        %v3921 = vmax.f32 %v3889, 0.0
        %v3922 = vmax.f32 %v3890, 0.0
        %v3923 = vmax.f32 %v3891, 0.0
        %v3924 = vmax.f32 %v3892, 0.0
        %v3925 = vmax.f32 %v3893, 0.0
        %v3926 = vmax.f32 %v3894, 0.0
        %v3927 = vmax.f32 %v3895, 0.0
        %v3928 = vmax.f32 %v3896, 0.0
        %v3929 = vmax.f32 %v3897, 0.0
        %v3930 = vmax.f32 %v3898, 0.0
        %v3931 = vmax.f32 %v3899, 0.0
        %v3932 = vmax.f32 %v3900, 0.0
        %v3933 = vmax.f32 %v3901, 0.0
        %v3934 = vmax.f32 %v3902, 0.0
        %v3935 = vmax.f32 %v3903, 0.0
        %v3936 = vmax.f32 %v3904, 0.0
        %v3937 = vmax.f32 %v3905, 0.0
        %v3938 = vmax.f32 %v3906, 0.0
        %v3939 = vmax.f32 %v3907, 0.0
        %v3940 = vmax.f32 %v3908, 0.0
        %v3941 = vsub.f32 %v3717, %v3909
        %v3942 = vsub.f32 %v3718, %v3910
        %v3943 = vsub.f32 %v3719, %v3911
        %v3944 = vsub.f32 %v3720, %v3912
        %v3945 = vsub.f32 %v3721, %v3913
        %v3946 = vsub.f32 %v3722, %v3914
        %v3947 = vsub.f32 %v3723, %v3915
        %v3948 = vsub.f32 %v3724, %v3916
        %v3949 = vsub.f32 %v3725, %v3917
        %v3950 = vsub.f32 %v3726, %v3918
        %v3951 = vsub.f32 %v3727, %v3919
        %v3952 = vsub.f32 %v3728, %v3920
        %v3953 = vsub.f32 %v3729, %v3921
        %v3954 = vsub.f32 %v3730, %v3922
        %v3955 = vsub.f32 %v3731, %v3923
        %v3956 = vsub.f32 %v3732, %v3924
        %v3957 = vsub.f32 %v3733, %v3925
        %v3958 = vsub.f32 %v3734, %v3926
        %v3959 = vsub.f32 %v3735, %v3927
        %v3960 = vsub.f32 %v3736, %v3928
        %v3961 = vsub.f32 %v3737, %v3929
        %v3962 = vsub.f32 %v3738, %v3930
        %v3963 = vsub.f32 %v3739, %v3931
        %v3964 = vsub.f32 %v3740, %v3932
        %v3965 = vsub.f32 %v3741, %v3933
        %v3966 = vsub.f32 %v3742, %v3934
        %v3967 = vsub.f32 %v3743, %v3935
        %v3968 = vsub.f32 %v3744, %v3936
        %v3969 = vsub.f32 %v3745, %v3937
        %v3970 = vsub.f32 %v3746, %v3938
        %v3971 = vsub.f32 %v3747, %v3939
        %v3972 = vsub.f32 %v3748, %v3940
        %v3973 = vmul.f32 %v3941, -5.0148277
        %v3974 = vmul.f32 %v3942, -5.0148277
        %v3975 = vmul.f32 %v3943, -5.0148277
        %v3976 = vmul.f32 %v3944, -5.0148277
        %v3977 = vmul.f32 %v3945, -5.0148277
        %v3978 = vmul.f32 %v3946, -5.0148277
        %v3979 = vmul.f32 %v3947, -5.0148277
        %v3980 = vmul.f32 %v3948, -5.0148277
        %v3981 = vmul.f32 %v3949, -5.0148277
        %v3982 = vmul.f32 %v3950, -5.0148277
        %v3983 = vmul.f32 %v3951, -5.0148277
        %v3984 = vmul.f32 %v3952, -5.0148277
        %v3985 = vmul.f32 %v3953, -5.0148277
        %v3986 = vmul.f32 %v3954, -5.0148277
        %v3987 = vmul.f32 %v3955, -5.0148277
        %v3988 = vmul.f32 %v3956, -5.0148277
        %v3989 = vmul.f32 %v3957, -5.0148277
        %v3990 = vmul.f32 %v3958, -5.0148277
        %v3991 = vmul.f32 %v3959, -5.0148277
        %v3992 = vmul.f32 %v3960, -5.0148277
        %v3993 = vmul.f32 %v3961, -5.0148277
        %v3994 = vmul.f32 %v3962, -5.0148277
        %v3995 = vmul.f32 %v3963, -5.0148277
        %v3996 = vmul.f32 %v3964, -5.0148277
        %v3997 = vmul.f32 %v3965, -5.0148277
        %v3998 = vmul.f32 %v3966, -5.0148277
        %v3999 = vmul.f32 %v3967, -5.0148277
        %v4000 = vmul.f32 %v3968, -5.0148277
        %v4001 = vmul.f32 %v3969, -5.0148277
        %v4002 = vmul.f32 %v3970, -5.0148277
        %v4003 = vmul.f32 %v3971, -5.0148277
        %v4004 = vmul.f32 %v3972, -5.0148277
        %v4005 = vadd.f32 %v3813, %v3973
        %v4006 = vadd.f32 %v3814, %v3974
        %v4007 = vadd.f32 %v3815, %v3975
        %v4008 = vadd.f32 %v3816, %v3976
        %v4009 = vadd.f32 %v3817, %v3977
        %v4010 = vadd.f32 %v3818, %v3978
        %v4011 = vadd.f32 %v3819, %v3979
        %v4012 = vadd.f32 %v3820, %v3980
        %v4013 = vadd.f32 %v3821, %v3981
        %v4014 = vadd.f32 %v3822, %v3982
        %v4015 = vadd.f32 %v3823, %v3983
        %v4016 = vadd.f32 %v3824, %v3984
        %v4017 = vadd.f32 %v3825, %v3985
        %v4018 = vadd.f32 %v3826, %v3986
        %v4019 = vadd.f32 %v3827, %v3987
        %v4020 = vadd.f32 %v3828, %v3988
        %v4021 = vadd.f32 %v3829, %v3989
        %v4022 = vadd.f32 %v3830, %v3990
        %v4023 = vadd.f32 %v3831, %v3991
        %v4024 = vadd.f32 %v3832, %v3992
        %v4025 = vadd.f32 %v3833, %v3993
        %v4026 = vadd.f32 %v3834, %v3994
        %v4027 = vadd.f32 %v3835, %v3995
        %v4028 = vadd.f32 %v3836, %v3996
        %v4029 = vadd.f32 %v3837, %v3997
        %v4030 = vadd.f32 %v3838, %v3998
        %v4031 = vadd.f32 %v3839, %v3999
        %v4032 = vadd.f32 %v3840, %v4000
        %v4033 = vadd.f32 %v3841, %v4001
        %v4034 = vadd.f32 %v3842, %v4002
        %v4035 = vadd.f32 %v3843, %v4003
        %v4036 = vadd.f32 %v3844, %v4004
        %v4037 = vrcp.pop %v229
        %v4038 = vrcp.pop %v230
        %v4039 = vrcp.pop %v231
        %v4040 = vrcp.pop %v232
        %v4041 = vrcp.pop %v233
        %v4042 = vrcp.pop %v234
        %v4043 = vrcp.pop %v235
        %v4044 = vrcp.pop %v236
        %v4045 = vrcp.pop %v237
        %v4046 = vrcp.pop %v238
        %v4047 = vrcp.pop %v239
        %v4048 = vrcp.pop %v240
        %v4049 = vrcp.pop %v241
        %v4050 = vrcp.pop %v242
        %v4051 = vrcp.pop %v243
        %v4052 = vrcp.pop %v244
        %v4053 = vrcp.pop %v245
        %v4054 = vrcp.pop %v246
        %v4055 = vrcp.pop %v247
        %v4056 = vrcp.pop %v248
        %v4057 = vrcp.pop %v249
        %v4058 = vrcp.pop %v250
        %v4059 = vrcp.pop %v251
        %v4060 = vrcp.pop %v252
        %v4061 = vrcp.pop %v253
        %v4062 = vrcp.pop %v254
        %v4063 = vrcp.pop %v255
        %v4064 = vrcp.pop %v256
        %v4065 = vrcp.pop %v257
        %v4066 = vrcp.pop %v258
        %v4067 = vrcp.pop %v259
        %v4068 = vrcp.pop %v260
        %v4069 = vmul.f32 %v229, %v4037
        %v4070 = vmul.f32 %v230, %v4038
        %v4071 = vmul.f32 %v231, %v4039
        %v4072 = vmul.f32 %v232, %v4040
        %v4073 = vmul.f32 %v233, %v4041
        %v4074 = vmul.f32 %v234, %v4042
        %v4075 = vmul.f32 %v235, %v4043
        %v4076 = vmul.f32 %v236, %v4044
        %v4077 = vmul.f32 %v237, %v4045
        %v4078 = vmul.f32 %v238, %v4046
        %v4079 = vmul.f32 %v239, %v4047
        %v4080 = vmul.f32 %v240, %v4048
        %v4081 = vmul.f32 %v241, %v4049
        %v4082 = vmul.f32 %v242, %v4050
        %v4083 = vmul.f32 %v243, %v4051
        %v4084 = vmul.f32 %v244, %v4052
        %v4085 = vmul.f32 %v245, %v4053
        %v4086 = vmul.f32 %v246, %v4054
        %v4087 = vmul.f32 %v247, %v4055
        %v4088 = vmul.f32 %v248, %v4056
        %v4089 = vmul.f32 %v249, %v4057
        %v4090 = vmul.f32 %v250, %v4058
        %v4091 = vmul.f32 %v251, %v4059
        %v4092 = vmul.f32 %v252, %v4060
        %v4093 = vmul.f32 %v253, %v4061
        %v4094 = vmul.f32 %v254, %v4062
        %v4095 = vmul.f32 %v255, %v4063
        %v4096 = vmul.f32 %v256, %v4064
        %v4097 = vmul.f32 %v257, %v4065
        %v4098 = vmul.f32 %v258, %v4066
        %v4099 = vmul.f32 %v259, %v4067
        %v4100 = vmul.f32 %v260, %v4068
        %v4101 = vsub.f32 2.0, %v4069
        %v4102 = vsub.f32 2.0, %v4070
        %v4103 = vsub.f32 2.0, %v4071
        %v4104 = vsub.f32 2.0, %v4072
        %v4105 = vsub.f32 2.0, %v4073
        %v4106 = vsub.f32 2.0, %v4074
        %v4107 = vsub.f32 2.0, %v4075
        %v4108 = vsub.f32 2.0, %v4076
        %v4109 = vsub.f32 2.0, %v4077
        %v4110 = vsub.f32 2.0, %v4078
        %v4111 = vsub.f32 2.0, %v4079
        %v4112 = vsub.f32 2.0, %v4080
        %v4113 = vsub.f32 2.0, %v4081
        %v4114 = vsub.f32 2.0, %v4082
        %v4115 = vsub.f32 2.0, %v4083
        %v4116 = vsub.f32 2.0, %v4084
        %v4117 = vsub.f32 2.0, %v4085
        %v4118 = vsub.f32 2.0, %v4086
        %v4119 = vsub.f32 2.0, %v4087
        %v4120 = vsub.f32 2.0, %v4088
        %v4121 = vsub.f32 2.0, %v4089
        %v4122 = vsub.f32 2.0, %v4090
        %v4123 = vsub.f32 2.0, %v4091
        %v4124 = vsub.f32 2.0, %v4092
        %v4125 = vsub.f32 2.0, %v4093
        %v4126 = vsub.f32 2.0, %v4094
        %v4127 = vsub.f32 2.0, %v4095
        %v4128 = vsub.f32 2.0, %v4096
        %v4129 = vsub.f32 2.0, %v4097
        %v4130 = vsub.f32 2.0, %v4098
        %v4131 = vsub.f32 2.0, %v4099
        %v4132 = vsub.f32 2.0, %v4100
        %v4133 = vmul.f32 %v4037, %v4101
        %v4134 = vmul.f32 %v4038, %v4102
        %v4135 = vmul.f32 %v4039, %v4103
        %v4136 = vmul.f32 %v4040, %v4104
        %v4137 = vmul.f32 %v4041, %v4105
        %v4138 = vmul.f32 %v4042, %v4106
        %v4139 = vmul.f32 %v4043, %v4107
        %v4140 = vmul.f32 %v4044, %v4108
        %v4141 = vmul.f32 %v4045, %v4109
        %v4142 = vmul.f32 %v4046, %v4110
        %v4143 = vmul.f32 %v4047, %v4111
        %v4144 = vmul.f32 %v4048, %v4112
        %v4145 = vmul.f32 %v4049, %v4113
        %v4146 = vmul.f32 %v4050, %v4114
        %v4147 = vmul.f32 %v4051, %v4115
        %v4148 = vmul.f32 %v4052, %v4116
        %v4149 = vmul.f32 %v4053, %v4117
        %v4150 = vmul.f32 %v4054, %v4118
        %v4151 = vmul.f32 %v4055, %v4119
        %v4152 = vmul.f32 %v4056, %v4120
        %v4153 = vmul.f32 %v4057, %v4121
        %v4154 = vmul.f32 %v4058, %v4122
        %v4155 = vmul.f32 %v4059, %v4123
        %v4156 = vmul.f32 %v4060, %v4124
        %v4157 = vmul.f32 %v4061, %v4125
        %v4158 = vmul.f32 %v4062, %v4126
        %v4159 = vmul.f32 %v4063, %v4127
        %v4160 = vmul.f32 %v4064, %v4128
        %v4161 = vmul.f32 %v4065, %v4129
        %v4162 = vmul.f32 %v4066, %v4130
        %v4163 = vmul.f32 %v4067, %v4131
        %v4164 = vmul.f32 %v4068, %v4132
        %v4165 = vmul.f32 %v4005, %v4133
        %v4166 = vmul.f32 %v4006, %v4134
        %v4167 = vmul.f32 %v4007, %v4135
        %v4168 = vmul.f32 %v4008, %v4136
        %v4169 = vmul.f32 %v4009, %v4137
        %v4170 = vmul.f32 %v4010, %v4138
        %v4171 = vmul.f32 %v4011, %v4139
        %v4172 = vmul.f32 %v4012, %v4140
        %v4173 = vmul.f32 %v4013, %v4141
        %v4174 = vmul.f32 %v4014, %v4142
        %v4175 = vmul.f32 %v4015, %v4143
        %v4176 = vmul.f32 %v4016, %v4144
        %v4177 = vmul.f32 %v4017, %v4145
        %v4178 = vmul.f32 %v4018, %v4146
        %v4179 = vmul.f32 %v4019, %v4147
        %v4180 = vmul.f32 %v4020, %v4148
        %v4181 = vmul.f32 %v4021, %v4149
        %v4182 = vmul.f32 %v4022, %v4150
        %v4183 = vmul.f32 %v4023, %v4151
        %v4184 = vmul.f32 %v4024, %v4152
        %v4185 = vmul.f32 %v4025, %v4153
        %v4186 = vmul.f32 %v4026, %v4154
        %v4187 = vmul.f32 %v4027, %v4155
        %v4188 = vmul.f32 %v4028, %v4156
        %v4189 = vmul.f32 %v4029, %v4157
        %v4190 = vmul.f32 %v4030, %v4158
        %v4191 = vmul.f32 %v4031, %v4159
        %v4192 = vmul.f32 %v4032, %v4160
        %v4193 = vmul.f32 %v4033, %v4161
        %v4194 = vmul.f32 %v4034, %v4162
        %v4195 = vmul.f32 %v4035, %v4163
        %v4196 = vmul.f32 %v4036, %v4164
        %v4197 = vadd.f32 %v261, %v4165
        %v4198 = vadd.f32 %v262, %v4166
        %v4199 = vadd.f32 %v263, %v4167
        %v4200 = vadd.f32 %v264, %v4168
        %v4201 = vadd.f32 %v265, %v4169
        %v4202 = vadd.f32 %v266, %v4170
        %v4203 = vadd.f32 %v267, %v4171
        %v4204 = vadd.f32 %v268, %v4172
        %v4205 = vadd.f32 %v269, %v4173
        %v4206 = vadd.f32 %v270, %v4174
        %v4207 = vadd.f32 %v271, %v4175
        %v4208 = vadd.f32 %v272, %v4176
        %v4209 = vadd.f32 %v273, %v4177
        %v4210 = vadd.f32 %v274, %v4178
        %v4211 = vadd.f32 %v275, %v4179
        %v4212 = vadd.f32 %v276, %v4180
        %v4213 = vadd.f32 %v277, %v4181
        %v4214 = vadd.f32 %v278, %v4182
        %v4215 = vadd.f32 %v279, %v4183
        %v4216 = vadd.f32 %v280, %v4184
        %v4217 = vadd.f32 %v281, %v4185
        %v4218 = vadd.f32 %v282, %v4186
        %v4219 = vadd.f32 %v283, %v4187
        %v4220 = vadd.f32 %v284, %v4188
        %v4221 = vadd.f32 %v285, %v4189
        %v4222 = vadd.f32 %v286, %v4190
        %v4223 = vadd.f32 %v287, %v4191
        %v4224 = vadd.f32 %v288, %v4192
        %v4225 = vadd.f32 %v289, %v4193
        %v4226 = vadd.f32 %v290, %v4194
        %v4227 = vadd.f32 %v291, %v4195
        %v4228 = vadd.f32 %v292, %v4196
        %4229 = vst [vmem:[%s159] sm:$0xff] %v4197
        %4230 = vst [vmem:[%s159 + $0x8] sm:$0xff] %v4198
        %4231 = vst [vmem:[%s159 + $0x10] sm:$0xff] %v4199
        %4232 = vst [vmem:[%s159 + $0x18] sm:$0xff] %v4200
        %4233 = vst [vmem:[%s159 + $0x20] sm:$0xff] %v4201
        %4234 = vst [vmem:[%s159 + $0x28] sm:$0xff] %v4202
        %4235 = vst [vmem:[%s159 + $0x30] sm:$0xff] %v4203
        %4236 = vst [vmem:[%s159 + $0x38] sm:$0xff] %v4204
        %4237 = vst [vmem:[%s159 + $0x40] sm:$0xff] %v4205
        %4238 = vst [vmem:[%s159 + $0x48] sm:$0xff] %v4206
        %4239 = vst [vmem:[%s159 + $0x50] sm:$0xff] %v4207
        %4240 = vst [vmem:[%s159 + $0x58] sm:$0xff] %v4208
        %4241 = vst [vmem:[%s159 + $0x60] sm:$0xff] %v4209
        %4242 = vst [vmem:[%s159 + $0x68] sm:$0xff] %v4210
        %4243 = vst [vmem:[%s159 + $0x70] sm:$0xff] %v4211
        %4244 = vst [vmem:[%s159 + $0x78] sm:$0xff] %v4212
        %4245 = vst [vmem:[%s159 + $0x80] sm:$0xff] %v4213
        %4246 = vst [vmem:[%s159 + $0x88] sm:$0xff] %v4214
        %4247 = vst [vmem:[%s159 + $0x90] sm:$0xff] %v4215
        %4248 = vst [vmem:[%s159 + $0x98] sm:$0xff] %v4216
        %4249 = vst [vmem:[%s159 + $0xa0] sm:$0xff] %v4217
        %4250 = vst [vmem:[%s159 + $0xa8] sm:$0xff] %v4218
        %4251 = vst [vmem:[%s159 + $0xb0] sm:$0xff] %v4219
        %4252 = vst [vmem:[%s159 + $0xb8] sm:$0xff] %v4220
        %4253 = vst [vmem:[%s159 + $0xc0] sm:$0xff] %v4221
        %4254 = vst [vmem:[%s159 + $0xc8] sm:$0xff] %v4222
        %4255 = vst [vmem:[%s159 + $0xd0] sm:$0xff] %v4223
        %4256 = vst [vmem:[%s159 + $0xd8] sm:$0xff] %v4224
        %4257 = vst [vmem:[%s159 + $0xe0] sm:$0xff] %v4225
        %4258 = vst [vmem:[%s159 + $0xe8] sm:$0xff] %v4226
        %4259 = vst [vmem:[%s159 + $0xf0] sm:$0xff] %v4227
        %4260 = vst [vmem:[%s159 + $0xf8] sm:$0xff] %v4228
        %s4261 = smul.u32 32, %s14
        %p4262 = scmp.lt.s32.totalorder %s4261, 63
        %s4263 = scalar_select %p4262, %s4261, 63
        %s4264 = smul.addr %s4263, 8
        %s4265 = scalar_lea.vmem %s2, %s4264
        // Predicated region
        $region33: #{caputo_fractional_activation.1} parent=27 // pred_check
          %p4266 = pneg %p79
        $region34: #{caputo_fractional_activation.1} parent=27 // pred_check_branch
          %4268 = sbr.rel (%p4266) target = $region36
        $region35: #{caputo_fractional_activation.1} parent=27 // pred_region
          %s4269 = smul.u32 32, %s14
        $region36: #{caputo_fractional_activation.1} parent=27 // pred_fallthru
          _
      $region28: #{caputo_fractional_activation.1} parent=5 // pred_fallthru
        _
      %p4270 = scmp.le.s32.totalorder 2, %s9
      // Predicated region
      $region37: #{caputo_fractional_activation.1} parent=5 // pred_check
        %p4271 = pneg %p4270
      $region38: #{caputo_fractional_activation.1} parent=5 // pred_check_branch
        %4273 = sbr.rel (%p4271) target = $region40
      $region39: #{caputo_fractional_activation.1} parent=5 // pred_region
        %s4274 = ssub.s32 %s9, 2
        // Predicated region
        $region41: #{caputo_fractional_activation.1} parent=39 // pred_check
          %p4275 = pneg %p85
        $region42: #{caputo_fractional_activation.1} parent=39 // pred_check_branch
          %4277 = sbr.rel (%p4275) target = $region44
        $region43: #{caputo_fractional_activation.1} parent=39 // pred_region
          %s4278 = smul.u32 32, %s15
          %p4279 = scmp.lt.s32.totalorder %s4278, 63
          %s4280 = scalar_select %p4279, %s4278, 63
          %s4281 = smul.addr %s4280, 8
          %s4282 = scalar_lea.vmem %s2, %s4281
        $region44: #{caputo_fractional_activation.1} parent=39 // pred_fallthru
          _
      $region40: #{caputo_fractional_activation.1} parent=5 // pred_fallthru
        _
    $region6: #{caputo_fractional_activation.1} parent=1 // loop_footer
      %s13 = sadd.s32 1, %s9
    $region7: #{caputo_fractional_activation.1} parent=1 // loop_footer_branch
      %8 = sbr.rel target = $region3
    $region8: #{caputo_fractional_activation.1} parent=1 // loop_exit
      _
    %4283 = vsyncpa [#allocation3], 1
    %s4284 = scalar_lea.sflag [#allocation3], 1
    %4285 = vsyncpa %s4284, 1

</llo_original>
